<compile_context>
chip_gen: v5e
topology: v5e:2x2
jax: 0.10.0
libtpu: 0.0.40
codegen_flags: <defaults>
</compile_context>

<pallas_src>
import math

import jax
import jax.numpy as jnp
from jax import lax
from jax.experimental import pallas as pl
from jax.experimental.pallas import tpu as pltpu

# ---------------- model hyper-parameters (small synthetic config) ----------------
INPUT_SIZE = 16      # module default 63; scaled down for the synthetic run
HIDDEN = 32          # module default 256
NUM_LAYERS = 3
NUM_CLASSES = 3
FC1 = 256            # hard-coded in the module's fc head
FC2 = 128
BN_EPS = 1e-5
BATCH = 2            # logical batch
BATCH_PAD = 8        # padded to the f32 sublane count -> full-width vregs/stores
SEQ = 8
LOGIT_PAD = 128      # lane-dense padded logits; real classes in cols [:NUM_CLASSES]

H = HIDDEN
H2 = 2 * HIDDEN      # fused state width: [h_fwd | h_bwd]
H8 = 8 * HIDDEN      # fused gate width:  [i | f | g | o], each 2H block = [fwd | bwd]
BP = BATCH_PAD
TB = SEQ * BP        # rows of the time-major activation slab


def _gelu_tanh(x):
    # tanh-approx GELU -> routed through the EUP slot instead of a VALU polynomial.
    # TODO(synk): torch default GELU is exact erf; tanh approx differs by ~1e-3.
    c = math.sqrt(2.0 / math.pi)
    return 0.5 * x * (1.0 + jnp.tanh(c * (x + 0.044715 * (x * x * x))))


def _sigmoid_via_tanh(x):
    # exact identity: sigmoid(x) = 0.5*(1 + tanh(x/2)); single EUP push.
    return 0.5 * (jnp.tanh(0.5 * x) + 1.0)


# ----------------------------- fused forward kernel -----------------------------
def fused_lstm_fc_kernel(x_ref,
                         wih0_ref, whh0_ref, b0_ref,
                         wih1_ref, whh1_ref, b1_ref,
                         wih2_ref, whh2_ref, b2_ref,
                         fw1_ref, fb1_ref, fw2_ref, fb2_ref, fw3_ref, fb3_ref,
                         out_ref,
                         seq1f_ref, seq1b_ref, seq2f_ref, seq2b_ref):
    # x_ref: (T*BP, INPUT_SIZE) time-major rows (row = t*BP + b), zero-padded batch
    # wih*:  (Din, 8H) bf16   whh*: (2H, 8H) bf16 (block-diag per direction)
    # b*:    (1, 8H)  f32
    # fw1: (2H, FC1) bf16, fw2: (FC1, FC2) bf16, fw3: (FC2, 128) bf16 (zero-padded)
    # out_ref: (BP, 128) f32, logits in rows [:BATCH], cols [:NUM_CLASSES]
    # seq*f/seq*b: (T*BP, H) f32 VMEM scratch holding per-time fwd / bwd outputs.

    # fwd/bwd column mask over the fused gate axis, hoisted once and shared:
    # within each 2H gate block, the first H columns belong to the fwd direction.
    col = lax.broadcasted_iota(jnp.int32, (TB, H8), 1)
    is_fwd_col = jnp.bitwise_and(col, H2 - 1) < H          # (col % 2H) < H

    def time_reverse(xp):
        # static row-block permutation: block s <- block (T-1-s); once per layer.
        return jnp.concatenate(
            [xp[(SEQ - 1 - s) * BP:(SEQ - s) * BP, :] for s in range(SEQ)], axis=0)

    def recurrence(gin_all, whh_ref, fwd_out_ref, bwd_out_ref):
        # gin_all: (T*BP, 8H) gate inputs, already fwd/bwd-merged per column.
        whh = whh_ref[...]                                  # hoisted: one load/layer
        h = jnp.zeros((BP, H2), jnp.float32)                # [h_fwd | h_bwd]
        c = jnp.zeros((BP, H2), jnp.float32)
        for s in range(SEQ):                                # static unroll, T = 8
            r = SEQ - 1 - s                                 # bwd walks time backwards
            gin = gin_all[s * BP:(s + 1) * BP, :]
            gates = gin + jnp.dot(h.astype(jnp.bfloat16), whh,
                                  preferred_element_type=jnp.float32)   # (BP, 8H)
            # torch gate order i, f, g, o; each fused 2H block = [fwd | bwd]
            i = _sigmoid_via_tanh(gates[:, 0 * H2:1 * H2])
            f = _sigmoid_via_tanh(gates[:, 1 * H2:2 * H2])
            g = jnp.tanh(gates[:, 2 * H2:3 * H2])
            o = _sigmoid_via_tanh(gates[:, 3 * H2:4 * H2])
            c = f * c + i * g
            h = o * jnp.tanh(c)
            if fwd_out_ref is not None:
                # per-step full-width scratch stores: live range ends immediately
                fwd_out_ref[pl.ds(s * BP, BP), :] = h[:, :H]   # fwd output at time s
                bwd_out_ref[pl.ds(r * BP, BP), :] = h[:, H:]   # bwd output at time r
        return h

    # ---- layer 0: input projection hoisted over all timesteps & directions ----
    xp0 = jnp.dot(x_ref[...].astype(jnp.bfloat16), wih0_ref[...],
                  preferred_element_type=jnp.float32) + b0_ref[...]
    gin0 = jnp.where(is_fwd_col, xp0, time_reverse(xp0))
    recurrence(gin0, whh0_ref, seq1f_ref, seq1b_ref)
    # TODO(synk): inter-layer LSTM dropout (p=0.4) is a no-op in inference mode.

    # ---- layer 1: split-dot over [fwd | bwd] scratch halves (no concat) ----
    wih1 = wih1_ref[...]
    xp1 = (jnp.dot(seq1f_ref[...].astype(jnp.bfloat16), wih1[:H, :],
                   preferred_element_type=jnp.float32)
           + jnp.dot(seq1b_ref[...].astype(jnp.bfloat16), wih1[H:, :],
                     preferred_element_type=jnp.float32) + b1_ref[...])
    gin1 = jnp.where(is_fwd_col, xp1, time_reverse(xp1))
    recurrence(gin1, whh1_ref, seq2f_ref, seq2b_ref)

    # ---- layer 2: only the final carry is needed ----
    wih2 = wih2_ref[...]
    xp2 = (jnp.dot(seq2f_ref[...].astype(jnp.bfloat16), wih2[:H, :],
                   preferred_element_type=jnp.float32)
           + jnp.dot(seq2b_ref[...].astype(jnp.bfloat16), wih2[H:, :],
                     preferred_element_type=jnp.float32) + b2_ref[...])
    gin2 = jnp.where(is_fwd_col, xp2, time_reverse(xp2))
    feat = recurrence(gin2, whh2_ref, None, None)
    # feat = [h_fwd(T-1) | h_bwd(0)]  ==  torch.cat((out[:,-1,:H], out[:,0,H:]), dim=1)

    # FC head: Linear -> BN(eval, folded) -> GELU -> (Dropout: no-op) -> ... -> Linear
    h1 = _gelu_tanh(jnp.dot(feat.astype(jnp.bfloat16), fw1_ref[...],
                            preferred_element_type=jnp.float32) + fb1_ref[...])
    h2 = _gelu_tanh(jnp.dot(h1.astype(jnp.bfloat16), fw2_ref[...],
                            preferred_element_type=jnp.float32) + fb2_ref[...])
    out_ref[...] = jnp.dot(h2.astype(jnp.bfloat16), fw3_ref[...],
                           preferred_element_type=jnp.float32) + fb3_ref[...]


# ------------------------------ parameter building ------------------------------
def _fused_lstm_layer_params(key, din):
    """PyTorch-initialised fwd/bwd LSTM weights fused into the [i|f|g|o]x[fwd|bwd]
    column layout expected by the kernel."""
    bnd = 1.0 / math.sqrt(HIDDEN)
    key, kf1, kf2, kf3, kf4, kb1, kb2, kb3, kb4 = jax.random.split(key, 9)

    def u(kk, shape):
        return jax.random.uniform(kk, shape, jnp.float32, -bnd, bnd)

    w_ih_f, w_hh_f = u(kf1, (4 * H, din)), u(kf2, (4 * H, H))
    b_f = u(kf3, (4 * H,)) + u(kf4, (4 * H,))               # b_ih + b_hh
    w_ih_b, w_hh_b = u(kb1, (4 * H, din)), u(kb2, (4 * H, H))
    b_b = u(kb3, (4 * H,)) + u(kb4, (4 * H,))

    wih = jnp.zeros((din, H8), jnp.float32)
    whh = jnp.zeros((H2, H8), jnp.float32)                  # block-diag per direction
    bias = jnp.zeros((1, H8), jnp.float32)
    for gate in range(4):                                   # torch gate order: i,f,g,o
        rows = slice(gate * H, (gate + 1) * H)
        cf = slice(gate * H2, gate * H2 + H)                # fused fwd cols of this gate
        cb = slice(gate * H2 + H, (gate + 1) * H2)          # fused bwd cols of this gate
        wih = wih.at[:, cf].set(w_ih_f[rows, :].T).at[:, cb].set(w_ih_b[rows, :].T)
        whh = whh.at[:H, cf].set(w_hh_f[rows, :].T).at[H:, cb].set(w_hh_b[rows, :].T)
        bias = bias.at[0, cf].set(b_f[rows]).at[0, cb].set(b_b[rows])
    # bf16 MXU operands (f32 accumulation in-kernel); ~1e-3-level relaxation.
    return key, {"wih": wih.astype(jnp.bfloat16),
                 "whh": whh.astype(jnp.bfloat16),
                 "b": bias}


def _fold_bn_into_linear(w_t, b, gamma, beta, mean, var):
    s = gamma / jnp.sqrt(var + BN_EPS)
    t = beta - mean * s
    return w_t * s[None, :], (b * s + t)[None, :]


def init_params(key):
    params = {"lstm": []}
    for layer in range(NUM_LAYERS):
        din = INPUT_SIZE if layer == 0 else H2
        key, lp = _fused_lstm_layer_params(key, din)
        params["lstm"].append(lp)

    def linear(key, fan_in, fan_out):
        key, kw, kb = jax.random.split(key, 3)
        bound = 1.0 / math.sqrt(fan_in)
        w = jax.random.uniform(kw, (fan_out, fan_in), jnp.float32, -bound, bound)
        b = jax.random.uniform(kb, (fan_out,), jnp.float32, -bound, bound)
        return key, w, b

    key, w1, b1 = linear(key, H2, FC1)
    key, w2, b2 = linear(key, FC1, FC2)
    key, w3, b3 = linear(key, FC2, NUM_CLASSES)
    # BatchNorm1d eval-mode defaults: gamma=1, beta=0, running_mean=0, running_var=1
    w1f, b1f = _fold_bn_into_linear(w1.T, b1, jnp.ones(FC1), jnp.zeros(FC1),
                                    jnp.zeros(FC1), jnp.ones(FC1))
    w2f, b2f = _fold_bn_into_linear(w2.T, b2, jnp.ones(FC2), jnp.zeros(FC2),
                                    jnp.zeros(FC2), jnp.ones(FC2))
    # pad the 3-class output to 128 lanes for a lane-dense final store
    w3p = jnp.zeros((FC2, LOGIT_PAD), jnp.float32).at[:, :NUM_CLASSES].set(w3.T)
    b3p = jnp.zeros((1, LOGIT_PAD), jnp.float32).at[0, :NUM_CLASSES].set(b3)
    params["fc"] = {"w1": w1f.astype(jnp.bfloat16), "b1": b1f,
                    "w2": w2f.astype(jnp.bfloat16), "b2": b2f,
                    "w3": w3p.astype(jnp.bfloat16), "b3": b3p}
    return params


# --------------------------------- forward pass ---------------------------------
def improved_landmark_lstm_forward(x, params):
    # x: (B, T, INPUT_SIZE), batch_first like the PyTorch module
    B, T, D = x.shape
    assert (B, T, D) == (BATCH, SEQ, INPUT_SIZE)
    # pad batch to the f32 sublane count (8) -> full-width vregs; pad rows dropped below
    x_pad = jnp.zeros((BP, T, D), jnp.float32).at[:B].set(x.astype(jnp.float32))
    x_flat = jnp.transpose(x_pad, (1, 0, 2)).reshape(T * BP, D)   # time-major rows
    l0, l1, l2 = params["lstm"]
    fc = params["fc"]
    # TODO(synk): at real sizes (H=256, long T) add a T-chunk grid + BlockSpecs, a
    # lax.fori_loop time loop, a parallel batch grid axis for v7x's 2 TensorCores,
    # and re-budget VMEM for v7x's 64 MiB; at this toy size everything (<1 MiB)
    # fits VMEM and a single grid-less call is fastest.
    logits_pad = pl.pallas_call(
        fused_lstm_fc_kernel,
        out_shape=jax.ShapeDtypeStruct((BP, LOGIT_PAD), jnp.float32),
        scratch_shapes=[pltpu.VMEM((TB, H), jnp.float32)] * 4,   # seq1f, seq1b, seq2f, seq2b
    )(x_flat,
      l0["wih"], l0["whh"], l0["b"],
      l1["wih"], l1["whh"], l1["b"],
      l2["wih"], l2["whh"], l2["b"],
      fc["w1"], fc["b1"], fc["w2"], fc["b2"], fc["w3"], fc["b3"])
    return logits_pad[:B, :NUM_CLASSES]


if __name__ == "__main__":
    x = jax.random.normal(jax.random.PRNGKey(0), (BATCH, SEQ, INPUT_SIZE), jnp.float32)
    params = init_params(jax.random.PRNGKey(1))

    fwd_fn = jax.jit(improved_landmark_lstm_forward)
    out = jax.block_until_ready(fwd_fn(x, params))

    assert out.shape == (BATCH, NUM_CLASSES), out.shape
    assert bool(jnp.all(jnp.isfinite(out)))
    print("KERNEL_OK")
</pallas_src>

<mosaic_0001>
module attributes {stable_mosaic.version = 11 : i64} {
  func.func @fused_lstm_fc_kernel(%arg0: memref<64x16xf32, #tpu.memory_space<vmem>>, %arg1: memref<16x256xbf16, #tpu.memory_space<vmem>>, %arg2: memref<64x256xbf16, #tpu.memory_space<vmem>>, %arg3: memref<1x256xf32, #tpu.memory_space<vmem>>, %arg4: memref<64x256xbf16, #tpu.memory_space<vmem>>, %arg5: memref<64x256xbf16, #tpu.memory_space<vmem>>, %arg6: memref<1x256xf32, #tpu.memory_space<vmem>>, %arg7: memref<64x256xbf16, #tpu.memory_space<vmem>>, %arg8: memref<64x256xbf16, #tpu.memory_space<vmem>>, %arg9: memref<1x256xf32, #tpu.memory_space<vmem>>, %arg10: memref<64x256xbf16, #tpu.memory_space<vmem>>, %arg11: memref<1x256xf32, #tpu.memory_space<vmem>>, %arg12: memref<256x128xbf16, #tpu.memory_space<vmem>>, %arg13: memref<1x128xf32, #tpu.memory_space<vmem>>, %arg14: memref<128x128xbf16, #tpu.memory_space<vmem>>, %arg15: memref<1x128xf32, #tpu.memory_space<vmem>>, %arg16: memref<8x128xf32, #tpu.memory_space<vmem>>, %arg17: memref<64x32xf32, #tpu.memory_space<vmem>>, %arg18: memref<64x32xf32, #tpu.memory_space<vmem>>, %arg19: memref<64x32xf32, #tpu.memory_space<vmem>>, %arg20: memref<64x32xf32, #tpu.memory_space<vmem>>) attributes {dimension_semantics = [], scalar_prefetch = 0 : i64, scratch_operands = 4 : i64, tpu.core_type = #tpu.core_type<tc>} {
    %0 = tpu.iota {dimensions = array<i32: 1>} : vector<64x256xi32>
    %c63_i32 = arith.constant 63 : i32
    %1 = vector.broadcast %c63_i32 : i32 to vector<64x256xi32>
    %2 = arith.andi %0, %1 : vector<64x256xi32>
    %c32_i32 = arith.constant 32 : i32
    %3 = vector.broadcast %c32_i32 : i32 to vector<64x256xi32>
    %4 = arith.cmpi slt, %2, %3 : vector<64x256xi32>
    %c0 = arith.constant 0 : index
    %c0_0 = arith.constant 0 : index
    %5 = vector.load %arg0[%c0, %c0_0] : memref<64x16xf32, #tpu.memory_space<vmem>>, vector<64x16xf32>
    %6 = arith.truncf %5 : vector<64x16xf32> to vector<64x16xbf16>
    %c0_1 = arith.constant 0 : index
    %c0_2 = arith.constant 0 : index
    %7 = vector.load %arg1[%c0_1, %c0_2] : memref<16x256xbf16, #tpu.memory_space<vmem>>, vector<16x256xbf16>
    %cst = arith.constant dense<0.000000e+00> : vector<64x256xf32>
    %8 = tpu.matmul %6, %7, %cst {dimension_numbers = #tpu.dot_dimension_numbers<[1], [0], [0], [1], [0, 0, 1, 1], [], []>} : vector<64x16xbf16>, vector<16x256xbf16>, vector<64x256xf32> -> vector<64x256xf32>
    %c0_3 = arith.constant 0 : index
    %c0_4 = arith.constant 0 : index
    %9 = vector.load %arg3[%c0_3, %c0_4] : memref<1x256xf32, #tpu.memory_space<vmem>>, vector<1x256xf32>
    %10 = vector.broadcast %9 : vector<1x256xf32> to vector<64x256xf32>
    %11 = arith.addf %8, %10 : vector<64x256xf32>
    %12 = vector.extract_strided_slice %11 {offsets = [56, 0], sizes = [8, 256], strides = [1, 1]} : vector<64x256xf32> to vector<8x256xf32>
    %13 = vector.extract_strided_slice %11 {offsets = [48, 0], sizes = [8, 256], strides = [1, 1]} : vector<64x256xf32> to vector<8x256xf32>
    %14 = vector.extract_strided_slice %11 {offsets = [40, 0], sizes = [8, 256], strides = [1, 1]} : vector<64x256xf32> to vector<8x256xf32>
    %15 = vector.extract_strided_slice %11 {offsets = [32, 0], sizes = [8, 256], strides = [1, 1]} : vector<64x256xf32> to vector<8x256xf32>
    %16 = vector.extract_strided_slice %11 {offsets = [24, 0], sizes = [8, 256], strides = [1, 1]} : vector<64x256xf32> to vector<8x256xf32>
    %17 = vector.extract_strided_slice %11 {offsets = [16, 0], sizes = [8, 256], strides = [1, 1]} : vector<64x256xf32> to vector<8x256xf32>
    %18 = vector.extract_strided_slice %11 {offsets = [8, 0], sizes = [8, 256], strides = [1, 1]} : vector<64x256xf32> to vector<8x256xf32>
    %19 = vector.extract_strided_slice %11 {offsets = [0, 0], sizes = [8, 256], strides = [1, 1]} : vector<64x256xf32> to vector<8x256xf32>
    %20 = tpu.concatenate %12, %13, %14, %15, %16, %17, %18, %19 in 0 : vector<8x256xf32>, vector<8x256xf32>, vector<8x256xf32>, vector<8x256xf32>, vector<8x256xf32>, vector<8x256xf32>, vector<8x256xf32>, vector<8x256xf32> -> vector<64x256xf32>
    %21 = arith.select %4, %11, %20 : vector<64x256xi1>, vector<64x256xf32>
    %c0_5 = arith.constant 0 : index
    %c0_6 = arith.constant 0 : index
    %22 = vector.load %arg2[%c0_5, %c0_6] : memref<64x256xbf16, #tpu.memory_space<vmem>>, vector<64x256xbf16>
    %cst_7 = arith.constant 0.000000e+00 : f32
    %23 = vector.broadcast %cst_7 : f32 to vector<8x64xf32>
    %cst_8 = arith.constant 0.000000e+00 : f32
    %24 = vector.broadcast %cst_8 : f32 to vector<8x64xf32>
    %25 = vector.extract_strided_slice %21 {offsets = [0, 0], sizes = [8, 256], strides = [1, 1]} : vector<64x256xf32> to vector<8x256xf32>
    %26 = arith.truncf %23 : vector<8x64xf32> to vector<8x64xbf16>
    %cst_9 = arith.constant dense<0.000000e+00> : vector<8x256xf32>
    %27 = tpu.matmul %26, %22, %cst_9 {dimension_numbers = #tpu.dot_dimension_numbers<[1], [0], [0], [1], [0, 0, 1, 1], [], []>} : vector<8x64xbf16>, vector<64x256xbf16>, vector<8x256xf32> -> vector<8x256xf32>
    %28 = arith.addf %25, %27 : vector<8x256xf32>
    %29 = vector.extract_strided_slice %28 {offsets = [0, 0], sizes = [8, 64], strides = [1, 1]} : vector<8x256xf32> to vector<8x64xf32>
    %cst_10 = arith.constant 5.000000e-01 : f32
    %30 = vector.broadcast %cst_10 : f32 to vector<8x64xf32>
    %31 = arith.mulf %30, %29 : vector<8x64xf32>
    %32 = math.tanh %31 : vector<8x64xf32>
    %cst_11 = arith.constant 1.000000e+00 : f32
    %33 = vector.broadcast %cst_11 : f32 to vector<8x64xf32>
    %34 = arith.addf %32, %33 : vector<8x64xf32>
    %cst_12 = arith.constant 5.000000e-01 : f32
    %35 = vector.broadcast %cst_12 : f32 to vector<8x64xf32>
    %36 = arith.mulf %35, %34 : vector<8x64xf32>
    %37 = vector.extract_strided_slice %28 {offsets = [0, 64], sizes = [8, 64], strides = [1, 1]} : vector<8x256xf32> to vector<8x64xf32>
    %cst_13 = arith.constant 5.000000e-01 : f32
    %38 = vector.broadcast %cst_13 : f32 to vector<8x64xf32>
    %39 = arith.mulf %38, %37 : vector<8x64xf32>
    %40 = math.tanh %39 : vector<8x64xf32>
    %cst_14 = arith.constant 1.000000e+00 : f32
    %41 = vector.broadcast %cst_14 : f32 to vector<8x64xf32>
    %42 = arith.addf %40, %41 : vector<8x64xf32>
    %cst_15 = arith.constant 5.000000e-01 : f32
    %43 = vector.broadcast %cst_15 : f32 to vector<8x64xf32>
    %44 = arith.mulf %43, %42 : vector<8x64xf32>
    %45 = vector.extract_strided_slice %28 {offsets = [0, 128], sizes = [8, 64], strides = [1, 1]} : vector<8x256xf32> to vector<8x64xf32>
    %46 = math.tanh %45 : vector<8x64xf32>
    %47 = vector.extract_strided_slice %28 {offsets = [0, 192], sizes = [8, 64], strides = [1, 1]} : vector<8x256xf32> to vector<8x64xf32>
    %cst_16 = arith.constant 5.000000e-01 : f32
    %48 = vector.broadcast %cst_16 : f32 to vector<8x64xf32>
    %49 = arith.mulf %48, %47 : vector<8x64xf32>
    %50 = math.tanh %49 : vector<8x64xf32>
    %cst_17 = arith.constant 1.000000e+00 : f32
    %51 = vector.broadcast %cst_17 : f32 to vector<8x64xf32>
    %52 = arith.addf %50, %51 : vector<8x64xf32>
    %cst_18 = arith.constant 5.000000e-01 : f32
    %53 = vector.broadcast %cst_18 : f32 to vector<8x64xf32>
    %54 = arith.mulf %53, %52 : vector<8x64xf32>
    %55 = arith.mulf %44, %24 : vector<8x64xf32>
    %56 = arith.mulf %36, %46 : vector<8x64xf32>
    %57 = arith.addf %55, %56 : vector<8x64xf32>
    %58 = math.tanh %57 : vector<8x64xf32>
    %59 = arith.mulf %54, %58 : vector<8x64xf32>
    %60 = vector.extract_strided_slice %59 {offsets = [0, 0], sizes = [8, 32], strides = [1, 1]} : vector<8x64xf32> to vector<8x32xf32>
    %c0_19 = arith.constant 0 : index
    %c0_20 = arith.constant 0 : index
    %61 = vector.load %arg17[%c0_19, %c0_20] : memref<64x32xf32, #tpu.memory_space<vmem>>, vector<8x32xf32>
    tpu.vector_store %arg17[%c0_19, %c0_20], %60 {strides = array<i32>} : memref<64x32xf32, #tpu.memory_space<vmem>>, vector<8x32xf32>,
    %62 = vector.extract_strided_slice %59 {offsets = [0, 32], sizes = [8, 32], strides = [1, 1]} : vector<8x64xf32> to vector<8x32xf32>
    %c56 = arith.constant 56 : index
    %c0_21 = arith.constant 0 : index
    %63 = vector.load %arg18[%c56, %c0_21] : memref<64x32xf32, #tpu.memory_space<vmem>>, vector<8x32xf32>
    tpu.vector_store %arg18[%c56, %c0_21], %62 {strides = array<i32>} : memref<64x32xf32, #tpu.memory_space<vmem>>, vector<8x32xf32>,
    %64 = vector.extract_strided_slice %21 {offsets = [8, 0], sizes = [8, 256], strides = [1, 1]} : vector<64x256xf32> to vector<8x256xf32>
    %65 = arith.truncf %59 : vector<8x64xf32> to vector<8x64xbf16>
    %cst_22 = arith.constant dense<0.000000e+00> : vector<8x256xf32>
    %66 = tpu.matmul %65, %22, %cst_22 {dimension_numbers = #tpu.dot_dimension_numbers<[1], [0], [0], [1], [0, 0, 1, 1], [], []>} : vector<8x64xbf16>, vector<64x256xbf16>, vector<8x256xf32> -> vector<8x256xf32>
    %67 = arith.addf %64, %66 : vector<8x256xf32>
    %68 = vector.extract_strided_slice %67 {offsets = [0, 0], sizes = [8, 64], strides = [1, 1]} : vector<8x256xf32> to vector<8x64xf32>
    %cst_23 = arith.constant 5.000000e-01 : f32
    %69 = vector.broadcast %cst_23 : f32 to vector<8x64xf32>
    %70 = arith.mulf %69, %68 : vector<8x64xf32>
    %71 = math.tanh %70 : vector<8x64xf32>
    %cst_24 = arith.constant 1.000000e+00 : f32
    %72 = vector.broadcast %cst_24 : f32 to vector<8x64xf32>
    %73 = arith.addf %71, %72 : vector<8x64xf32>
    %cst_25 = arith.constant 5.000000e-01 : f32
    %74 = vector.broadcast %cst_25 : f32 to vector<8x64xf32>
    %75 = arith.mulf %74, %73 : vector<8x64xf32>
    %76 = vector.extract_strided_slice %67 {offsets = [0, 64], sizes = [8, 64], strides = [1, 1]} : vector<8x256xf32> to vector<8x64xf32>
    %cst_26 = arith.constant 5.000000e-01 : f32
    %77 = vector.broadcast %cst_26 : f32 to vector<8x64xf32>
    %78 = arith.mulf %77, %76 : vector<8x64xf32>
    %79 = math.tanh %78 : vector<8x64xf32>
    %cst_27 = arith.constant 1.000000e+00 : f32
    %80 = vector.broadcast %cst_27 : f32 to vector<8x64xf32>
    %81 = arith.addf %79, %80 : vector<8x64xf32>
    %cst_28 = arith.constant 5.000000e-01 : f32
    %82 = vector.broadcast %cst_28 : f32 to vector<8x64xf32>
    %83 = arith.mulf %82, %81 : vector<8x64xf32>
    %84 = vector.extract_strided_slice %67 {offsets = [0, 128], sizes = [8, 64], strides = [1, 1]} : vector<8x256xf32> to vector<8x64xf32>
    %85 = math.tanh %84 : vector<8x64xf32>
    %86 = vector.extract_strided_slice %67 {offsets = [0, 192], sizes = [8, 64], strides = [1, 1]} : vector<8x256xf32> to vector<8x64xf32>
    %cst_29 = arith.constant 5.000000e-01 : f32
    %87 = vector.broadcast %cst_29 : f32 to vector<8x64xf32>
    %88 = arith.mulf %87, %86 : vector<8x64xf32>
    %89 = math.tanh %88 : vector<8x64xf32>
    %cst_30 = arith.constant 1.000000e+00 : f32
    %90 = vector.broadcast %cst_30 : f32 to vector<8x64xf32>
    %91 = arith.addf %89, %90 : vector<8x64xf32>
    %cst_31 = arith.constant 5.000000e-01 : f32
    %92 = vector.broadcast %cst_31 : f32 to vector<8x64xf32>
    %93 = arith.mulf %92, %91 : vector<8x64xf32>
    %94 = arith.mulf %83, %57 : vector<8x64xf32>
    %95 = arith.mulf %75, %85 : vector<8x64xf32>
    %96 = arith.addf %94, %95 : vector<8x64xf32>
    %97 = math.tanh %96 : vector<8x64xf32>
    %98 = arith.mulf %93, %97 : vector<8x64xf32>
    %99 = vector.extract_strided_slice %98 {offsets = [0, 0], sizes = [8, 32], strides = [1, 1]} : vector<8x64xf32> to vector<8x32xf32>
    %c8 = arith.constant 8 : index
    %c0_32 = arith.constant 0 : index
    %100 = vector.load %arg17[%c8, %c0_32] : memref<64x32xf32, #tpu.memory_space<vmem>>, vector<8x32xf32>
    tpu.vector_store %arg17[%c8, %c0_32], %99 {strides = array<i32>} : memref<64x32xf32, #tpu.memory_space<vmem>>, vector<8x32xf32>,
    %101 = vector.extract_strided_slice %98 {offsets = [0, 32], sizes = [8, 32], strides = [1, 1]} : vector<8x64xf32> to vector<8x32xf32>
    %c48 = arith.constant 48 : index
    %c0_33 = arith.constant 0 : index
    %102 = vector.load %arg18[%c48, %c0_33] : memref<64x32xf32, #tpu.memory_space<vmem>>, vector<8x32xf32>
    tpu.vector_store %arg18[%c48, %c0_33], %101 {strides = array<i32>} : memref<64x32xf32, #tpu.memory_space<vmem>>, vector<8x32xf32>,
    %103 = vector.extract_strided_slice %21 {offsets = [16, 0], sizes = [8, 256], strides = [1, 1]} : vector<64x256xf32> to vector<8x256xf32>
    %104 = arith.truncf %98 : vector<8x64xf32> to vector<8x64xbf16>
    %cst_34 = arith.constant dense<0.000000e+00> : vector<8x256xf32>
    %105 = tpu.matmul %104, %22, %cst_34 {dimension_numbers = #tpu.dot_dimension_numbers<[1], [0], [0], [1], [0, 0, 1, 1], [], []>} : vector<8x64xbf16>, vector<64x256xbf16>, vector<8x256xf32> -> vector<8x256xf32>
    %106 = arith.addf %103, %105 : vector<8x256xf32>
    %107 = vector.extract_strided_slice %106 {offsets = [0, 0], sizes = [8, 64], strides = [1, 1]} : vector<8x256xf32> to vector<8x64xf32>
    %cst_35 = arith.constant 5.000000e-01 : f32
    %108 = vector.broadcast %cst_35 : f32 to vector<8x64xf32>
    %109 = arith.mulf %108, %107 : vector<8x64xf32>
    %110 = math.tanh %109 : vector<8x64xf32>
    %cst_36 = arith.constant 1.000000e+00 : f32
    %111 = vector.broadcast %cst_36 : f32 to vector<8x64xf32>
    %112 = arith.addf %110, %111 : vector<8x64xf32>
    %cst_37 = arith.constant 5.000000e-01 : f32
    %113 = vector.broadcast %cst_37 : f32 to vector<8x64xf32>
    %114 = arith.mulf %113, %112 : vector<8x64xf32>
    %115 = vector.extract_strided_slice %106 {offsets = [0, 64], sizes = [8, 64], strides = [1, 1]} : vector<8x256xf32> to vector<8x64xf32>
    %cst_38 = arith.constant 5.000000e-01 : f32
    %116 = vector.broadcast %cst_38 : f32 to vector<8x64xf32>
    %117 = arith.mulf %116, %115 : vector<8x64xf32>
    %118 = math.tanh %117 : vector<8x64xf32>
    %cst_39 = arith.constant 1.000000e+00 : f32
    %119 = vector.broadcast %cst_39 : f32 to vector<8x64xf32>
    %120 = arith.addf %118, %119 : vector<8x64xf32>
    %cst_40 = arith.constant 5.000000e-01 : f32
    %121 = vector.broadcast %cst_40 : f32 to vector<8x64xf32>
    %122 = arith.mulf %121, %120 : vector<8x64xf32>
    %123 = vector.extract_strided_slice %106 {offsets = [0, 128], sizes = [8, 64], strides = [1, 1]} : vector<8x256xf32> to vector<8x64xf32>
    %124 = math.tanh %123 : vector<8x64xf32>
    %125 = vector.extract_strided_slice %106 {offsets = [0, 192], sizes = [8, 64], strides = [1, 1]} : vector<8x256xf32> to vector<8x64xf32>
    %cst_41 = arith.constant 5.000000e-01 : f32
    %126 = vector.broadcast %cst_41 : f32 to vector<8x64xf32>
    %127 = arith.mulf %126, %125 : vector<8x64xf32>
    %128 = math.tanh %127 : vector<8x64xf32>
    %cst_42 = arith.constant 1.000000e+00 : f32
    %129 = vector.broadcast %cst_42 : f32 to vector<8x64xf32>
    %130 = arith.addf %128, %129 : vector<8x64xf32>
    %cst_43 = arith.constant 5.000000e-01 : f32
    %131 = vector.broadcast %cst_43 : f32 to vector<8x64xf32>
    %132 = arith.mulf %131, %130 : vector<8x64xf32>
    %133 = arith.mulf %122, %96 : vector<8x64xf32>
    %134 = arith.mulf %114, %124 : vector<8x64xf32>
    %135 = arith.addf %133, %134 : vector<8x64xf32>
    %136 = math.tanh %135 : vector<8x64xf32>
    %137 = arith.mulf %132, %136 : vector<8x64xf32>
    %138 = vector.extract_strided_slice %137 {offsets = [0, 0], sizes = [8, 32], strides = [1, 1]} : vector<8x64xf32> to vector<8x32xf32>
    %c16 = arith.constant 16 : index
    %c0_44 = arith.constant 0 : index
    %139 = vector.load %arg17[%c16, %c0_44] : memref<64x32xf32, #tpu.memory_space<vmem>>, vector<8x32xf32>
    tpu.vector_store %arg17[%c16, %c0_44], %138 {strides = array<i32>} : memref<64x32xf32, #tpu.memory_space<vmem>>, vector<8x32xf32>,
    %140 = vector.extract_strided_slice %137 {offsets = [0, 32], sizes = [8, 32], strides = [1, 1]} : vector<8x64xf32> to vector<8x32xf32>
    %c40 = arith.constant 40 : index
    %c0_45 = arith.constant 0 : index
    %141 = vector.load %arg18[%c40, %c0_45] : memref<64x32xf32, #tpu.memory_space<vmem>>, vector<8x32xf32>
    tpu.vector_store %arg18[%c40, %c0_45], %140 {strides = array<i32>} : memref<64x32xf32, #tpu.memory_space<vmem>>, vector<8x32xf32>,
    %142 = vector.extract_strided_slice %21 {offsets = [24, 0], sizes = [8, 256], strides = [1, 1]} : vector<64x256xf32> to vector<8x256xf32>
    %143 = arith.truncf %137 : vector<8x64xf32> to vector<8x64xbf16>
    %cst_46 = arith.constant dense<0.000000e+00> : vector<8x256xf32>
    %144 = tpu.matmul %143, %22, %cst_46 {dimension_numbers = #tpu.dot_dimension_numbers<[1], [0], [0], [1], [0, 0, 1, 1], [], []>} : vector<8x64xbf16>, vector<64x256xbf16>, vector<8x256xf32> -> vector<8x256xf32>
    %145 = arith.addf %142, %144 : vector<8x256xf32>
    %146 = vector.extract_strided_slice %145 {offsets = [0, 0], sizes = [8, 64], strides = [1, 1]} : vector<8x256xf32> to vector<8x64xf32>
    %cst_47 = arith.constant 5.000000e-01 : f32
    %147 = vector.broadcast %cst_47 : f32 to vector<8x64xf32>
    %148 = arith.mulf %147, %146 : vector<8x64xf32>
    %149 = math.tanh %148 : vector<8x64xf32>
    %cst_48 = arith.constant 1.000000e+00 : f32
    %150 = vector.broadcast %cst_48 : f32 to vector<8x64xf32>
    %151 = arith.addf %149, %150 : vector<8x64xf32>
    %cst_49 = arith.constant 5.000000e-01 : f32
    %152 = vector.broadcast %cst_49 : f32 to vector<8x64xf32>
    %153 = arith.mulf %152, %151 : vector<8x64xf32>
    %154 = vector.extract_strided_slice %145 {offsets = [0, 64], sizes = [8, 64], strides = [1, 1]} : vector<8x256xf32> to vector<8x64xf32>
    %cst_50 = arith.constant 5.000000e-01 : f32
    %155 = vector.broadcast %cst_50 : f32 to vector<8x64xf32>
    %156 = arith.mulf %155, %154 : vector<8x64xf32>
    %157 = math.tanh %156 : vector<8x64xf32>
    %cst_51 = arith.constant 1.000000e+00 : f32
    %158 = vector.broadcast %cst_51 : f32 to vector<8x64xf32>
    %159 = arith.addf %157, %158 : vector<8x64xf32>
    %cst_52 = arith.constant 5.000000e-01 : f32
    %160 = vector.broadcast %cst_52 : f32 to vector<8x64xf32>
    %161 = arith.mulf %160, %159 : vector<8x64xf32>
    %162 = vector.extract_strided_slice %145 {offsets = [0, 128], sizes = [8, 64], strides = [1, 1]} : vector<8x256xf32> to vector<8x64xf32>
    %163 = math.tanh %162 : vector<8x64xf32>
    %164 = vector.extract_strided_slice %145 {offsets = [0, 192], sizes = [8, 64], strides = [1, 1]} : vector<8x256xf32> to vector<8x64xf32>
    %cst_53 = arith.constant 5.000000e-01 : f32
    %165 = vector.broadcast %cst_53 : f32 to vector<8x64xf32>
    %166 = arith.mulf %165, %164 : vector<8x64xf32>
    %167 = math.tanh %166 : vector<8x64xf32>
    %cst_54 = arith.constant 1.000000e+00 : f32
    %168 = vector.broadcast %cst_54 : f32 to vector<8x64xf32>
    %169 = arith.addf %167, %168 : vector<8x64xf32>
    %cst_55 = arith.constant 5.000000e-01 : f32
    %170 = vector.broadcast %cst_55 : f32 to vector<8x64xf32>
    %171 = arith.mulf %170, %169 : vector<8x64xf32>
    %172 = arith.mulf %161, %135 : vector<8x64xf32>
    %173 = arith.mulf %153, %163 : vector<8x64xf32>
    %174 = arith.addf %172, %173 : vector<8x64xf32>
    %175 = math.tanh %174 : vector<8x64xf32>
    %176 = arith.mulf %171, %175 : vector<8x64xf32>
    %177 = vector.extract_strided_slice %176 {offsets = [0, 0], sizes = [8, 32], strides = [1, 1]} : vector<8x64xf32> to vector<8x32xf32>
    %c24 = arith.constant 24 : index
    %c0_56 = arith.constant 0 : index
    %178 = vector.load %arg17[%c24, %c0_56] : memref<64x32xf32, #tpu.memory_space<vmem>>, vector<8x32xf32>
    tpu.vector_store %arg17[%c24, %c0_56], %177 {strides = array<i32>} : memref<64x32xf32, #tpu.memory_space<vmem>>, vector<8x32xf32>,
    %179 = vector.extract_strided_slice %176 {offsets = [0, 32], sizes = [8, 32], strides = [1, 1]} : vector<8x64xf32> to vector<8x32xf32>
    %c32 = arith.constant 32 : index
    %c0_57 = arith.constant 0 : index
    %180 = vector.load %arg18[%c32, %c0_57] : memref<64x32xf32, #tpu.memory_space<vmem>>, vector<8x32xf32>
    tpu.vector_store %arg18[%c32, %c0_57], %179 {strides = array<i32>} : memref<64x32xf32, #tpu.memory_space<vmem>>, vector<8x32xf32>,
    %181 = vector.extract_strided_slice %21 {offsets = [32, 0], sizes = [8, 256], strides = [1, 1]} : vector<64x256xf32> to vector<8x256xf32>
    %182 = arith.truncf %176 : vector<8x64xf32> to vector<8x64xbf16>
    %cst_58 = arith.constant dense<0.000000e+00> : vector<8x256xf32>
    %183 = tpu.matmul %182, %22, %cst_58 {dimension_numbers = #tpu.dot_dimension_numbers<[1], [0], [0], [1], [0, 0, 1, 1], [], []>} : vector<8x64xbf16>, vector<64x256xbf16>, vector<8x256xf32> -> vector<8x256xf32>
    %184 = arith.addf %181, %183 : vector<8x256xf32>
    %185 = vector.extract_strided_slice %184 {offsets = [0, 0], sizes = [8, 64], strides = [1, 1]} : vector<8x256xf32> to vector<8x64xf32>
    %cst_59 = arith.constant 5.000000e-01 : f32
    %186 = vector.broadcast %cst_59 : f32 to vector<8x64xf32>
    %187 = arith.mulf %186, %185 : vector<8x64xf32>
    %188 = math.tanh %187 : vector<8x64xf32>
    %cst_60 = arith.constant 1.000000e+00 : f32
    %189 = vector.broadcast %cst_60 : f32 to vector<8x64xf32>
    %190 = arith.addf %188, %189 : vector<8x64xf32>
    %cst_61 = arith.constant 5.000000e-01 : f32
    %191 = vector.broadcast %cst_61 : f32 to vector<8x64xf32>
    %192 = arith.mulf %191, %190 : vector<8x64xf32>
    %193 = vector.extract_strided_slice %184 {offsets = [0, 64], sizes = [8, 64], strides = [1, 1]} : vector<8x256xf32> to vector<8x64xf32>
    %cst_62 = arith.constant 5.000000e-01 : f32
    %194 = vector.broadcast %cst_62 : f32 to vector<8x64xf32>
    %195 = arith.mulf %194, %193 : vector<8x64xf32>
    %196 = math.tanh %195 : vector<8x64xf32>
    %cst_63 = arith.constant 1.000000e+00 : f32
    %197 = vector.broadcast %cst_63 : f32 to vector<8x64xf32>
    %198 = arith.addf %196, %197 : vector<8x64xf32>
    %cst_64 = arith.constant 5.000000e-01 : f32
    %199 = vector.broadcast %cst_64 : f32 to vector<8x64xf32>
    %200 = arith.mulf %199, %198 : vector<8x64xf32>
    %201 = vector.extract_strided_slice %184 {offsets = [0, 128], sizes = [8, 64], strides = [1, 1]} : vector<8x256xf32> to vector<8x64xf32>
    %202 = math.tanh %201 : vector<8x64xf32>
    %203 = vector.extract_strided_slice %184 {offsets = [0, 192], sizes = [8, 64], strides = [1, 1]} : vector<8x256xf32> to vector<8x64xf32>
    %cst_65 = arith.constant 5.000000e-01 : f32
    %204 = vector.broadcast %cst_65 : f32 to vector<8x64xf32>
    %205 = arith.mulf %204, %203 : vector<8x64xf32>
    %206 = math.tanh %205 : vector<8x64xf32>
    %cst_66 = arith.constant 1.000000e+00 : f32
    %207 = vector.broadcast %cst_66 : f32 to vector<8x64xf32>
    %208 = arith.addf %206, %207 : vector<8x64xf32>
    %cst_67 = arith.constant 5.000000e-01 : f32
    %209 = vector.broadcast %cst_67 : f32 to vector<8x64xf32>
    %210 = arith.mulf %209, %208 : vector<8x64xf32>
    %211 = arith.mulf %200, %174 : vector<8x64xf32>
    %212 = arith.mulf %192, %202 : vector<8x64xf32>
    %213 = arith.addf %211, %212 : vector<8x64xf32>
    %214 = math.tanh %213 : vector<8x64xf32>
    %215 = arith.mulf %210, %214 : vector<8x64xf32>
    %216 = vector.extract_strided_slice %215 {offsets = [0, 0], sizes = [8, 32], strides = [1, 1]} : vector<8x64xf32> to vector<8x32xf32>
    %c32_68 = arith.constant 32 : index
    %c0_69 = arith.constant 0 : index
    %217 = vector.load %arg17[%c32_68, %c0_69] : memref<64x32xf32, #tpu.memory_space<vmem>>, vector<8x32xf32>
    tpu.vector_store %arg17[%c32_68, %c0_69], %216 {strides = array<i32>} : memref<64x32xf32, #tpu.memory_space<vmem>>, vector<8x32xf32>,
    %218 = vector.extract_strided_slice %215 {offsets = [0, 32], sizes = [8, 32], strides = [1, 1]} : vector<8x64xf32> to vector<8x32xf32>
    %c24_70 = arith.constant 24 : index
    %c0_71 = arith.constant 0 : index
    %219 = vector.load %arg18[%c24_70, %c0_71] : memref<64x32xf32, #tpu.memory_space<vmem>>, vector<8x32xf32>
    tpu.vector_store %arg18[%c24_70, %c0_71], %218 {strides = array<i32>} : memref<64x32xf32, #tpu.memory_space<vmem>>, vector<8x32xf32>,
    %220 = vector.extract_strided_slice %21 {offsets = [40, 0], sizes = [8, 256], strides = [1, 1]} : vector<64x256xf32> to vector<8x256xf32>
    %221 = arith.truncf %215 : vector<8x64xf32> to vector<8x64xbf16>
    %cst_72 = arith.constant dense<0.000000e+00> : vector<8x256xf32>
    %222 = tpu.matmul %221, %22, %cst_72 {dimension_numbers = #tpu.dot_dimension_numbers<[1], [0], [0], [1], [0, 0, 1, 1], [], []>} : vector<8x64xbf16>, vector<64x256xbf16>, vector<8x256xf32> -> vector<8x256xf32>
    %223 = arith.addf %220, %222 : vector<8x256xf32>
    %224 = vector.extract_strided_slice %223 {offsets = [0, 0], sizes = [8, 64], strides = [1, 1]} : vector<8x256xf32> to vector<8x64xf32>
    %cst_73 = arith.constant 5.000000e-01 : f32
    %225 = vector.broadcast %cst_73 : f32 to vector<8x64xf32>
    %226 = arith.mulf %225, %224 : vector<8x64xf32>
    %227 = math.tanh %226 : vector<8x64xf32>
    %cst_74 = arith.constant 1.000000e+00 : f32
    %228 = vector.broadcast %cst_74 : f32 to vector<8x64xf32>
    %229 = arith.addf %227, %228 : vector<8x64xf32>
    %cst_75 = arith.constant 5.000000e-01 : f32
    %230 = vector.broadcast %cst_75 : f32 to vector<8x64xf32>
    %231 = arith.mulf %230, %229 : vector<8x64xf32>
    %232 = vector.extract_strided_slice %223 {offsets = [0, 64], sizes = [8, 64], strides = [1, 1]} : vector<8x256xf32> to vector<8x64xf32>
    %cst_76 = arith.constant 5.000000e-01 : f32
    %233 = vector.broadcast %cst_76 : f32 to vector<8x64xf32>
    %234 = arith.mulf %233, %232 : vector<8x64xf32>
    %235 = math.tanh %234 : vector<8x64xf32>
    %cst_77 = arith.constant 1.000000e+00 : f32
    %236 = vector.broadcast %cst_77 : f32 to vector<8x64xf32>
    %237 = arith.addf %235, %236 : vector<8x64xf32>
    %cst_78 = arith.constant 5.000000e-01 : f32
    %238 = vector.broadcast %cst_78 : f32 to vector<8x64xf32>
    %239 = arith.mulf %238, %237 : vector<8x64xf32>
    %240 = vector.extract_strided_slice %223 {offsets = [0, 128], sizes = [8, 64], strides = [1, 1]} : vector<8x256xf32> to vector<8x64xf32>
    %241 = math.tanh %240 : vector<8x64xf32>
    %242 = vector.extract_strided_slice %223 {offsets = [0, 192], sizes = [8, 64], strides = [1, 1]} : vector<8x256xf32> to vector<8x64xf32>
    %cst_79 = arith.constant 5.000000e-01 : f32
    %243 = vector.broadcast %cst_79 : f32 to vector<8x64xf32>
    %244 = arith.mulf %243, %242 : vector<8x64xf32>
    %245 = math.tanh %244 : vector<8x64xf32>
    %cst_80 = arith.constant 1.000000e+00 : f32
    %246 = vector.broadcast %cst_80 : f32 to vector<8x64xf32>
    %247 = arith.addf %245, %246 : vector<8x64xf32>
    %cst_81 = arith.constant 5.000000e-01 : f32
    %248 = vector.broadcast %cst_81 : f32 to vector<8x64xf32>
    %249 = arith.mulf %248, %247 : vector<8x64xf32>
    %250 = arith.mulf %239, %213 : vector<8x64xf32>
    %251 = arith.mulf %231, %241 : vector<8x64xf32>
    %252 = arith.addf %250, %251 : vector<8x64xf32>
    %253 = math.tanh %252 : vector<8x64xf32>
    %254 = arith.mulf %249, %253 : vector<8x64xf32>
    %255 = vector.extract_strided_slice %254 {offsets = [0, 0], sizes = [8, 32], strides = [1, 1]} : vector<8x64xf32> to vector<8x32xf32>
    %c40_82 = arith.constant 40 : index
    %c0_83 = arith.constant 0 : index
    %256 = vector.load %arg17[%c40_82, %c0_83] : memref<64x32xf32, #tpu.memory_space<vmem>>, vector<8x32xf32>
    tpu.vector_store %arg17[%c40_82, %c0_83], %255 {strides = array<i32>} : memref<64x32xf32, #tpu.memory_space<vmem>>, vector<8x32xf32>,
    %257 = vector.extract_strided_slice %254 {offsets = [0, 32], sizes = [8, 32], strides = [1, 1]} : vector<8x64xf32> to vector<8x32xf32>
    %c16_84 = arith.constant 16 : index
    %c0_85 = arith.constant 0 : index
    %258 = vector.load %arg18[%c16_84, %c0_85] : memref<64x32xf32, #tpu.memory_space<vmem>>, vector<8x32xf32>
    tpu.vector_store %arg18[%c16_84, %c0_85], %257 {strides = array<i32>} : memref<64x32xf32, #tpu.memory_space<vmem>>, vector<8x32xf32>,
    %259 = vector.extract_strided_slice %21 {offsets = [48, 0], sizes = [8, 256], strides = [1, 1]} : vector<64x256xf32> to vector<8x256xf32>
    %260 = arith.truncf %254 : vector<8x64xf32> to vector<8x64xbf16>
    %cst_86 = arith.constant dense<0.000000e+00> : vector<8x256xf32>
    %261 = tpu.matmul %260, %22, %cst_86 {dimension_numbers = #tpu.dot_dimension_numbers<[1], [0], [0], [1], [0, 0, 1, 1], [], []>} : vector<8x64xbf16>, vector<64x256xbf16>, vector<8x256xf32> -> vector<8x256xf32>
    %262 = arith.addf %259, %261 : vector<8x256xf32>
    %263 = vector.extract_strided_slice %262 {offsets = [0, 0], sizes = [8, 64], strides = [1, 1]} : vector<8x256xf32> to vector<8x64xf32>
    %cst_87 = arith.constant 5.000000e-01 : f32
    %264 = vector.broadcast %cst_87 : f32 to vector<8x64xf32>
    %265 = arith.mulf %264, %263 : vector<8x64xf32>
    %266 = math.tanh %265 : vector<8x64xf32>
    %cst_88 = arith.constant 1.000000e+00 : f32
    %267 = vector.broadcast %cst_88 : f32 to vector<8x64xf32>
    %268 = arith.addf %266, %267 : vector<8x64xf32>
    %cst_89 = arith.constant 5.000000e-01 : f32
    %269 = vector.broadcast %cst_89 : f32 to vector<8x64xf32>
    %270 = arith.mulf %269, %268 : vector<8x64xf32>
    %271 = vector.extract_strided_slice %262 {offsets = [0, 64], sizes = [8, 64], strides = [1, 1]} : vector<8x256xf32> to vector<8x64xf32>
    %cst_90 = arith.constant 5.000000e-01 : f32
    %272 = vector.broadcast %cst_90 : f32 to vector<8x64xf32>
    %273 = arith.mulf %272, %271 : vector<8x64xf32>
    %274 = math.tanh %273 : vector<8x64xf32>
    %cst_91 = arith.constant 1.000000e+00 : f32
    %275 = vector.broadcast %cst_91 : f32 to vector<8x64xf32>
    %276 = arith.addf %274, %275 : vector<8x64xf32>
    %cst_92 = arith.constant 5.000000e-01 : f32
    %277 = vector.broadcast %cst_92 : f32 to vector<8x64xf32>
    %278 = arith.mulf %277, %276 : vector<8x64xf32>
    %279 = vector.extract_strided_slice %262 {offsets = [0, 128], sizes = [8, 64], strides = [1, 1]} : vector<8x256xf32> to vector<8x64xf32>
    %280 = math.tanh %279 : vector<8x64xf32>
    %281 = vector.extract_strided_slice %262 {offsets = [0, 192], sizes = [8, 64], strides = [1, 1]} : vector<8x256xf32> to vector<8x64xf32>
    %cst_93 = arith.constant 5.000000e-01 : f32
    %282 = vector.broadcast %cst_93 : f32 to vector<8x64xf32>
    %283 = arith.mulf %282, %281 : vector<8x64xf32>
    %284 = math.tanh %283 : vector<8x64xf32>
    %cst_94 = arith.constant 1.000000e+00 : f32
    %285 = vector.broadcast %cst_94 : f32 to vector<8x64xf32>
    %286 = arith.addf %284, %285 : vector<8x64xf32>
    %cst_95 = arith.constant 5.000000e-01 : f32
    %287 = vector.broadcast %cst_95 : f32 to vector<8x64xf32>
    %288 = arith.mulf %287, %286 : vector<8x64xf32>
    %289 = arith.mulf %278, %252 : vector<8x64xf32>
    %290 = arith.mulf %270, %280 : vector<8x64xf32>
    %291 = arith.addf %289, %290 : vector<8x64xf32>
    %292 = math.tanh %291 : vector<8x64xf32>
    %293 = arith.mulf %288, %292 : vector<8x64xf32>
    %294 = vector.extract_strided_slice %293 {offsets = [0, 0], sizes = [8, 32], strides = [1, 1]} : vector<8x64xf32> to vector<8x32xf32>
    %c48_96 = arith.constant 48 : index
    %c0_97 = arith.constant 0 : index
    %295 = vector.load %arg17[%c48_96, %c0_97] : memref<64x32xf32, #tpu.memory_space<vmem>>, vector<8x32xf32>
    tpu.vector_store %arg17[%c48_96, %c0_97], %294 {strides = array<i32>} : memref<64x32xf32, #tpu.memory_space<vmem>>, vector<8x32xf32>,
    %296 = vector.extract_strided_slice %293 {offsets = [0, 32], sizes = [8, 32], strides = [1, 1]} : vector<8x64xf32> to vector<8x32xf32>
    %c8_98 = arith.constant 8 : index
    %c0_99 = arith.constant 0 : index
    %297 = vector.load %arg18[%c8_98, %c0_99] : memref<64x32xf32, #tpu.memory_space<vmem>>, vector<8x32xf32>
    tpu.vector_store %arg18[%c8_98, %c0_99], %296 {strides = array<i32>} : memref<64x32xf32, #tpu.memory_space<vmem>>, vector<8x32xf32>,
    %298 = vector.extract_strided_slice %21 {offsets = [56, 0], sizes = [8, 256], strides = [1, 1]} : vector<64x256xf32> to vector<8x256xf32>
    %299 = arith.truncf %293 : vector<8x64xf32> to vector<8x64xbf16>
    %cst_100 = arith.constant dense<0.000000e+00> : vector<8x256xf32>
    %300 = tpu.matmul %299, %22, %cst_100 {dimension_numbers = #tpu.dot_dimension_numbers<[1], [0], [0], [1], [0, 0, 1, 1], [], []>} : vector<8x64xbf16>, vector<64x256xbf16>, vector<8x256xf32> -> vector<8x256xf32>
    %301 = arith.addf %298, %300 : vector<8x256xf32>
    %302 = vector.extract_strided_slice %301 {offsets = [0, 0], sizes = [8, 64], strides = [1, 1]} : vector<8x256xf32> to vector<8x64xf32>
    %cst_101 = arith.constant 5.000000e-01 : f32
    %303 = vector.broadcast %cst_101 : f32 to vector<8x64xf32>
    %304 = arith.mulf %303, %302 : vector<8x64xf32>
    %305 = math.tanh %304 : vector<8x64xf32>
    %cst_102 = arith.constant 1.000000e+00 : f32
    %306 = vector.broadcast %cst_102 : f32 to vector<8x64xf32>
    %307 = arith.addf %305, %306 : vector<8x64xf32>
    %cst_103 = arith.constant 5.000000e-01 : f32
    %308 = vector.broadcast %cst_103 : f32 to vector<8x64xf32>
    %309 = arith.mulf %308, %307 : vector<8x64xf32>
    %310 = vector.extract_strided_slice %301 {offsets = [0, 64], sizes = [8, 64], strides = [1, 1]} : vector<8x256xf32> to vector<8x64xf32>
    %cst_104 = arith.constant 5.000000e-01 : f32
    %311 = vector.broadcast %cst_104 : f32 to vector<8x64xf32>
    %312 = arith.mulf %311, %310 : vector<8x64xf32>
    %313 = math.tanh %312 : vector<8x64xf32>
    %cst_105 = arith.constant 1.000000e+00 : f32
    %314 = vector.broadcast %cst_105 : f32 to vector<8x64xf32>
    %315 = arith.addf %313, %314 : vector<8x64xf32>
    %cst_106 = arith.constant 5.000000e-01 : f32
    %316 = vector.broadcast %cst_106 : f32 to vector<8x64xf32>
    %317 = arith.mulf %316, %315 : vector<8x64xf32>
    %318 = vector.extract_strided_slice %301 {offsets = [0, 128], sizes = [8, 64], strides = [1, 1]} : vector<8x256xf32> to vector<8x64xf32>
    %319 = math.tanh %318 : vector<8x64xf32>
    %320 = vector.extract_strided_slice %301 {offsets = [0, 192], sizes = [8, 64], strides = [1, 1]} : vector<8x256xf32> to vector<8x64xf32>
    %cst_107 = arith.constant 5.000000e-01 : f32
    %321 = vector.broadcast %cst_107 : f32 to vector<8x64xf32>
    %322 = arith.mulf %321, %320 : vector<8x64xf32>
    %323 = math.tanh %322 : vector<8x64xf32>
    %cst_108 = arith.constant 1.000000e+00 : f32
    %324 = vector.broadcast %cst_108 : f32 to vector<8x64xf32>
    %325 = arith.addf %323, %324 : vector<8x64xf32>
    %cst_109 = arith.constant 5.000000e-01 : f32
    %326 = vector.broadcast %cst_109 : f32 to vector<8x64xf32>
    %327 = arith.mulf %326, %325 : vector<8x64xf32>
    %328 = arith.mulf %317, %291 : vector<8x64xf32>
    %329 = arith.mulf %309, %319 : vector<8x64xf32>
    %330 = arith.addf %328, %329 : vector<8x64xf32>
    %331 = math.tanh %330 : vector<8x64xf32>
    %332 = arith.mulf %327, %331 : vector<8x64xf32>
    %333 = vector.extract_strided_slice %332 {offsets = [0, 0], sizes = [8, 32], strides = [1, 1]} : vector<8x64xf32> to vector<8x32xf32>
    %c56_110 = arith.constant 56 : index
    %c0_111 = arith.constant 0 : index
    %334 = vector.load %arg17[%c56_110, %c0_111] : memref<64x32xf32, #tpu.memory_space<vmem>>, vector<8x32xf32>
    tpu.vector_store %arg17[%c56_110, %c0_111], %333 {strides = array<i32>} : memref<64x32xf32, #tpu.memory_space<vmem>>, vector<8x32xf32>,
    %335 = vector.extract_strided_slice %332 {offsets = [0, 32], sizes = [8, 32], strides = [1, 1]} : vector<8x64xf32> to vector<8x32xf32>
    %c0_112 = arith.constant 0 : index
    %c0_113 = arith.constant 0 : index
    %336 = vector.load %arg18[%c0_112, %c0_113] : memref<64x32xf32, #tpu.memory_space<vmem>>, vector<8x32xf32>
    tpu.vector_store %arg18[%c0_112, %c0_113], %335 {strides = array<i32>} : memref<64x32xf32, #tpu.memory_space<vmem>>, vector<8x32xf32>,
    %c0_114 = arith.constant 0 : index
    %c0_115 = arith.constant 0 : index
    %337 = vector.load %arg4[%c0_114, %c0_115] : memref<64x256xbf16, #tpu.memory_space<vmem>>, vector<64x256xbf16>
    %c0_116 = arith.constant 0 : index
    %c0_117 = arith.constant 0 : index
    %338 = vector.load %arg17[%c0_116, %c0_117] : memref<64x32xf32, #tpu.memory_space<vmem>>, vector<64x32xf32>
    %339 = arith.truncf %338 : vector<64x32xf32> to vector<64x32xbf16>
    %340 = vector.extract_strided_slice %337 {offsets = [0, 0], sizes = [32, 256], strides = [1, 1]} : vector<64x256xbf16> to vector<32x256xbf16>
    %cst_118 = arith.constant dense<0.000000e+00> : vector<64x256xf32>
    %341 = tpu.matmul %339, %340, %cst_118 {dimension_numbers = #tpu.dot_dimension_numbers<[1], [0], [0], [1], [0, 0, 1, 1], [], []>} : vector<64x32xbf16>, vector<32x256xbf16>, vector<64x256xf32> -> vector<64x256xf32>
    %c0_119 = arith.constant 0 : index
    %c0_120 = arith.constant 0 : index
    %342 = vector.load %arg18[%c0_119, %c0_120] : memref<64x32xf32, #tpu.memory_space<vmem>>, vector<64x32xf32>
    %343 = arith.truncf %342 : vector<64x32xf32> to vector<64x32xbf16>
    %344 = vector.extract_strided_slice %337 {offsets = [32, 0], sizes = [32, 256], strides = [1, 1]} : vector<64x256xbf16> to vector<32x256xbf16>
    %cst_121 = arith.constant dense<0.000000e+00> : vector<64x256xf32>
    %345 = tpu.matmul %343, %344, %cst_121 {dimension_numbers = #tpu.dot_dimension_numbers<[1], [0], [0], [1], [0, 0, 1, 1], [], []>} : vector<64x32xbf16>, vector<32x256xbf16>, vector<64x256xf32> -> vector<64x256xf32>
    %346 = arith.addf %341, %345 : vector<64x256xf32>
    %c0_122 = arith.constant 0 : index
    %c0_123 = arith.constant 0 : index
    %347 = vector.load %arg6[%c0_122, %c0_123] : memref<1x256xf32, #tpu.memory_space<vmem>>, vector<1x256xf32>
    %348 = vector.broadcast %347 : vector<1x256xf32> to vector<64x256xf32>
    %349 = arith.addf %346, %348 : vector<64x256xf32>
    %350 = vector.extract_strided_slice %349 {offsets = [56, 0], sizes = [8, 256], strides = [1, 1]} : vector<64x256xf32> to vector<8x256xf32>
    %351 = vector.extract_strided_slice %349 {offsets = [48, 0], sizes = [8, 256], strides = [1, 1]} : vector<64x256xf32> to vector<8x256xf32>
    %352 = vector.extract_strided_slice %349 {offsets = [40, 0], sizes = [8, 256], strides = [1, 1]} : vector<64x256xf32> to vector<8x256xf32>
    %353 = vector.extract_strided_slice %349 {offsets = [32, 0], sizes = [8, 256], strides = [1, 1]} : vector<64x256xf32> to vector<8x256xf32>
    %354 = vector.extract_strided_slice %349 {offsets = [24, 0], sizes = [8, 256], strides = [1, 1]} : vector<64x256xf32> to vector<8x256xf32>
    %355 = vector.extract_strided_slice %349 {offsets = [16, 0], sizes = [8, 256], strides = [1, 1]} : vector<64x256xf32> to vector<8x256xf32>
    %356 = vector.extract_strided_slice %349 {offsets = [8, 0], sizes = [8, 256], strides = [1, 1]} : vector<64x256xf32> to vector<8x256xf32>
    %357 = vector.extract_strided_slice %349 {offsets = [0, 0], sizes = [8, 256], strides = [1, 1]} : vector<64x256xf32> to vector<8x256xf32>
    %358 = tpu.concatenate %350, %351, %352, %353, %354, %355, %356, %357 in 0 : vector<8x256xf32>, vector<8x256xf32>, vector<8x256xf32>, vector<8x256xf32>, vector<8x256xf32>, vector<8x256xf32>, vector<8x256xf32>, vector<8x256xf32> -> vector<64x256xf32>
    %359 = arith.select %4, %349, %358 : vector<64x256xi1>, vector<64x256xf32>
    %c0_124 = arith.constant 0 : index
    %c0_125 = arith.constant 0 : index
    %360 = vector.load %arg5[%c0_124, %c0_125] : memref<64x256xbf16, #tpu.memory_space<vmem>>, vector<64x256xbf16>
    %cst_126 = arith.constant 0.000000e+00 : f32
    %361 = vector.broadcast %cst_126 : f32 to vector<8x64xf32>
    %cst_127 = arith.constant 0.000000e+00 : f32
    %362 = vector.broadcast %cst_127 : f32 to vector<8x64xf32>
    %363 = vector.extract_strided_slice %359 {offsets = [0, 0], sizes = [8, 256], strides = [1, 1]} : vector<64x256xf32> to vector<8x256xf32>
    %364 = arith.truncf %361 : vector<8x64xf32> to vector<8x64xbf16>
    %cst_128 = arith.constant dense<0.000000e+00> : vector<8x256xf32>
    %365 = tpu.matmul %364, %360, %cst_128 {dimension_numbers = #tpu.dot_dimension_numbers<[1], [0], [0], [1], [0, 0, 1, 1], [], []>} : vector<8x64xbf16>, vector<64x256xbf16>, vector<8x256xf32> -> vector<8x256xf32>
    %366 = arith.addf %363, %365 : vector<8x256xf32>
    %367 = vector.extract_strided_slice %366 {offsets = [0, 0], sizes = [8, 64], strides = [1, 1]} : vector<8x256xf32> to vector<8x64xf32>
    %cst_129 = arith.constant 5.000000e-01 : f32
    %368 = vector.broadcast %cst_129 : f32 to vector<8x64xf32>
    %369 = arith.mulf %368, %367 : vector<8x64xf32>
    %370 = math.tanh %369 : vector<8x64xf32>
    %cst_130 = arith.constant 1.000000e+00 : f32
    %371 = vector.broadcast %cst_130 : f32 to vector<8x64xf32>
    %372 = arith.addf %370, %371 : vector<8x64xf32>
    %cst_131 = arith.constant 5.000000e-01 : f32
    %373 = vector.broadcast %cst_131 : f32 to vector<8x64xf32>
    %374 = arith.mulf %373, %372 : vector<8x64xf32>
    %375 = vector.extract_strided_slice %366 {offsets = [0, 64], sizes = [8, 64], strides = [1, 1]} : vector<8x256xf32> to vector<8x64xf32>
    %cst_132 = arith.constant 5.000000e-01 : f32
    %376 = vector.broadcast %cst_132 : f32 to vector<8x64xf32>
    %377 = arith.mulf %376, %375 : vector<8x64xf32>
    %378 = math.tanh %377 : vector<8x64xf32>
    %cst_133 = arith.constant 1.000000e+00 : f32
    %379 = vector.broadcast %cst_133 : f32 to vector<8x64xf32>
    %380 = arith.addf %378, %379 : vector<8x64xf32>
    %cst_134 = arith.constant 5.000000e-01 : f32
    %381 = vector.broadcast %cst_134 : f32 to vector<8x64xf32>
    %382 = arith.mulf %381, %380 : vector<8x64xf32>
    %383 = vector.extract_strided_slice %366 {offsets = [0, 128], sizes = [8, 64], strides = [1, 1]} : vector<8x256xf32> to vector<8x64xf32>
    %384 = math.tanh %383 : vector<8x64xf32>
    %385 = vector.extract_strided_slice %366 {offsets = [0, 192], sizes = [8, 64], strides = [1, 1]} : vector<8x256xf32> to vector<8x64xf32>
    %cst_135 = arith.constant 5.000000e-01 : f32
    %386 = vector.broadcast %cst_135 : f32 to vector<8x64xf32>
    %387 = arith.mulf %386, %385 : vector<8x64xf32>
    %388 = math.tanh %387 : vector<8x64xf32>
    %cst_136 = arith.constant 1.000000e+00 : f32
    %389 = vector.broadcast %cst_136 : f32 to vector<8x64xf32>
    %390 = arith.addf %388, %389 : vector<8x64xf32>
    %cst_137 = arith.constant 5.000000e-01 : f32
    %391 = vector.broadcast %cst_137 : f32 to vector<8x64xf32>
    %392 = arith.mulf %391, %390 : vector<8x64xf32>
    %393 = arith.mulf %382, %362 : vector<8x64xf32>
    %394 = arith.mulf %374, %384 : vector<8x64xf32>
    %395 = arith.addf %393, %394 : vector<8x64xf32>
    %396 = math.tanh %395 : vector<8x64xf32>
    %397 = arith.mulf %392, %396 : vector<8x64xf32>
    %398 = vector.extract_strided_slice %397 {offsets = [0, 0], sizes = [8, 32], strides = [1, 1]} : vector<8x64xf32> to vector<8x32xf32>
    %c0_138 = arith.constant 0 : index
    %c0_139 = arith.constant 0 : index
    %399 = vector.load %arg19[%c0_138, %c0_139] : memref<64x32xf32, #tpu.memory_space<vmem>>, vector<8x32xf32>
    tpu.vector_store %arg19[%c0_138, %c0_139], %398 {strides = array<i32>} : memref<64x32xf32, #tpu.memory_space<vmem>>, vector<8x32xf32>,
    %400 = vector.extract_strided_slice %397 {offsets = [0, 32], sizes = [8, 32], strides = [1, 1]} : vector<8x64xf32> to vector<8x32xf32>
    %c56_140 = arith.constant 56 : index
    %c0_141 = arith.constant 0 : index
    %401 = vector.load %arg20[%c56_140, %c0_141] : memref<64x32xf32, #tpu.memory_space<vmem>>, vector<8x32xf32>
    tpu.vector_store %arg20[%c56_140, %c0_141], %400 {strides = array<i32>} : memref<64x32xf32, #tpu.memory_space<vmem>>, vector<8x32xf32>,
    %402 = vector.extract_strided_slice %359 {offsets = [8, 0], sizes = [8, 256], strides = [1, 1]} : vector<64x256xf32> to vector<8x256xf32>
    %403 = arith.truncf %397 : vector<8x64xf32> to vector<8x64xbf16>
    %cst_142 = arith.constant dense<0.000000e+00> : vector<8x256xf32>
    %404 = tpu.matmul %403, %360, %cst_142 {dimension_numbers = #tpu.dot_dimension_numbers<[1], [0], [0], [1], [0, 0, 1, 1], [], []>} : vector<8x64xbf16>, vector<64x256xbf16>, vector<8x256xf32> -> vector<8x256xf32>
    %405 = arith.addf %402, %404 : vector<8x256xf32>
    %406 = vector.extract_strided_slice %405 {offsets = [0, 0], sizes = [8, 64], strides = [1, 1]} : vector<8x256xf32> to vector<8x64xf32>
    %cst_143 = arith.constant 5.000000e-01 : f32
    %407 = vector.broadcast %cst_143 : f32 to vector<8x64xf32>
    %408 = arith.mulf %407, %406 : vector<8x64xf32>
    %409 = math.tanh %408 : vector<8x64xf32>
    %cst_144 = arith.constant 1.000000e+00 : f32
    %410 = vector.broadcast %cst_144 : f32 to vector<8x64xf32>
    %411 = arith.addf %409, %410 : vector<8x64xf32>
    %cst_145 = arith.constant 5.000000e-01 : f32
    %412 = vector.broadcast %cst_145 : f32 to vector<8x64xf32>
    %413 = arith.mulf %412, %411 : vector<8x64xf32>
    %414 = vector.extract_strided_slice %405 {offsets = [0, 64], sizes = [8, 64], strides = [1, 1]} : vector<8x256xf32> to vector<8x64xf32>
    %cst_146 = arith.constant 5.000000e-01 : f32
    %415 = vector.broadcast %cst_146 : f32 to vector<8x64xf32>
    %416 = arith.mulf %415, %414 : vector<8x64xf32>
    %417 = math.tanh %416 : vector<8x64xf32>
    %cst_147 = arith.constant 1.000000e+00 : f32
    %418 = vector.broadcast %cst_147 : f32 to vector<8x64xf32>
    %419 = arith.addf %417, %418 : vector<8x64xf32>
    %cst_148 = arith.constant 5.000000e-01 : f32
    %420 = vector.broadcast %cst_148 : f32 to vector<8x64xf32>
    %421 = arith.mulf %420, %419 : vector<8x64xf32>
    %422 = vector.extract_strided_slice %405 {offsets = [0, 128], sizes = [8, 64], strides = [1, 1]} : vector<8x256xf32> to vector<8x64xf32>
    %423 = math.tanh %422 : vector<8x64xf32>
    %424 = vector.extract_strided_slice %405 {offsets = [0, 192], sizes = [8, 64], strides = [1, 1]} : vector<8x256xf32> to vector<8x64xf32>
    %cst_149 = arith.constant 5.000000e-01 : f32
    %425 = vector.broadcast %cst_149 : f32 to vector<8x64xf32>
    %426 = arith.mulf %425, %424 : vector<8x64xf32>
    %427 = math.tanh %426 : vector<8x64xf32>
    %cst_150 = arith.constant 1.000000e+00 : f32
    %428 = vector.broadcast %cst_150 : f32 to vector<8x64xf32>
    %429 = arith.addf %427, %428 : vector<8x64xf32>
    %cst_151 = arith.constant 5.000000e-01 : f32
    %430 = vector.broadcast %cst_151 : f32 to vector<8x64xf32>
    %431 = arith.mulf %430, %429 : vector<8x64xf32>
    %432 = arith.mulf %421, %395 : vector<8x64xf32>
    %433 = arith.mulf %413, %423 : vector<8x64xf32>
    %434 = arith.addf %432, %433 : vector<8x64xf32>
    %435 = math.tanh %434 : vector<8x64xf32>
    %436 = arith.mulf %431, %435 : vector<8x64xf32>
    %437 = vector.extract_strided_slice %436 {offsets = [0, 0], sizes = [8, 32], strides = [1, 1]} : vector<8x64xf32> to vector<8x32xf32>
    %c8_152 = arith.constant 8 : index
    %c0_153 = arith.constant 0 : index
    %438 = vector.load %arg19[%c8_152, %c0_153] : memref<64x32xf32, #tpu.memory_space<vmem>>, vector<8x32xf32>
    tpu.vector_store %arg19[%c8_152, %c0_153], %437 {strides = array<i32>} : memref<64x32xf32, #tpu.memory_space<vmem>>, vector<8x32xf32>,
    %439 = vector.extract_strided_slice %436 {offsets = [0, 32], sizes = [8, 32], strides = [1, 1]} : vector<8x64xf32> to vector<8x32xf32>
    %c48_154 = arith.constant 48 : index
    %c0_155 = arith.constant 0 : index
    %440 = vector.load %arg20[%c48_154, %c0_155] : memref<64x32xf32, #tpu.memory_space<vmem>>, vector<8x32xf32>
    tpu.vector_store %arg20[%c48_154, %c0_155], %439 {strides = array<i32>} : memref<64x32xf32, #tpu.memory_space<vmem>>, vector<8x32xf32>,
    %441 = vector.extract_strided_slice %359 {offsets = [16, 0], sizes = [8, 256], strides = [1, 1]} : vector<64x256xf32> to vector<8x256xf32>
    %442 = arith.truncf %436 : vector<8x64xf32> to vector<8x64xbf16>
    %cst_156 = arith.constant dense<0.000000e+00> : vector<8x256xf32>
    %443 = tpu.matmul %442, %360, %cst_156 {dimension_numbers = #tpu.dot_dimension_numbers<[1], [0], [0], [1], [0, 0, 1, 1], [], []>} : vector<8x64xbf16>, vector<64x256xbf16>, vector<8x256xf32> -> vector<8x256xf32>
    %444 = arith.addf %441, %443 : vector<8x256xf32>
    %445 = vector.extract_strided_slice %444 {offsets = [0, 0], sizes = [8, 64], strides = [1, 1]} : vector<8x256xf32> to vector<8x64xf32>
    %cst_157 = arith.constant 5.000000e-01 : f32
    %446 = vector.broadcast %cst_157 : f32 to vector<8x64xf32>
    %447 = arith.mulf %446, %445 : vector<8x64xf32>
    %448 = math.tanh %447 : vector<8x64xf32>
    %cst_158 = arith.constant 1.000000e+00 : f32
    %449 = vector.broadcast %cst_158 : f32 to vector<8x64xf32>
    %450 = arith.addf %448, %449 : vector<8x64xf32>
    %cst_159 = arith.constant 5.000000e-01 : f32
    %451 = vector.broadcast %cst_159 : f32 to vector<8x64xf32>
    %452 = arith.mulf %451, %450 : vector<8x64xf32>
    %453 = vector.extract_strided_slice %444 {offsets = [0, 64], sizes = [8, 64], strides = [1, 1]} : vector<8x256xf32> to vector<8x64xf32>
    %cst_160 = arith.constant 5.000000e-01 : f32
    %454 = vector.broadcast %cst_160 : f32 to vector<8x64xf32>
    %455 = arith.mulf %454, %453 : vector<8x64xf32>
    %456 = math.tanh %455 : vector<8x64xf32>
    %cst_161 = arith.constant 1.000000e+00 : f32
    %457 = vector.broadcast %cst_161 : f32 to vector<8x64xf32>
    %458 = arith.addf %456, %457 : vector<8x64xf32>
    %cst_162 = arith.constant 5.000000e-01 : f32
    %459 = vector.broadcast %cst_162 : f32 to vector<8x64xf32>
    %460 = arith.mulf %459, %458 : vector<8x64xf32>
    %461 = vector.extract_strided_slice %444 {offsets = [0, 128], sizes = [8, 64], strides = [1, 1]} : vector<8x256xf32> to vector<8x64xf32>
    %462 = math.tanh %461 : vector<8x64xf32>
    %463 = vector.extract_strided_slice %444 {offsets = [0, 192], sizes = [8, 64], strides = [1, 1]} : vector<8x256xf32> to vector<8x64xf32>
    %cst_163 = arith.constant 5.000000e-01 : f32
    %464 = vector.broadcast %cst_163 : f32 to vector<8x64xf32>
    %465 = arith.mulf %464, %463 : vector<8x64xf32>
    %466 = math.tanh %465 : vector<8x64xf32>
    %cst_164 = arith.constant 1.000000e+00 : f32
    %467 = vector.broadcast %cst_164 : f32 to vector<8x64xf32>
    %468 = arith.addf %466, %467 : vector<8x64xf32>
    %cst_165 = arith.constant 5.000000e-01 : f32
    %469 = vector.broadcast %cst_165 : f32 to vector<8x64xf32>
    %470 = arith.mulf %469, %468 : vector<8x64xf32>
    %471 = arith.mulf %460, %434 : vector<8x64xf32>
    %472 = arith.mulf %452, %462 : vector<8x64xf32>
    %473 = arith.addf %471, %472 : vector<8x64xf32>
    %474 = math.tanh %473 : vector<8x64xf32>
    %475 = arith.mulf %470, %474 : vector<8x64xf32>
    %476 = vector.extract_strided_slice %475 {offsets = [0, 0], sizes = [8, 32], strides = [1, 1]} : vector<8x64xf32> to vector<8x32xf32>
    %c16_166 = arith.constant 16 : index
    %c0_167 = arith.constant 0 : index
    %477 = vector.load %arg19[%c16_166, %c0_167] : memref<64x32xf32, #tpu.memory_space<vmem>>, vector<8x32xf32>
    tpu.vector_store %arg19[%c16_166, %c0_167], %476 {strides = array<i32>} : memref<64x32xf32, #tpu.memory_space<vmem>>, vector<8x32xf32>,
    %478 = vector.extract_strided_slice %475 {offsets = [0, 32], sizes = [8, 32], strides = [1, 1]} : vector<8x64xf32> to vector<8x32xf32>
    %c40_168 = arith.constant 40 : index
    %c0_169 = arith.constant 0 : index
    %479 = vector.load %arg20[%c40_168, %c0_169] : memref<64x32xf32, #tpu.memory_space<vmem>>, vector<8x32xf32>
    tpu.vector_store %arg20[%c40_168, %c0_169], %478 {strides = array<i32>} : memref<64x32xf32, #tpu.memory_space<vmem>>, vector<8x32xf32>,
    %480 = vector.extract_strided_slice %359 {offsets = [24, 0], sizes = [8, 256], strides = [1, 1]} : vector<64x256xf32> to vector<8x256xf32>
    %481 = arith.truncf %475 : vector<8x64xf32> to vector<8x64xbf16>
    %cst_170 = arith.constant dense<0.000000e+00> : vector<8x256xf32>
    %482 = tpu.matmul %481, %360, %cst_170 {dimension_numbers = #tpu.dot_dimension_numbers<[1], [0], [0], [1], [0, 0, 1, 1], [], []>} : vector<8x64xbf16>, vector<64x256xbf16>, vector<8x256xf32> -> vector<8x256xf32>
    %483 = arith.addf %480, %482 : vector<8x256xf32>
    %484 = vector.extract_strided_slice %483 {offsets = [0, 0], sizes = [8, 64], strides = [1, 1]} : vector<8x256xf32> to vector<8x64xf32>
    %cst_171 = arith.constant 5.000000e-01 : f32
    %485 = vector.broadcast %cst_171 : f32 to vector<8x64xf32>
    %486 = arith.mulf %485, %484 : vector<8x64xf32>
    %487 = math.tanh %486 : vector<8x64xf32>
    %cst_172 = arith.constant 1.000000e+00 : f32
    %488 = vector.broadcast %cst_172 : f32 to vector<8x64xf32>
    %489 = arith.addf %487, %488 : vector<8x64xf32>
    %cst_173 = arith.constant 5.000000e-01 : f32
    %490 = vector.broadcast %cst_173 : f32 to vector<8x64xf32>
    %491 = arith.mulf %490, %489 : vector<8x64xf32>
    %492 = vector.extract_strided_slice %483 {offsets = [0, 64], sizes = [8, 64], strides = [1, 1]} : vector<8x256xf32> to vector<8x64xf32>
    %cst_174 = arith.constant 5.000000e-01 : f32
    %493 = vector.broadcast %cst_174 : f32 to vector<8x64xf32>
    %494 = arith.mulf %493, %492 : vector<8x64xf32>
    %495 = math.tanh %494 : vector<8x64xf32>
    %cst_175 = arith.constant 1.000000e+00 : f32
    %496 = vector.broadcast %cst_175 : f32 to vector<8x64xf32>
    %497 = arith.addf %495, %496 : vector<8x64xf32>
    %cst_176 = arith.constant 5.000000e-01 : f32
    %498 = vector.broadcast %cst_176 : f32 to vector<8x64xf32>
    %499 = arith.mulf %498, %497 : vector<8x64xf32>
    %500 = vector.extract_strided_slice %483 {offsets = [0, 128], sizes = [8, 64], strides = [1, 1]} : vector<8x256xf32> to vector<8x64xf32>
    %501 = math.tanh %500 : vector<8x64xf32>
    %502 = vector.extract_strided_slice %483 {offsets = [0, 192], sizes = [8, 64], strides = [1, 1]} : vector<8x256xf32> to vector<8x64xf32>
    %cst_177 = arith.constant 5.000000e-01 : f32
    %503 = vector.broadcast %cst_177 : f32 to vector<8x64xf32>
    %504 = arith.mulf %503, %502 : vector<8x64xf32>
    %505 = math.tanh %504 : vector<8x64xf32>
    %cst_178 = arith.constant 1.000000e+00 : f32
    %506 = vector.broadcast %cst_178 : f32 to vector<8x64xf32>
    %507 = arith.addf %505, %506 : vector<8x64xf32>
    %cst_179 = arith.constant 5.000000e-01 : f32
    %508 = vector.broadcast %cst_179 : f32 to vector<8x64xf32>
    %509 = arith.mulf %508, %507 : vector<8x64xf32>
    %510 = arith.mulf %499, %473 : vector<8x64xf32>
    %511 = arith.mulf %491, %501 : vector<8x64xf32>
    %512 = arith.addf %510, %511 : vector<8x64xf32>
    %513 = math.tanh %512 : vector<8x64xf32>
    %514 = arith.mulf %509, %513 : vector<8x64xf32>
    %515 = vector.extract_strided_slice %514 {offsets = [0, 0], sizes = [8, 32], strides = [1, 1]} : vector<8x64xf32> to vector<8x32xf32>
    %c24_180 = arith.constant 24 : index
    %c0_181 = arith.constant 0 : index
    %516 = vector.load %arg19[%c24_180, %c0_181] : memref<64x32xf32, #tpu.memory_space<vmem>>, vector<8x32xf32>
    tpu.vector_store %arg19[%c24_180, %c0_181], %515 {strides = array<i32>} : memref<64x32xf32, #tpu.memory_space<vmem>>, vector<8x32xf32>,
    %517 = vector.extract_strided_slice %514 {offsets = [0, 32], sizes = [8, 32], strides = [1, 1]} : vector<8x64xf32> to vector<8x32xf32>
    %c32_182 = arith.constant 32 : index
    %c0_183 = arith.constant 0 : index
    %518 = vector.load %arg20[%c32_182, %c0_183] : memref<64x32xf32, #tpu.memory_space<vmem>>, vector<8x32xf32>
    tpu.vector_store %arg20[%c32_182, %c0_183], %517 {strides = array<i32>} : memref<64x32xf32, #tpu.memory_space<vmem>>, vector<8x32xf32>,
    %519 = vector.extract_strided_slice %359 {offsets = [32, 0], sizes = [8, 256], strides = [1, 1]} : vector<64x256xf32> to vector<8x256xf32>
    %520 = arith.truncf %514 : vector<8x64xf32> to vector<8x64xbf16>
    %cst_184 = arith.constant dense<0.000000e+00> : vector<8x256xf32>
    %521 = tpu.matmul %520, %360, %cst_184 {dimension_numbers = #tpu.dot_dimension_numbers<[1], [0], [0], [1], [0, 0, 1, 1], [], []>} : vector<8x64xbf16>, vector<64x256xbf16>, vector<8x256xf32> -> vector<8x256xf32>
    %522 = arith.addf %519, %521 : vector<8x256xf32>
    %523 = vector.extract_strided_slice %522 {offsets = [0, 0], sizes = [8, 64], strides = [1, 1]} : vector<8x256xf32> to vector<8x64xf32>
    %cst_185 = arith.constant 5.000000e-01 : f32
    %524 = vector.broadcast %cst_185 : f32 to vector<8x64xf32>
    %525 = arith.mulf %524, %523 : vector<8x64xf32>
    %526 = math.tanh %525 : vector<8x64xf32>
    %cst_186 = arith.constant 1.000000e+00 : f32
    %527 = vector.broadcast %cst_186 : f32 to vector<8x64xf32>
    %528 = arith.addf %526, %527 : vector<8x64xf32>
    %cst_187 = arith.constant 5.000000e-01 : f32
    %529 = vector.broadcast %cst_187 : f32 to vector<8x64xf32>
    %530 = arith.mulf %529, %528 : vector<8x64xf32>
    %531 = vector.extract_strided_slice %522 {offsets = [0, 64], sizes = [8, 64], strides = [1, 1]} : vector<8x256xf32> to vector<8x64xf32>
    %cst_188 = arith.constant 5.000000e-01 : f32
    %532 = vector.broadcast %cst_188 : f32 to vector<8x64xf32>
    %533 = arith.mulf %532, %531 : vector<8x64xf32>
    %534 = math.tanh %533 : vector<8x64xf32>
    %cst_189 = arith.constant 1.000000e+00 : f32
    %535 = vector.broadcast %cst_189 : f32 to vector<8x64xf32>
    %536 = arith.addf %534, %535 : vector<8x64xf32>
    %cst_190 = arith.constant 5.000000e-01 : f32
    %537 = vector.broadcast %cst_190 : f32 to vector<8x64xf32>
    %538 = arith.mulf %537, %536 : vector<8x64xf32>
    %539 = vector.extract_strided_slice %522 {offsets = [0, 128], sizes = [8, 64], strides = [1, 1]} : vector<8x256xf32> to vector<8x64xf32>
    %540 = math.tanh %539 : vector<8x64xf32>
    %541 = vector.extract_strided_slice %522 {offsets = [0, 192], sizes = [8, 64], strides = [1, 1]} : vector<8x256xf32> to vector<8x64xf32>
    %cst_191 = arith.constant 5.000000e-01 : f32
    %542 = vector.broadcast %cst_191 : f32 to vector<8x64xf32>
    %543 = arith.mulf %542, %541 : vector<8x64xf32>
    %544 = math.tanh %543 : vector<8x64xf32>
    %cst_192 = arith.constant 1.000000e+00 : f32
    %545 = vector.broadcast %cst_192 : f32 to vector<8x64xf32>
    %546 = arith.addf %544, %545 : vector<8x64xf32>
    %cst_193 = arith.constant 5.000000e-01 : f32
    %547 = vector.broadcast %cst_193 : f32 to vector<8x64xf32>
    %548 = arith.mulf %547, %546 : vector<8x64xf32>
    %549 = arith.mulf %538, %512 : vector<8x64xf32>
    %550 = arith.mulf %530, %540 : vector<8x64xf32>
    %551 = arith.addf %549, %550 : vector<8x64xf32>
    %552 = math.tanh %551 : vector<8x64xf32>
    %553 = arith.mulf %548, %552 : vector<8x64xf32>
    %554 = vector.extract_strided_slice %553 {offsets = [0, 0], sizes = [8, 32], strides = [1, 1]} : vector<8x64xf32> to vector<8x32xf32>
    %c32_194 = arith.constant 32 : index
    %c0_195 = arith.constant 0 : index
    %555 = vector.load %arg19[%c32_194, %c0_195] : memref<64x32xf32, #tpu.memory_space<vmem>>, vector<8x32xf32>
    tpu.vector_store %arg19[%c32_194, %c0_195], %554 {strides = array<i32>} : memref<64x32xf32, #tpu.memory_space<vmem>>, vector<8x32xf32>,
    %556 = vector.extract_strided_slice %553 {offsets = [0, 32], sizes = [8, 32], strides = [1, 1]} : vector<8x64xf32> to vector<8x32xf32>
    %c24_196 = arith.constant 24 : index
    %c0_197 = arith.constant 0 : index
    %557 = vector.load %arg20[%c24_196, %c0_197] : memref<64x32xf32, #tpu.memory_space<vmem>>, vector<8x32xf32>
    tpu.vector_store %arg20[%c24_196, %c0_197], %556 {strides = array<i32>} : memref<64x32xf32, #tpu.memory_space<vmem>>, vector<8x32xf32>,
    %558 = vector.extract_strided_slice %359 {offsets = [40, 0], sizes = [8, 256], strides = [1, 1]} : vector<64x256xf32> to vector<8x256xf32>
    %559 = arith.truncf %553 : vector<8x64xf32> to vector<8x64xbf16>
    %cst_198 = arith.constant dense<0.000000e+00> : vector<8x256xf32>
    %560 = tpu.matmul %559, %360, %cst_198 {dimension_numbers = #tpu.dot_dimension_numbers<[1], [0], [0], [1], [0, 0, 1, 1], [], []>} : vector<8x64xbf16>, vector<64x256xbf16>, vector<8x256xf32> -> vector<8x256xf32>
    %561 = arith.addf %558, %560 : vector<8x256xf32>
    %562 = vector.extract_strided_slice %561 {offsets = [0, 0], sizes = [8, 64], strides = [1, 1]} : vector<8x256xf32> to vector<8x64xf32>
    %cst_199 = arith.constant 5.000000e-01 : f32
    %563 = vector.broadcast %cst_199 : f32 to vector<8x64xf32>
    %564 = arith.mulf %563, %562 : vector<8x64xf32>
    %565 = math.tanh %564 : vector<8x64xf32>
    %cst_200 = arith.constant 1.000000e+00 : f32
    %566 = vector.broadcast %cst_200 : f32 to vector<8x64xf32>
    %567 = arith.addf %565, %566 : vector<8x64xf32>
    %cst_201 = arith.constant 5.000000e-01 : f32
    %568 = vector.broadcast %cst_201 : f32 to vector<8x64xf32>
    %569 = arith.mulf %568, %567 : vector<8x64xf32>
    %570 = vector.extract_strided_slice %561 {offsets = [0, 64], sizes = [8, 64], strides = [1, 1]} : vector<8x256xf32> to vector<8x64xf32>
    %cst_202 = arith.constant 5.000000e-01 : f32
    %571 = vector.broadcast %cst_202 : f32 to vector<8x64xf32>
    %572 = arith.mulf %571, %570 : vector<8x64xf32>
    %573 = math.tanh %572 : vector<8x64xf32>
    %cst_203 = arith.constant 1.000000e+00 : f32
    %574 = vector.broadcast %cst_203 : f32 to vector<8x64xf32>
    %575 = arith.addf %573, %574 : vector<8x64xf32>
    %cst_204 = arith.constant 5.000000e-01 : f32
    %576 = vector.broadcast %cst_204 : f32 to vector<8x64xf32>
    %577 = arith.mulf %576, %575 : vector<8x64xf32>
    %578 = vector.extract_strided_slice %561 {offsets = [0, 128], sizes = [8, 64], strides = [1, 1]} : vector<8x256xf32> to vector<8x64xf32>
    %579 = math.tanh %578 : vector<8x64xf32>
    %580 = vector.extract_strided_slice %561 {offsets = [0, 192], sizes = [8, 64], strides = [1, 1]} : vector<8x256xf32> to vector<8x64xf32>
    %cst_205 = arith.constant 5.000000e-01 : f32
    %581 = vector.broadcast %cst_205 : f32 to vector<8x64xf32>
    %582 = arith.mulf %581, %580 : vector<8x64xf32>
    %583 = math.tanh %582 : vector<8x64xf32>
    %cst_206 = arith.constant 1.000000e+00 : f32
    %584 = vector.broadcast %cst_206 : f32 to vector<8x64xf32>
    %585 = arith.addf %583, %584 : vector<8x64xf32>
    %cst_207 = arith.constant 5.000000e-01 : f32
    %586 = vector.broadcast %cst_207 : f32 to vector<8x64xf32>
    %587 = arith.mulf %586, %585 : vector<8x64xf32>
    %588 = arith.mulf %577, %551 : vector<8x64xf32>
    %589 = arith.mulf %569, %579 : vector<8x64xf32>
    %590 = arith.addf %588, %589 : vector<8x64xf32>
    %591 = math.tanh %590 : vector<8x64xf32>
    %592 = arith.mulf %587, %591 : vector<8x64xf32>
    %593 = vector.extract_strided_slice %592 {offsets = [0, 0], sizes = [8, 32], strides = [1, 1]} : vector<8x64xf32> to vector<8x32xf32>
    %c40_208 = arith.constant 40 : index
    %c0_209 = arith.constant 0 : index
    %594 = vector.load %arg19[%c40_208, %c0_209] : memref<64x32xf32, #tpu.memory_space<vmem>>, vector<8x32xf32>
    tpu.vector_store %arg19[%c40_208, %c0_209], %593 {strides = array<i32>} : memref<64x32xf32, #tpu.memory_space<vmem>>, vector<8x32xf32>,
    %595 = vector.extract_strided_slice %592 {offsets = [0, 32], sizes = [8, 32], strides = [1, 1]} : vector<8x64xf32> to vector<8x32xf32>
    %c16_210 = arith.constant 16 : index
    %c0_211 = arith.constant 0 : index
    %596 = vector.load %arg20[%c16_210, %c0_211] : memref<64x32xf32, #tpu.memory_space<vmem>>, vector<8x32xf32>
    tpu.vector_store %arg20[%c16_210, %c0_211], %595 {strides = array<i32>} : memref<64x32xf32, #tpu.memory_space<vmem>>, vector<8x32xf32>,
    %597 = vector.extract_strided_slice %359 {offsets = [48, 0], sizes = [8, 256], strides = [1, 1]} : vector<64x256xf32> to vector<8x256xf32>
    %598 = arith.truncf %592 : vector<8x64xf32> to vector<8x64xbf16>
    %cst_212 = arith.constant dense<0.000000e+00> : vector<8x256xf32>
    %599 = tpu.matmul %598, %360, %cst_212 {dimension_numbers = #tpu.dot_dimension_numbers<[1], [0], [0], [1], [0, 0, 1, 1], [], []>} : vector<8x64xbf16>, vector<64x256xbf16>, vector<8x256xf32> -> vector<8x256xf32>
    %600 = arith.addf %597, %599 : vector<8x256xf32>
    %601 = vector.extract_strided_slice %600 {offsets = [0, 0], sizes = [8, 64], strides = [1, 1]} : vector<8x256xf32> to vector<8x64xf32>
    %cst_213 = arith.constant 5.000000e-01 : f32
    %602 = vector.broadcast %cst_213 : f32 to vector<8x64xf32>
    %603 = arith.mulf %602, %601 : vector<8x64xf32>
    %604 = math.tanh %603 : vector<8x64xf32>
    %cst_214 = arith.constant 1.000000e+00 : f32
    %605 = vector.broadcast %cst_214 : f32 to vector<8x64xf32>
    %606 = arith.addf %604, %605 : vector<8x64xf32>
    %cst_215 = arith.constant 5.000000e-01 : f32
    %607 = vector.broadcast %cst_215 : f32 to vector<8x64xf32>
    %608 = arith.mulf %607, %606 : vector<8x64xf32>
    %609 = vector.extract_strided_slice %600 {offsets = [0, 64], sizes = [8, 64], strides = [1, 1]} : vector<8x256xf32> to vector<8x64xf32>
    %cst_216 = arith.constant 5.000000e-01 : f32
    %610 = vector.broadcast %cst_216 : f32 to vector<8x64xf32>
    %611 = arith.mulf %610, %609 : vector<8x64xf32>
    %612 = math.tanh %611 : vector<8x64xf32>
    %cst_217 = arith.constant 1.000000e+00 : f32
    %613 = vector.broadcast %cst_217 : f32 to vector<8x64xf32>
    %614 = arith.addf %612, %613 : vector<8x64xf32>
    %cst_218 = arith.constant 5.000000e-01 : f32
    %615 = vector.broadcast %cst_218 : f32 to vector<8x64xf32>
    %616 = arith.mulf %615, %614 : vector<8x64xf32>
    %617 = vector.extract_strided_slice %600 {offsets = [0, 128], sizes = [8, 64], strides = [1, 1]} : vector<8x256xf32> to vector<8x64xf32>
    %618 = math.tanh %617 : vector<8x64xf32>
    %619 = vector.extract_strided_slice %600 {offsets = [0, 192], sizes = [8, 64], strides = [1, 1]} : vector<8x256xf32> to vector<8x64xf32>
    %cst_219 = arith.constant 5.000000e-01 : f32
    %620 = vector.broadcast %cst_219 : f32 to vector<8x64xf32>
    %621 = arith.mulf %620, %619 : vector<8x64xf32>
    %622 = math.tanh %621 : vector<8x64xf32>
    %cst_220 = arith.constant 1.000000e+00 : f32
    %623 = vector.broadcast %cst_220 : f32 to vector<8x64xf32>
    %624 = arith.addf %622, %623 : vector<8x64xf32>
    %cst_221 = arith.constant 5.000000e-01 : f32
    %625 = vector.broadcast %cst_221 : f32 to vector<8x64xf32>
    %626 = arith.mulf %625, %624 : vector<8x64xf32>
    %627 = arith.mulf %616, %590 : vector<8x64xf32>
    %628 = arith.mulf %608, %618 : vector<8x64xf32>
    %629 = arith.addf %627, %628 : vector<8x64xf32>
    %630 = math.tanh %629 : vector<8x64xf32>
    %631 = arith.mulf %626, %630 : vector<8x64xf32>
    %632 = vector.extract_strided_slice %631 {offsets = [0, 0], sizes = [8, 32], strides = [1, 1]} : vector<8x64xf32> to vector<8x32xf32>
    %c48_222 = arith.constant 48 : index
    %c0_223 = arith.constant 0 : index
    %633 = vector.load %arg19[%c48_222, %c0_223] : memref<64x32xf32, #tpu.memory_space<vmem>>, vector<8x32xf32>
    tpu.vector_store %arg19[%c48_222, %c0_223], %632 {strides = array<i32>} : memref<64x32xf32, #tpu.memory_space<vmem>>, vector<8x32xf32>,
    %634 = vector.extract_strided_slice %631 {offsets = [0, 32], sizes = [8, 32], strides = [1, 1]} : vector<8x64xf32> to vector<8x32xf32>
    %c8_224 = arith.constant 8 : index
    %c0_225 = arith.constant 0 : index
    %635 = vector.load %arg20[%c8_224, %c0_225] : memref<64x32xf32, #tpu.memory_space<vmem>>, vector<8x32xf32>
    tpu.vector_store %arg20[%c8_224, %c0_225], %634 {strides = array<i32>} : memref<64x32xf32, #tpu.memory_space<vmem>>, vector<8x32xf32>,
    %636 = vector.extract_strided_slice %359 {offsets = [56, 0], sizes = [8, 256], strides = [1, 1]} : vector<64x256xf32> to vector<8x256xf32>
    %637 = arith.truncf %631 : vector<8x64xf32> to vector<8x64xbf16>
    %cst_226 = arith.constant dense<0.000000e+00> : vector<8x256xf32>
    %638 = tpu.matmul %637, %360, %cst_226 {dimension_numbers = #tpu.dot_dimension_numbers<[1], [0], [0], [1], [0, 0, 1, 1], [], []>} : vector<8x64xbf16>, vector<64x256xbf16>, vector<8x256xf32> -> vector<8x256xf32>
    %639 = arith.addf %636, %638 : vector<8x256xf32>
    %640 = vector.extract_strided_slice %639 {offsets = [0, 0], sizes = [8, 64], strides = [1, 1]} : vector<8x256xf32> to vector<8x64xf32>
    %cst_227 = arith.constant 5.000000e-01 : f32
    %641 = vector.broadcast %cst_227 : f32 to vector<8x64xf32>
    %642 = arith.mulf %641, %640 : vector<8x64xf32>
    %643 = math.tanh %642 : vector<8x64xf32>
    %cst_228 = arith.constant 1.000000e+00 : f32
    %644 = vector.broadcast %cst_228 : f32 to vector<8x64xf32>
    %645 = arith.addf %643, %644 : vector<8x64xf32>
    %cst_229 = arith.constant 5.000000e-01 : f32
    %646 = vector.broadcast %cst_229 : f32 to vector<8x64xf32>
    %647 = arith.mulf %646, %645 : vector<8x64xf32>
    %648 = vector.extract_strided_slice %639 {offsets = [0, 64], sizes = [8, 64], strides = [1, 1]} : vector<8x256xf32> to vector<8x64xf32>
    %cst_230 = arith.constant 5.000000e-01 : f32
    %649 = vector.broadcast %cst_230 : f32 to vector<8x64xf32>
    %650 = arith.mulf %649, %648 : vector<8x64xf32>
    %651 = math.tanh %650 : vector<8x64xf32>
    %cst_231 = arith.constant 1.000000e+00 : f32
    %652 = vector.broadcast %cst_231 : f32 to vector<8x64xf32>
    %653 = arith.addf %651, %652 : vector<8x64xf32>
    %cst_232 = arith.constant 5.000000e-01 : f32
    %654 = vector.broadcast %cst_232 : f32 to vector<8x64xf32>
    %655 = arith.mulf %654, %653 : vector<8x64xf32>
    %656 = vector.extract_strided_slice %639 {offsets = [0, 128], sizes = [8, 64], strides = [1, 1]} : vector<8x256xf32> to vector<8x64xf32>
    %657 = math.tanh %656 : vector<8x64xf32>
    %658 = vector.extract_strided_slice %639 {offsets = [0, 192], sizes = [8, 64], strides = [1, 1]} : vector<8x256xf32> to vector<8x64xf32>
    %cst_233 = arith.constant 5.000000e-01 : f32
    %659 = vector.broadcast %cst_233 : f32 to vector<8x64xf32>
    %660 = arith.mulf %659, %658 : vector<8x64xf32>
    %661 = math.tanh %660 : vector<8x64xf32>
    %cst_234 = arith.constant 1.000000e+00 : f32
    %662 = vector.broadcast %cst_234 : f32 to vector<8x64xf32>
    %663 = arith.addf %661, %662 : vector<8x64xf32>
    %cst_235 = arith.constant 5.000000e-01 : f32
    %664 = vector.broadcast %cst_235 : f32 to vector<8x64xf32>
    %665 = arith.mulf %664, %663 : vector<8x64xf32>
    %666 = arith.mulf %655, %629 : vector<8x64xf32>
    %667 = arith.mulf %647, %657 : vector<8x64xf32>
    %668 = arith.addf %666, %667 : vector<8x64xf32>
    %669 = math.tanh %668 : vector<8x64xf32>
    %670 = arith.mulf %665, %669 : vector<8x64xf32>
    %671 = vector.extract_strided_slice %670 {offsets = [0, 0], sizes = [8, 32], strides = [1, 1]} : vector<8x64xf32> to vector<8x32xf32>
    %c56_236 = arith.constant 56 : index
    %c0_237 = arith.constant 0 : index
    %672 = vector.load %arg19[%c56_236, %c0_237] : memref<64x32xf32, #tpu.memory_space<vmem>>, vector<8x32xf32>
    tpu.vector_store %arg19[%c56_236, %c0_237], %671 {strides = array<i32>} : memref<64x32xf32, #tpu.memory_space<vmem>>, vector<8x32xf32>,
    %673 = vector.extract_strided_slice %670 {offsets = [0, 32], sizes = [8, 32], strides = [1, 1]} : vector<8x64xf32> to vector<8x32xf32>
    %c0_238 = arith.constant 0 : index
    %c0_239 = arith.constant 0 : index
    %674 = vector.load %arg20[%c0_238, %c0_239] : memref<64x32xf32, #tpu.memory_space<vmem>>, vector<8x32xf32>
    tpu.vector_store %arg20[%c0_238, %c0_239], %673 {strides = array<i32>} : memref<64x32xf32, #tpu.memory_space<vmem>>, vector<8x32xf32>,
    %c0_240 = arith.constant 0 : index
    %c0_241 = arith.constant 0 : index
    %675 = vector.load %arg7[%c0_240, %c0_241] : memref<64x256xbf16, #tpu.memory_space<vmem>>, vector<64x256xbf16>
    %c0_242 = arith.constant 0 : index
    %c0_243 = arith.constant 0 : index
    %676 = vector.load %arg19[%c0_242, %c0_243] : memref<64x32xf32, #tpu.memory_space<vmem>>, vector<64x32xf32>
    %677 = arith.truncf %676 : vector<64x32xf32> to vector<64x32xbf16>
    %678 = vector.extract_strided_slice %675 {offsets = [0, 0], sizes = [32, 256], strides = [1, 1]} : vector<64x256xbf16> to vector<32x256xbf16>
    %cst_244 = arith.constant dense<0.000000e+00> : vector<64x256xf32>
    %679 = tpu.matmul %677, %678, %cst_244 {dimension_numbers = #tpu.dot_dimension_numbers<[1], [0], [0], [1], [0, 0, 1, 1], [], []>} : vector<64x32xbf16>, vector<32x256xbf16>, vector<64x256xf32> -> vector<64x256xf32>
    %c0_245 = arith.constant 0 : index
    %c0_246 = arith.constant 0 : index
    %680 = vector.load %arg20[%c0_245, %c0_246] : memref<64x32xf32, #tpu.memory_space<vmem>>, vector<64x32xf32>
    %681 = arith.truncf %680 : vector<64x32xf32> to vector<64x32xbf16>
    %682 = vector.extract_strided_slice %675 {offsets = [32, 0], sizes = [32, 256], strides = [1, 1]} : vector<64x256xbf16> to vector<32x256xbf16>
    %cst_247 = arith.constant dense<0.000000e+00> : vector<64x256xf32>
    %683 = tpu.matmul %681, %682, %cst_247 {dimension_numbers = #tpu.dot_dimension_numbers<[1], [0], [0], [1], [0, 0, 1, 1], [], []>} : vector<64x32xbf16>, vector<32x256xbf16>, vector<64x256xf32> -> vector<64x256xf32>
    %684 = arith.addf %679, %683 : vector<64x256xf32>
    %c0_248 = arith.constant 0 : index
    %c0_249 = arith.constant 0 : index
    %685 = vector.load %arg9[%c0_248, %c0_249] : memref<1x256xf32, #tpu.memory_space<vmem>>, vector<1x256xf32>
    %686 = vector.broadcast %685 : vector<1x256xf32> to vector<64x256xf32>
    %687 = arith.addf %684, %686 : vector<64x256xf32>
    %688 = vector.extract_strided_slice %687 {offsets = [56, 0], sizes = [8, 256], strides = [1, 1]} : vector<64x256xf32> to vector<8x256xf32>
    %689 = vector.extract_strided_slice %687 {offsets = [48, 0], sizes = [8, 256], strides = [1, 1]} : vector<64x256xf32> to vector<8x256xf32>
    %690 = vector.extract_strided_slice %687 {offsets = [40, 0], sizes = [8, 256], strides = [1, 1]} : vector<64x256xf32> to vector<8x256xf32>
    %691 = vector.extract_strided_slice %687 {offsets = [32, 0], sizes = [8, 256], strides = [1, 1]} : vector<64x256xf32> to vector<8x256xf32>
    %692 = vector.extract_strided_slice %687 {offsets = [24, 0], sizes = [8, 256], strides = [1, 1]} : vector<64x256xf32> to vector<8x256xf32>
    %693 = vector.extract_strided_slice %687 {offsets = [16, 0], sizes = [8, 256], strides = [1, 1]} : vector<64x256xf32> to vector<8x256xf32>
    %694 = vector.extract_strided_slice %687 {offsets = [8, 0], sizes = [8, 256], strides = [1, 1]} : vector<64x256xf32> to vector<8x256xf32>
    %695 = vector.extract_strided_slice %687 {offsets = [0, 0], sizes = [8, 256], strides = [1, 1]} : vector<64x256xf32> to vector<8x256xf32>
    %696 = tpu.concatenate %688, %689, %690, %691, %692, %693, %694, %695 in 0 : vector<8x256xf32>, vector<8x256xf32>, vector<8x256xf32>, vector<8x256xf32>, vector<8x256xf32>, vector<8x256xf32>, vector<8x256xf32>, vector<8x256xf32> -> vector<64x256xf32>
    %697 = arith.select %4, %687, %696 : vector<64x256xi1>, vector<64x256xf32>
    %c0_250 = arith.constant 0 : index
    %c0_251 = arith.constant 0 : index
    %698 = vector.load %arg8[%c0_250, %c0_251] : memref<64x256xbf16, #tpu.memory_space<vmem>>, vector<64x256xbf16>
    %cst_252 = arith.constant 0.000000e+00 : f32
    %699 = vector.broadcast %cst_252 : f32 to vector<8x64xf32>
    %cst_253 = arith.constant 0.000000e+00 : f32
    %700 = vector.broadcast %cst_253 : f32 to vector<8x64xf32>
    %701 = vector.extract_strided_slice %697 {offsets = [0, 0], sizes = [8, 256], strides = [1, 1]} : vector<64x256xf32> to vector<8x256xf32>
    %702 = arith.truncf %699 : vector<8x64xf32> to vector<8x64xbf16>
    %cst_254 = arith.constant dense<0.000000e+00> : vector<8x256xf32>
    %703 = tpu.matmul %702, %698, %cst_254 {dimension_numbers = #tpu.dot_dimension_numbers<[1], [0], [0], [1], [0, 0, 1, 1], [], []>} : vector<8x64xbf16>, vector<64x256xbf16>, vector<8x256xf32> -> vector<8x256xf32>
    %704 = arith.addf %701, %703 : vector<8x256xf32>
    %705 = vector.extract_strided_slice %704 {offsets = [0, 0], sizes = [8, 64], strides = [1, 1]} : vector<8x256xf32> to vector<8x64xf32>
    %cst_255 = arith.constant 5.000000e-01 : f32
    %706 = vector.broadcast %cst_255 : f32 to vector<8x64xf32>
    %707 = arith.mulf %706, %705 : vector<8x64xf32>
    %708 = math.tanh %707 : vector<8x64xf32>
    %cst_256 = arith.constant 1.000000e+00 : f32
    %709 = vector.broadcast %cst_256 : f32 to vector<8x64xf32>
    %710 = arith.addf %708, %709 : vector<8x64xf32>
    %cst_257 = arith.constant 5.000000e-01 : f32
    %711 = vector.broadcast %cst_257 : f32 to vector<8x64xf32>
    %712 = arith.mulf %711, %710 : vector<8x64xf32>
    %713 = vector.extract_strided_slice %704 {offsets = [0, 64], sizes = [8, 64], strides = [1, 1]} : vector<8x256xf32> to vector<8x64xf32>
    %cst_258 = arith.constant 5.000000e-01 : f32
    %714 = vector.broadcast %cst_258 : f32 to vector<8x64xf32>
    %715 = arith.mulf %714, %713 : vector<8x64xf32>
    %716 = math.tanh %715 : vector<8x64xf32>
    %cst_259 = arith.constant 1.000000e+00 : f32
    %717 = vector.broadcast %cst_259 : f32 to vector<8x64xf32>
    %718 = arith.addf %716, %717 : vector<8x64xf32>
    %cst_260 = arith.constant 5.000000e-01 : f32
    %719 = vector.broadcast %cst_260 : f32 to vector<8x64xf32>
    %720 = arith.mulf %719, %718 : vector<8x64xf32>
    %721 = vector.extract_strided_slice %704 {offsets = [0, 128], sizes = [8, 64], strides = [1, 1]} : vector<8x256xf32> to vector<8x64xf32>
    %722 = math.tanh %721 : vector<8x64xf32>
    %723 = vector.extract_strided_slice %704 {offsets = [0, 192], sizes = [8, 64], strides = [1, 1]} : vector<8x256xf32> to vector<8x64xf32>
    %cst_261 = arith.constant 5.000000e-01 : f32
    %724 = vector.broadcast %cst_261 : f32 to vector<8x64xf32>
    %725 = arith.mulf %724, %723 : vector<8x64xf32>
    %726 = math.tanh %725 : vector<8x64xf32>
    %cst_262 = arith.constant 1.000000e+00 : f32
    %727 = vector.broadcast %cst_262 : f32 to vector<8x64xf32>
    %728 = arith.addf %726, %727 : vector<8x64xf32>
    %cst_263 = arith.constant 5.000000e-01 : f32
    %729 = vector.broadcast %cst_263 : f32 to vector<8x64xf32>
    %730 = arith.mulf %729, %728 : vector<8x64xf32>
    %731 = arith.mulf %720, %700 : vector<8x64xf32>
    %732 = arith.mulf %712, %722 : vector<8x64xf32>
    %733 = arith.addf %731, %732 : vector<8x64xf32>
    %734 = math.tanh %733 : vector<8x64xf32>
    %735 = arith.mulf %730, %734 : vector<8x64xf32>
    %736 = vector.extract_strided_slice %697 {offsets = [8, 0], sizes = [8, 256], strides = [1, 1]} : vector<64x256xf32> to vector<8x256xf32>
    %737 = arith.truncf %735 : vector<8x64xf32> to vector<8x64xbf16>
    %cst_264 = arith.constant dense<0.000000e+00> : vector<8x256xf32>
    %738 = tpu.matmul %737, %698, %cst_264 {dimension_numbers = #tpu.dot_dimension_numbers<[1], [0], [0], [1], [0, 0, 1, 1], [], []>} : vector<8x64xbf16>, vector<64x256xbf16>, vector<8x256xf32> -> vector<8x256xf32>
    %739 = arith.addf %736, %738 : vector<8x256xf32>
    %740 = vector.extract_strided_slice %739 {offsets = [0, 0], sizes = [8, 64], strides = [1, 1]} : vector<8x256xf32> to vector<8x64xf32>
    %cst_265 = arith.constant 5.000000e-01 : f32
    %741 = vector.broadcast %cst_265 : f32 to vector<8x64xf32>
    %742 = arith.mulf %741, %740 : vector<8x64xf32>
    %743 = math.tanh %742 : vector<8x64xf32>
    %cst_266 = arith.constant 1.000000e+00 : f32
    %744 = vector.broadcast %cst_266 : f32 to vector<8x64xf32>
    %745 = arith.addf %743, %744 : vector<8x64xf32>
    %cst_267 = arith.constant 5.000000e-01 : f32
    %746 = vector.broadcast %cst_267 : f32 to vector<8x64xf32>
    %747 = arith.mulf %746, %745 : vector<8x64xf32>
    %748 = vector.extract_strided_slice %739 {offsets = [0, 64], sizes = [8, 64], strides = [1, 1]} : vector<8x256xf32> to vector<8x64xf32>
    %cst_268 = arith.constant 5.000000e-01 : f32
    %749 = vector.broadcast %cst_268 : f32 to vector<8x64xf32>
    %750 = arith.mulf %749, %748 : vector<8x64xf32>
    %751 = math.tanh %750 : vector<8x64xf32>
    %cst_269 = arith.constant 1.000000e+00 : f32
    %752 = vector.broadcast %cst_269 : f32 to vector<8x64xf32>
    %753 = arith.addf %751, %752 : vector<8x64xf32>
    %cst_270 = arith.constant 5.000000e-01 : f32
    %754 = vector.broadcast %cst_270 : f32 to vector<8x64xf32>
    %755 = arith.mulf %754, %753 : vector<8x64xf32>
    %756 = vector.extract_strided_slice %739 {offsets = [0, 128], sizes = [8, 64], strides = [1, 1]} : vector<8x256xf32> to vector<8x64xf32>
    %757 = math.tanh %756 : vector<8x64xf32>
    %758 = vector.extract_strided_slice %739 {offsets = [0, 192], sizes = [8, 64], strides = [1, 1]} : vector<8x256xf32> to vector<8x64xf32>
    %cst_271 = arith.constant 5.000000e-01 : f32
    %759 = vector.broadcast %cst_271 : f32 to vector<8x64xf32>
    %760 = arith.mulf %759, %758 : vector<8x64xf32>
    %761 = math.tanh %760 : vector<8x64xf32>
    %cst_272 = arith.constant 1.000000e+00 : f32
    %762 = vector.broadcast %cst_272 : f32 to vector<8x64xf32>
    %763 = arith.addf %761, %762 : vector<8x64xf32>
    %cst_273 = arith.constant 5.000000e-01 : f32
    %764 = vector.broadcast %cst_273 : f32 to vector<8x64xf32>
    %765 = arith.mulf %764, %763 : vector<8x64xf32>
    %766 = arith.mulf %755, %733 : vector<8x64xf32>
    %767 = arith.mulf %747, %757 : vector<8x64xf32>
    %768 = arith.addf %766, %767 : vector<8x64xf32>
    %769 = math.tanh %768 : vector<8x64xf32>
    %770 = arith.mulf %765, %769 : vector<8x64xf32>
    %771 = vector.extract_strided_slice %697 {offsets = [16, 0], sizes = [8, 256], strides = [1, 1]} : vector<64x256xf32> to vector<8x256xf32>
    %772 = arith.truncf %770 : vector<8x64xf32> to vector<8x64xbf16>
    %cst_274 = arith.constant dense<0.000000e+00> : vector<8x256xf32>
    %773 = tpu.matmul %772, %698, %cst_274 {dimension_numbers = #tpu.dot_dimension_numbers<[1], [0], [0], [1], [0, 0, 1, 1], [], []>} : vector<8x64xbf16>, vector<64x256xbf16>, vector<8x256xf32> -> vector<8x256xf32>
    %774 = arith.addf %771, %773 : vector<8x256xf32>
    %775 = vector.extract_strided_slice %774 {offsets = [0, 0], sizes = [8, 64], strides = [1, 1]} : vector<8x256xf32> to vector<8x64xf32>
    %cst_275 = arith.constant 5.000000e-01 : f32
    %776 = vector.broadcast %cst_275 : f32 to vector<8x64xf32>
    %777 = arith.mulf %776, %775 : vector<8x64xf32>
    %778 = math.tanh %777 : vector<8x64xf32>
    %cst_276 = arith.constant 1.000000e+00 : f32
    %779 = vector.broadcast %cst_276 : f32 to vector<8x64xf32>
    %780 = arith.addf %778, %779 : vector<8x64xf32>
    %cst_277 = arith.constant 5.000000e-01 : f32
    %781 = vector.broadcast %cst_277 : f32 to vector<8x64xf32>
    %782 = arith.mulf %781, %780 : vector<8x64xf32>
    %783 = vector.extract_strided_slice %774 {offsets = [0, 64], sizes = [8, 64], strides = [1, 1]} : vector<8x256xf32> to vector<8x64xf32>
    %cst_278 = arith.constant 5.000000e-01 : f32
    %784 = vector.broadcast %cst_278 : f32 to vector<8x64xf32>
    %785 = arith.mulf %784, %783 : vector<8x64xf32>
    %786 = math.tanh %785 : vector<8x64xf32>
    %cst_279 = arith.constant 1.000000e+00 : f32
    %787 = vector.broadcast %cst_279 : f32 to vector<8x64xf32>
    %788 = arith.addf %786, %787 : vector<8x64xf32>
    %cst_280 = arith.constant 5.000000e-01 : f32
    %789 = vector.broadcast %cst_280 : f32 to vector<8x64xf32>
    %790 = arith.mulf %789, %788 : vector<8x64xf32>
    %791 = vector.extract_strided_slice %774 {offsets = [0, 128], sizes = [8, 64], strides = [1, 1]} : vector<8x256xf32> to vector<8x64xf32>
    %792 = math.tanh %791 : vector<8x64xf32>
    %793 = vector.extract_strided_slice %774 {offsets = [0, 192], sizes = [8, 64], strides = [1, 1]} : vector<8x256xf32> to vector<8x64xf32>
    %cst_281 = arith.constant 5.000000e-01 : f32
    %794 = vector.broadcast %cst_281 : f32 to vector<8x64xf32>
    %795 = arith.mulf %794, %793 : vector<8x64xf32>
    %796 = math.tanh %795 : vector<8x64xf32>
    %cst_282 = arith.constant 1.000000e+00 : f32
    %797 = vector.broadcast %cst_282 : f32 to vector<8x64xf32>
    %798 = arith.addf %796, %797 : vector<8x64xf32>
    %cst_283 = arith.constant 5.000000e-01 : f32
    %799 = vector.broadcast %cst_283 : f32 to vector<8x64xf32>
    %800 = arith.mulf %799, %798 : vector<8x64xf32>
    %801 = arith.mulf %790, %768 : vector<8x64xf32>
    %802 = arith.mulf %782, %792 : vector<8x64xf32>
    %803 = arith.addf %801, %802 : vector<8x64xf32>
    %804 = math.tanh %803 : vector<8x64xf32>
    %805 = arith.mulf %800, %804 : vector<8x64xf32>
    %806 = vector.extract_strided_slice %697 {offsets = [24, 0], sizes = [8, 256], strides = [1, 1]} : vector<64x256xf32> to vector<8x256xf32>
    %807 = arith.truncf %805 : vector<8x64xf32> to vector<8x64xbf16>
    %cst_284 = arith.constant dense<0.000000e+00> : vector<8x256xf32>
    %808 = tpu.matmul %807, %698, %cst_284 {dimension_numbers = #tpu.dot_dimension_numbers<[1], [0], [0], [1], [0, 0, 1, 1], [], []>} : vector<8x64xbf16>, vector<64x256xbf16>, vector<8x256xf32> -> vector<8x256xf32>
    %809 = arith.addf %806, %808 : vector<8x256xf32>
    %810 = vector.extract_strided_slice %809 {offsets = [0, 0], sizes = [8, 64], strides = [1, 1]} : vector<8x256xf32> to vector<8x64xf32>
    %cst_285 = arith.constant 5.000000e-01 : f32
    %811 = vector.broadcast %cst_285 : f32 to vector<8x64xf32>
    %812 = arith.mulf %811, %810 : vector<8x64xf32>
    %813 = math.tanh %812 : vector<8x64xf32>
    %cst_286 = arith.constant 1.000000e+00 : f32
    %814 = vector.broadcast %cst_286 : f32 to vector<8x64xf32>
    %815 = arith.addf %813, %814 : vector<8x64xf32>
    %cst_287 = arith.constant 5.000000e-01 : f32
    %816 = vector.broadcast %cst_287 : f32 to vector<8x64xf32>
    %817 = arith.mulf %816, %815 : vector<8x64xf32>
    %818 = vector.extract_strided_slice %809 {offsets = [0, 64], sizes = [8, 64], strides = [1, 1]} : vector<8x256xf32> to vector<8x64xf32>
    %cst_288 = arith.constant 5.000000e-01 : f32
    %819 = vector.broadcast %cst_288 : f32 to vector<8x64xf32>
    %820 = arith.mulf %819, %818 : vector<8x64xf32>
    %821 = math.tanh %820 : vector<8x64xf32>
    %cst_289 = arith.constant 1.000000e+00 : f32
    %822 = vector.broadcast %cst_289 : f32 to vector<8x64xf32>
    %823 = arith.addf %821, %822 : vector<8x64xf32>
    %cst_290 = arith.constant 5.000000e-01 : f32
    %824 = vector.broadcast %cst_290 : f32 to vector<8x64xf32>
    %825 = arith.mulf %824, %823 : vector<8x64xf32>
    %826 = vector.extract_strided_slice %809 {offsets = [0, 128], sizes = [8, 64], strides = [1, 1]} : vector<8x256xf32> to vector<8x64xf32>
    %827 = math.tanh %826 : vector<8x64xf32>
    %828 = vector.extract_strided_slice %809 {offsets = [0, 192], sizes = [8, 64], strides = [1, 1]} : vector<8x256xf32> to vector<8x64xf32>
    %cst_291 = arith.constant 5.000000e-01 : f32
    %829 = vector.broadcast %cst_291 : f32 to vector<8x64xf32>
    %830 = arith.mulf %829, %828 : vector<8x64xf32>
    %831 = math.tanh %830 : vector<8x64xf32>
    %cst_292 = arith.constant 1.000000e+00 : f32
    %832 = vector.broadcast %cst_292 : f32 to vector<8x64xf32>
    %833 = arith.addf %831, %832 : vector<8x64xf32>
    %cst_293 = arith.constant 5.000000e-01 : f32
    %834 = vector.broadcast %cst_293 : f32 to vector<8x64xf32>
    %835 = arith.mulf %834, %833 : vector<8x64xf32>
    %836 = arith.mulf %825, %803 : vector<8x64xf32>
    %837 = arith.mulf %817, %827 : vector<8x64xf32>
    %838 = arith.addf %836, %837 : vector<8x64xf32>
    %839 = math.tanh %838 : vector<8x64xf32>
    %840 = arith.mulf %835, %839 : vector<8x64xf32>
    %841 = vector.extract_strided_slice %697 {offsets = [32, 0], sizes = [8, 256], strides = [1, 1]} : vector<64x256xf32> to vector<8x256xf32>
    %842 = arith.truncf %840 : vector<8x64xf32> to vector<8x64xbf16>
    %cst_294 = arith.constant dense<0.000000e+00> : vector<8x256xf32>
    %843 = tpu.matmul %842, %698, %cst_294 {dimension_numbers = #tpu.dot_dimension_numbers<[1], [0], [0], [1], [0, 0, 1, 1], [], []>} : vector<8x64xbf16>, vector<64x256xbf16>, vector<8x256xf32> -> vector<8x256xf32>
    %844 = arith.addf %841, %843 : vector<8x256xf32>
    %845 = vector.extract_strided_slice %844 {offsets = [0, 0], sizes = [8, 64], strides = [1, 1]} : vector<8x256xf32> to vector<8x64xf32>
    %cst_295 = arith.constant 5.000000e-01 : f32
    %846 = vector.broadcast %cst_295 : f32 to vector<8x64xf32>
    %847 = arith.mulf %846, %845 : vector<8x64xf32>
    %848 = math.tanh %847 : vector<8x64xf32>
    %cst_296 = arith.constant 1.000000e+00 : f32
    %849 = vector.broadcast %cst_296 : f32 to vector<8x64xf32>
    %850 = arith.addf %848, %849 : vector<8x64xf32>
    %cst_297 = arith.constant 5.000000e-01 : f32
    %851 = vector.broadcast %cst_297 : f32 to vector<8x64xf32>
    %852 = arith.mulf %851, %850 : vector<8x64xf32>
    %853 = vector.extract_strided_slice %844 {offsets = [0, 64], sizes = [8, 64], strides = [1, 1]} : vector<8x256xf32> to vector<8x64xf32>
    %cst_298 = arith.constant 5.000000e-01 : f32
    %854 = vector.broadcast %cst_298 : f32 to vector<8x64xf32>
    %855 = arith.mulf %854, %853 : vector<8x64xf32>
    %856 = math.tanh %855 : vector<8x64xf32>
    %cst_299 = arith.constant 1.000000e+00 : f32
    %857 = vector.broadcast %cst_299 : f32 to vector<8x64xf32>
    %858 = arith.addf %856, %857 : vector<8x64xf32>
    %cst_300 = arith.constant 5.000000e-01 : f32
    %859 = vector.broadcast %cst_300 : f32 to vector<8x64xf32>
    %860 = arith.mulf %859, %858 : vector<8x64xf32>
    %861 = vector.extract_strided_slice %844 {offsets = [0, 128], sizes = [8, 64], strides = [1, 1]} : vector<8x256xf32> to vector<8x64xf32>
    %862 = math.tanh %861 : vector<8x64xf32>
    %863 = vector.extract_strided_slice %844 {offsets = [0, 192], sizes = [8, 64], strides = [1, 1]} : vector<8x256xf32> to vector<8x64xf32>
    %cst_301 = arith.constant 5.000000e-01 : f32
    %864 = vector.broadcast %cst_301 : f32 to vector<8x64xf32>
    %865 = arith.mulf %864, %863 : vector<8x64xf32>
    %866 = math.tanh %865 : vector<8x64xf32>
    %cst_302 = arith.constant 1.000000e+00 : f32
    %867 = vector.broadcast %cst_302 : f32 to vector<8x64xf32>
    %868 = arith.addf %866, %867 : vector<8x64xf32>
    %cst_303 = arith.constant 5.000000e-01 : f32
    %869 = vector.broadcast %cst_303 : f32 to vector<8x64xf32>
    %870 = arith.mulf %869, %868 : vector<8x64xf32>
    %871 = arith.mulf %860, %838 : vector<8x64xf32>
    %872 = arith.mulf %852, %862 : vector<8x64xf32>
    %873 = arith.addf %871, %872 : vector<8x64xf32>
    %874 = math.tanh %873 : vector<8x64xf32>
    %875 = arith.mulf %870, %874 : vector<8x64xf32>
    %876 = vector.extract_strided_slice %697 {offsets = [40, 0], sizes = [8, 256], strides = [1, 1]} : vector<64x256xf32> to vector<8x256xf32>
    %877 = arith.truncf %875 : vector<8x64xf32> to vector<8x64xbf16>
    %cst_304 = arith.constant dense<0.000000e+00> : vector<8x256xf32>
    %878 = tpu.matmul %877, %698, %cst_304 {dimension_numbers = #tpu.dot_dimension_numbers<[1], [0], [0], [1], [0, 0, 1, 1], [], []>} : vector<8x64xbf16>, vector<64x256xbf16>, vector<8x256xf32> -> vector<8x256xf32>
    %879 = arith.addf %876, %878 : vector<8x256xf32>
    %880 = vector.extract_strided_slice %879 {offsets = [0, 0], sizes = [8, 64], strides = [1, 1]} : vector<8x256xf32> to vector<8x64xf32>
    %cst_305 = arith.constant 5.000000e-01 : f32
    %881 = vector.broadcast %cst_305 : f32 to vector<8x64xf32>
    %882 = arith.mulf %881, %880 : vector<8x64xf32>
    %883 = math.tanh %882 : vector<8x64xf32>
    %cst_306 = arith.constant 1.000000e+00 : f32
    %884 = vector.broadcast %cst_306 : f32 to vector<8x64xf32>
    %885 = arith.addf %883, %884 : vector<8x64xf32>
    %cst_307 = arith.constant 5.000000e-01 : f32
    %886 = vector.broadcast %cst_307 : f32 to vector<8x64xf32>
    %887 = arith.mulf %886, %885 : vector<8x64xf32>
    %888 = vector.extract_strided_slice %879 {offsets = [0, 64], sizes = [8, 64], strides = [1, 1]} : vector<8x256xf32> to vector<8x64xf32>
    %cst_308 = arith.constant 5.000000e-01 : f32
    %889 = vector.broadcast %cst_308 : f32 to vector<8x64xf32>
    %890 = arith.mulf %889, %888 : vector<8x64xf32>
    %891 = math.tanh %890 : vector<8x64xf32>
    %cst_309 = arith.constant 1.000000e+00 : f32
    %892 = vector.broadcast %cst_309 : f32 to vector<8x64xf32>
    %893 = arith.addf %891, %892 : vector<8x64xf32>
    %cst_310 = arith.constant 5.000000e-01 : f32
    %894 = vector.broadcast %cst_310 : f32 to vector<8x64xf32>
    %895 = arith.mulf %894, %893 : vector<8x64xf32>
    %896 = vector.extract_strided_slice %879 {offsets = [0, 128], sizes = [8, 64], strides = [1, 1]} : vector<8x256xf32> to vector<8x64xf32>
    %897 = math.tanh %896 : vector<8x64xf32>
    %898 = vector.extract_strided_slice %879 {offsets = [0, 192], sizes = [8, 64], strides = [1, 1]} : vector<8x256xf32> to vector<8x64xf32>
    %cst_311 = arith.constant 5.000000e-01 : f32
    %899 = vector.broadcast %cst_311 : f32 to vector<8x64xf32>
    %900 = arith.mulf %899, %898 : vector<8x64xf32>
    %901 = math.tanh %900 : vector<8x64xf32>
    %cst_312 = arith.constant 1.000000e+00 : f32
    %902 = vector.broadcast %cst_312 : f32 to vector<8x64xf32>
    %903 = arith.addf %901, %902 : vector<8x64xf32>
    %cst_313 = arith.constant 5.000000e-01 : f32
    %904 = vector.broadcast %cst_313 : f32 to vector<8x64xf32>
    %905 = arith.mulf %904, %903 : vector<8x64xf32>
    %906 = arith.mulf %895, %873 : vector<8x64xf32>
    %907 = arith.mulf %887, %897 : vector<8x64xf32>
    %908 = arith.addf %906, %907 : vector<8x64xf32>
    %909 = math.tanh %908 : vector<8x64xf32>
    %910 = arith.mulf %905, %909 : vector<8x64xf32>
    %911 = vector.extract_strided_slice %697 {offsets = [48, 0], sizes = [8, 256], strides = [1, 1]} : vector<64x256xf32> to vector<8x256xf32>
    %912 = arith.truncf %910 : vector<8x64xf32> to vector<8x64xbf16>
    %cst_314 = arith.constant dense<0.000000e+00> : vector<8x256xf32>
    %913 = tpu.matmul %912, %698, %cst_314 {dimension_numbers = #tpu.dot_dimension_numbers<[1], [0], [0], [1], [0, 0, 1, 1], [], []>} : vector<8x64xbf16>, vector<64x256xbf16>, vector<8x256xf32> -> vector<8x256xf32>
    %914 = arith.addf %911, %913 : vector<8x256xf32>
    %915 = vector.extract_strided_slice %914 {offsets = [0, 0], sizes = [8, 64], strides = [1, 1]} : vector<8x256xf32> to vector<8x64xf32>
    %cst_315 = arith.constant 5.000000e-01 : f32
    %916 = vector.broadcast %cst_315 : f32 to vector<8x64xf32>
    %917 = arith.mulf %916, %915 : vector<8x64xf32>
    %918 = math.tanh %917 : vector<8x64xf32>
    %cst_316 = arith.constant 1.000000e+00 : f32
    %919 = vector.broadcast %cst_316 : f32 to vector<8x64xf32>
    %920 = arith.addf %918, %919 : vector<8x64xf32>
    %cst_317 = arith.constant 5.000000e-01 : f32
    %921 = vector.broadcast %cst_317 : f32 to vector<8x64xf32>
    %922 = arith.mulf %921, %920 : vector<8x64xf32>
    %923 = vector.extract_strided_slice %914 {offsets = [0, 64], sizes = [8, 64], strides = [1, 1]} : vector<8x256xf32> to vector<8x64xf32>
    %cst_318 = arith.constant 5.000000e-01 : f32
    %924 = vector.broadcast %cst_318 : f32 to vector<8x64xf32>
    %925 = arith.mulf %924, %923 : vector<8x64xf32>
    %926 = math.tanh %925 : vector<8x64xf32>
    %cst_319 = arith.constant 1.000000e+00 : f32
    %927 = vector.broadcast %cst_319 : f32 to vector<8x64xf32>
    %928 = arith.addf %926, %927 : vector<8x64xf32>
    %cst_320 = arith.constant 5.000000e-01 : f32
    %929 = vector.broadcast %cst_320 : f32 to vector<8x64xf32>
    %930 = arith.mulf %929, %928 : vector<8x64xf32>
    %931 = vector.extract_strided_slice %914 {offsets = [0, 128], sizes = [8, 64], strides = [1, 1]} : vector<8x256xf32> to vector<8x64xf32>
    %932 = math.tanh %931 : vector<8x64xf32>
    %933 = vector.extract_strided_slice %914 {offsets = [0, 192], sizes = [8, 64], strides = [1, 1]} : vector<8x256xf32> to vector<8x64xf32>
    %cst_321 = arith.constant 5.000000e-01 : f32
    %934 = vector.broadcast %cst_321 : f32 to vector<8x64xf32>
    %935 = arith.mulf %934, %933 : vector<8x64xf32>
    %936 = math.tanh %935 : vector<8x64xf32>
    %cst_322 = arith.constant 1.000000e+00 : f32
    %937 = vector.broadcast %cst_322 : f32 to vector<8x64xf32>
    %938 = arith.addf %936, %937 : vector<8x64xf32>
    %cst_323 = arith.constant 5.000000e-01 : f32
    %939 = vector.broadcast %cst_323 : f32 to vector<8x64xf32>
    %940 = arith.mulf %939, %938 : vector<8x64xf32>
    %941 = arith.mulf %930, %908 : vector<8x64xf32>
    %942 = arith.mulf %922, %932 : vector<8x64xf32>
    %943 = arith.addf %941, %942 : vector<8x64xf32>
    %944 = math.tanh %943 : vector<8x64xf32>
    %945 = arith.mulf %940, %944 : vector<8x64xf32>
    %946 = vector.extract_strided_slice %697 {offsets = [56, 0], sizes = [8, 256], strides = [1, 1]} : vector<64x256xf32> to vector<8x256xf32>
    %947 = arith.truncf %945 : vector<8x64xf32> to vector<8x64xbf16>
    %cst_324 = arith.constant dense<0.000000e+00> : vector<8x256xf32>
    %948 = tpu.matmul %947, %698, %cst_324 {dimension_numbers = #tpu.dot_dimension_numbers<[1], [0], [0], [1], [0, 0, 1, 1], [], []>} : vector<8x64xbf16>, vector<64x256xbf16>, vector<8x256xf32> -> vector<8x256xf32>
    %949 = arith.addf %946, %948 : vector<8x256xf32>
    %950 = vector.extract_strided_slice %949 {offsets = [0, 0], sizes = [8, 64], strides = [1, 1]} : vector<8x256xf32> to vector<8x64xf32>
    %cst_325 = arith.constant 5.000000e-01 : f32
    %951 = vector.broadcast %cst_325 : f32 to vector<8x64xf32>
    %952 = arith.mulf %951, %950 : vector<8x64xf32>
    %953 = math.tanh %952 : vector<8x64xf32>
    %cst_326 = arith.constant 1.000000e+00 : f32
    %954 = vector.broadcast %cst_326 : f32 to vector<8x64xf32>
    %955 = arith.addf %953, %954 : vector<8x64xf32>
    %cst_327 = arith.constant 5.000000e-01 : f32
    %956 = vector.broadcast %cst_327 : f32 to vector<8x64xf32>
    %957 = arith.mulf %956, %955 : vector<8x64xf32>
    %958 = vector.extract_strided_slice %949 {offsets = [0, 64], sizes = [8, 64], strides = [1, 1]} : vector<8x256xf32> to vector<8x64xf32>
    %cst_328 = arith.constant 5.000000e-01 : f32
    %959 = vector.broadcast %cst_328 : f32 to vector<8x64xf32>
    %960 = arith.mulf %959, %958 : vector<8x64xf32>
    %961 = math.tanh %960 : vector<8x64xf32>
    %cst_329 = arith.constant 1.000000e+00 : f32
    %962 = vector.broadcast %cst_329 : f32 to vector<8x64xf32>
    %963 = arith.addf %961, %962 : vector<8x64xf32>
    %cst_330 = arith.constant 5.000000e-01 : f32
    %964 = vector.broadcast %cst_330 : f32 to vector<8x64xf32>
    %965 = arith.mulf %964, %963 : vector<8x64xf32>
    %966 = vector.extract_strided_slice %949 {offsets = [0, 128], sizes = [8, 64], strides = [1, 1]} : vector<8x256xf32> to vector<8x64xf32>
    %967 = math.tanh %966 : vector<8x64xf32>
    %968 = vector.extract_strided_slice %949 {offsets = [0, 192], sizes = [8, 64], strides = [1, 1]} : vector<8x256xf32> to vector<8x64xf32>
    %cst_331 = arith.constant 5.000000e-01 : f32
    %969 = vector.broadcast %cst_331 : f32 to vector<8x64xf32>
    %970 = arith.mulf %969, %968 : vector<8x64xf32>
    %971 = math.tanh %970 : vector<8x64xf32>
    %cst_332 = arith.constant 1.000000e+00 : f32
    %972 = vector.broadcast %cst_332 : f32 to vector<8x64xf32>
    %973 = arith.addf %971, %972 : vector<8x64xf32>
    %cst_333 = arith.constant 5.000000e-01 : f32
    %974 = vector.broadcast %cst_333 : f32 to vector<8x64xf32>
    %975 = arith.mulf %974, %973 : vector<8x64xf32>
    %976 = arith.mulf %965, %943 : vector<8x64xf32>
    %977 = arith.mulf %957, %967 : vector<8x64xf32>
    %978 = arith.addf %976, %977 : vector<8x64xf32>
    %979 = math.tanh %978 : vector<8x64xf32>
    %980 = arith.mulf %975, %979 : vector<8x64xf32>
    %981 = arith.truncf %980 : vector<8x64xf32> to vector<8x64xbf16>
    %c0_334 = arith.constant 0 : index
    %c0_335 = arith.constant 0 : index
    %982 = vector.load %arg10[%c0_334, %c0_335] : memref<64x256xbf16, #tpu.memory_space<vmem>>, vector<64x256xbf16>
    %cst_336 = arith.constant dense<0.000000e+00> : vector<8x256xf32>
    %983 = tpu.matmul %981, %982, %cst_336 {dimension_numbers = #tpu.dot_dimension_numbers<[1], [0], [0], [1], [0, 0, 1, 1], [], []>} : vector<8x64xbf16>, vector<64x256xbf16>, vector<8x256xf32> -> vector<8x256xf32>
    %c0_337 = arith.constant 0 : index
    %c0_338 = arith.constant 0 : index
    %984 = vector.load %arg11[%c0_337, %c0_338] : memref<1x256xf32, #tpu.memory_space<vmem>>, vector<1x256xf32>
    %985 = vector.broadcast %984 : vector<1x256xf32> to vector<8x256xf32>
    %986 = arith.addf %983, %985 : vector<8x256xf32>
    %cst_339 = arith.constant 5.000000e-01 : f32
    %987 = vector.broadcast %cst_339 : f32 to vector<8x256xf32>
    %988 = arith.mulf %987, %986 : vector<8x256xf32>
    %989 = arith.mulf %986, %986 : vector<8x256xf32>
    %990 = arith.mulf %989, %986 : vector<8x256xf32>
    %cst_340 = arith.constant 4.471500e-02 : f32
    %991 = vector.broadcast %cst_340 : f32 to vector<8x256xf32>
    %992 = arith.mulf %991, %990 : vector<8x256xf32>
    %993 = arith.addf %986, %992 : vector<8x256xf32>
    %cst_341 = arith.constant 0.797884583 : f32
    %994 = vector.broadcast %cst_341 : f32 to vector<8x256xf32>
    %995 = arith.mulf %994, %993 : vector<8x256xf32>
    %996 = math.tanh %995 : vector<8x256xf32>
    %cst_342 = arith.constant 1.000000e+00 : f32
    %997 = vector.broadcast %cst_342 : f32 to vector<8x256xf32>
    %998 = arith.addf %997, %996 : vector<8x256xf32>
    %999 = arith.mulf %988, %998 : vector<8x256xf32>
    %1000 = arith.truncf %999 : vector<8x256xf32> to vector<8x256xbf16>
    %c0_343 = arith.constant 0 : index
    %c0_344 = arith.constant 0 : index
    %1001 = vector.load %arg12[%c0_343, %c0_344] : memref<256x128xbf16, #tpu.memory_space<vmem>>, vector<256x128xbf16>
    %cst_345 = arith.constant dense<0.000000e+00> : vector<8x128xf32>
    %1002 = tpu.matmul %1000, %1001, %cst_345 {dimension_numbers = #tpu.dot_dimension_numbers<[1], [0], [0], [1], [0, 0, 1, 1], [], []>} : vector<8x256xbf16>, vector<256x128xbf16>, vector<8x128xf32> -> vector<8x128xf32>
    %c0_346 = arith.constant 0 : index
    %c0_347 = arith.constant 0 : index
    %1003 = vector.load %arg13[%c0_346, %c0_347] : memref<1x128xf32, #tpu.memory_space<vmem>>, vector<1x128xf32>
    %1004 = vector.broadcast %1003 : vector<1x128xf32> to vector<8x128xf32>
    %1005 = arith.addf %1002, %1004 : vector<8x128xf32>
    %cst_348 = arith.constant 5.000000e-01 : f32
    %1006 = vector.broadcast %cst_348 : f32 to vector<8x128xf32>
    %1007 = arith.mulf %1006, %1005 : vector<8x128xf32>
    %1008 = arith.mulf %1005, %1005 : vector<8x128xf32>
    %1009 = arith.mulf %1008, %1005 : vector<8x128xf32>
    %cst_349 = arith.constant 4.471500e-02 : f32
    %1010 = vector.broadcast %cst_349 : f32 to vector<8x128xf32>
    %1011 = arith.mulf %1010, %1009 : vector<8x128xf32>
    %1012 = arith.addf %1005, %1011 : vector<8x128xf32>
    %cst_350 = arith.constant 0.797884583 : f32
    %1013 = vector.broadcast %cst_350 : f32 to vector<8x128xf32>
    %1014 = arith.mulf %1013, %1012 : vector<8x128xf32>
    %1015 = math.tanh %1014 : vector<8x128xf32>
    %cst_351 = arith.constant 1.000000e+00 : f32
    %1016 = vector.broadcast %cst_351 : f32 to vector<8x128xf32>
    %1017 = arith.addf %1016, %1015 : vector<8x128xf32>
    %1018 = arith.mulf %1007, %1017 : vector<8x128xf32>
    %1019 = arith.truncf %1018 : vector<8x128xf32> to vector<8x128xbf16>
    %c0_352 = arith.constant 0 : index
    %c0_353 = arith.constant 0 : index
    %1020 = vector.load %arg14[%c0_352, %c0_353] : memref<128x128xbf16, #tpu.memory_space<vmem>>, vector<128x128xbf16>
    %cst_354 = arith.constant dense<0.000000e+00> : vector<8x128xf32>
    %1021 = tpu.matmul %1019, %1020, %cst_354 {dimension_numbers = #tpu.dot_dimension_numbers<[1], [0], [0], [1], [0, 0, 1, 1], [], []>} : vector<8x128xbf16>, vector<128x128xbf16>, vector<8x128xf32> -> vector<8x128xf32>
    %c0_355 = arith.constant 0 : index
    %c0_356 = arith.constant 0 : index
    %1022 = vector.load %arg15[%c0_355, %c0_356] : memref<1x128xf32, #tpu.memory_space<vmem>>, vector<1x128xf32>
    %1023 = vector.broadcast %1022 : vector<1x128xf32> to vector<8x128xf32>
    %1024 = arith.addf %1021, %1023 : vector<8x128xf32>
    %c0_357 = arith.constant 0 : index
    %c0_358 = arith.constant 0 : index
    %1025 = vector.load %arg16[%c0_357, %c0_358] : memref<8x128xf32, #tpu.memory_space<vmem>>, vector<8x128xf32>
    tpu.vector_store %arg16[%c0_357, %c0_358], %1024 {strides = array<i32>} : memref<8x128xf32, #tpu.memory_space<vmem>>, vector<8x128xf32>,
    return
  }
}

</mosaic_0001>

<llo_original>
// kernel: improved_landmark_lstm_forward.1
$region0: #{improved_landmark_lstm_forward.1}
  #allocation0 [shape = 'u32[]', space=smem, size = 0x4, offset = 0x4, fixed_abs, tag = 'smem constant byte address 0x4 - core index']
  #allocation1 [shape = 'u32[72,128]{1,0:T(1,128)}', space=vmem, size = 0x9000, scoped, tag = 'internal scratch']
  #allocation2 [shape = 'f32[64,32]{1,0:T(8,128)}', space=vmem, size = 0x8000, scoped, tag = 'scratch operand']
  #allocation3 [shape = 'f32[64,32]{1,0:T(8,128)}', space=vmem, size = 0x8000, scoped, tag = 'scratch operand']
  #allocation4 [shape = 'f32[64,32]{1,0:T(8,128)}', space=vmem, size = 0x8000, scoped, tag = 'scratch operand']
  #allocation5 [shape = 'f32[64,32]{1,0:T(8,128)}', space=vmem, size = 0x8000, scoped, tag = 'scratch operand']
  %s0 = inlined_call_operand.vmem [shape: f32[64,16], index: 0, kind: input, shape index: {}]
  %s1 = inlined_call_operand.vmem [shape: bf16[16,256], index: 1, kind: input, shape index: {}]
  %s2 = inlined_call_operand.vmem [shape: bf16[64,256], index: 2, kind: input, shape index: {}]
  %s3 = inlined_call_operand.vmem [shape: f32[1,256], index: 3, kind: input, shape index: {}]
  %s4 = inlined_call_operand.hbm [shape: bf16[64,256], index: 4, kind: input, shape index: {}]
  %s5 = inlined_call_operand.hbm [shape: bf16[64,256], index: 5, kind: input, shape index: {}]
  %s6 = inlined_call_operand.vmem [shape: f32[1,256], index: 6, kind: input, shape index: {}]
  %s7 = inlined_call_operand.hbm [shape: bf16[64,256], index: 7, kind: input, shape index: {}]
  %s8 = inlined_call_operand.hbm [shape: bf16[64,256], index: 8, kind: input, shape index: {}]
  %s9 = inlined_call_operand.vmem [shape: f32[1,256], index: 9, kind: input, shape index: {}]
  %s10 = inlined_call_operand.hbm [shape: bf16[64,256], index: 10, kind: input, shape index: {}]
  %s11 = inlined_call_operand.hbm [shape: f32[1,256], index: 11, kind: input, shape index: {}]
  %s12 = inlined_call_operand.vmem [shape: bf16[256,128], index: 12, kind: input, shape index: {}]
  %s13 = inlined_call_operand.hbm [shape: f32[1,128], index: 13, kind: input, shape index: {}]
  %s14 = inlined_call_operand.hbm [shape: bf16[128,128], index: 14, kind: input, shape index: {}]
  %s15 = inlined_call_operand.hbm [shape: f32[1,128], index: 15, kind: input, shape index: {}]
  %s16 = inlined_call_operand.vmem [shape: f32[8,128], index: 16, kind: output, shape index: {}]
  %s17 = sld [smem:[#allocation0]]
  $region110: #{improved_landmark_lstm_forward.1} parent=0
    _
  %s19 = ssub.s32 1, %s17
  %s20 = scalar_select 0, %s19, %s17
  $region1: #{improved_landmark_lstm_forward.1} parent=0
    #allocation6 [shape = 'u8[32768]{0}', space=vmem, size = 0x8000, scoped, tag = 'input window, operand 4, single buffered']
    #allocation7 [shape = 's32[1]{0}', space=sflag, size = 0x4, scoped, tag = 'scoped memory for improved_landmark_lstm_forward.1']
    #allocation8 [shape = 'u8[32768]{0}', space=vmem, size = 0x8000, scoped, tag = 'input window, operand 5, single buffered']
    #allocation9 [shape = 's32[1]{0}', space=sflag, size = 0x4, scoped, tag = 'scoped memory for improved_landmark_lstm_forward.1']
    #allocation10 [shape = 'u8[32768]{0}', space=vmem, size = 0x8000, scoped, tag = 'input window, operand 7, single buffered']
    #allocation11 [shape = 'u8[32768]{0}', space=vmem, size = 0x8000, scoped, tag = 'input window, operand 8, single buffered']
    #allocation12 [shape = 's32[1]{0}', space=sflag, size = 0x4, scoped, tag = 'scoped memory for improved_landmark_lstm_forward.1']
    #allocation13 [shape = 'u8[32768]{0}', space=vmem, size = 0x8000, scoped, tag = 'input window, operand 10, single buffered']
    #allocation14 [shape = 'u8[1024]{0}', space=vmem, size = 0x400, scoped, tag = 'input window, operand 11, single buffered']
    #allocation15 [shape = 's32[1]{0}', space=sflag, size = 0x4, scoped, tag = 'scoped memory for improved_landmark_lstm_forward.1']
    #allocation16 [shape = 'u8[512]{0}', space=vmem, size = 0x400, scoped, tag = 'input window, operand 13, single buffered']
    #allocation17 [shape = 'u8[32768]{0}', space=vmem, size = 0x8000, scoped, tag = 'input window, operand 14, single buffered']
    #allocation18 [shape = 's32[1]{0}', space=sflag, size = 0x4, scoped, tag = 'scoped memory for improved_landmark_lstm_forward.1']
    #allocation19 [shape = 'u8[512]{0}', space=vmem, size = 0x400, scoped, tag = 'input window, operand 15, single buffered']
    %21 = vsyncpa [#allocation7], 0
    %22 = vsyncpa [#allocation9], 0
    %23 = vsyncpa [#allocation12], 0
    %24 = vsyncpa [#allocation15], 0
    %25 = vsyncpa [#allocation18], 0
    // Predicated region
    $region2: #{improved_landmark_lstm_forward.1} parent=1 // pred_check
      _
    $region3: #{improved_landmark_lstm_forward.1} parent=1 // pred_check_branch
      %27 = sbr.rel (0) target = $region5
    $region4: #{improved_landmark_lstm_forward.1} parent=1 // pred_region
      _
    $region5: #{improved_landmark_lstm_forward.1} parent=1 // pred_fallthru
      _
    // Predicated region
    $region6: #{improved_landmark_lstm_forward.1} parent=1 // pred_check
      _
    $region7: #{improved_landmark_lstm_forward.1} parent=1 // pred_check_branch
      %29 = sbr.rel (0) target = $region9
    $region8: #{improved_landmark_lstm_forward.1} parent=1 // pred_region
      _
    $region9: #{improved_landmark_lstm_forward.1} parent=1 // pred_fallthru
      _
    // Predicated region
    $region10: #{improved_landmark_lstm_forward.1} parent=1 // pred_check
      _
    $region11: #{improved_landmark_lstm_forward.1} parent=1 // pred_check_branch
      %31 = sbr.rel (0) target = $region13
    $region12: #{improved_landmark_lstm_forward.1} parent=1 // pred_region
      _
    $region13: #{improved_landmark_lstm_forward.1} parent=1 // pred_fallthru
      _
    // Predicated region
    $region14: #{improved_landmark_lstm_forward.1} parent=1 // pred_check
      _
    $region15: #{improved_landmark_lstm_forward.1} parent=1 // pred_check_branch
      %33 = sbr.rel (0) target = $region17
    $region16: #{improved_landmark_lstm_forward.1} parent=1 // pred_region
      _
    $region17: #{improved_landmark_lstm_forward.1} parent=1 // pred_fallthru
      _
    // Predicated region
    $region18: #{improved_landmark_lstm_forward.1} parent=1 // pred_check
      _
    $region19: #{improved_landmark_lstm_forward.1} parent=1 // pred_check_branch
      %35 = sbr.rel (0) target = $region21
    $region20: #{improved_landmark_lstm_forward.1} parent=1 // pred_region
      %37 = vsyncadd [#allocation7], 0
      %s38 = sshll.u32 %s4, 4
      %s39 = int_to_ptr.hbm [resolvable:$true] %s38
      %s40 = sshll.u32 [#allocation6], 4
      %s41 = int_to_ptr.vmem [resolvable:$true] %s40
      %46 = dma.hbm_to_vmem [thread:$0]  %s39, 1024, %s41, [#allocation7], 128, 128, 8
    $region21: #{improved_landmark_lstm_forward.1} parent=1 // pred_fallthru
      _
    // Predicated region
    $region22: #{improved_landmark_lstm_forward.1} parent=1 // pred_check
      _
    $region23: #{improved_landmark_lstm_forward.1} parent=1 // pred_check_branch
      %48 = sbr.rel (0) target = $region25
    $region24: #{improved_landmark_lstm_forward.1} parent=1 // pred_region
      %50 = vsyncadd [#allocation9], 0
      %s51 = sshll.u32 %s5, 4
      %s52 = int_to_ptr.hbm [resolvable:$true] %s51
      %s53 = sshll.u32 [#allocation8], 4
      %s54 = int_to_ptr.vmem [resolvable:$true] %s53
      %59 = dma.hbm_to_vmem [thread:$0]  %s52, 1024, %s54, [#allocation9], 128, 128, 8
    $region25: #{improved_landmark_lstm_forward.1} parent=1 // pred_fallthru
      _
    // Predicated region
    $region26: #{improved_landmark_lstm_forward.1} parent=1 // pred_check
      _
    $region27: #{improved_landmark_lstm_forward.1} parent=1 // pred_check_branch
      %61 = sbr.rel (0) target = $region29
    $region28: #{improved_landmark_lstm_forward.1} parent=1 // pred_region
      _
    $region29: #{improved_landmark_lstm_forward.1} parent=1 // pred_fallthru
      _
    // Predicated region
    $region30: #{improved_landmark_lstm_forward.1} parent=1 // pred_check
      _
    $region31: #{improved_landmark_lstm_forward.1} parent=1 // pred_check_branch
      %63 = sbr.rel (0) target = $region33
    $region32: #{improved_landmark_lstm_forward.1} parent=1 // pred_region
      %65 = vsyncadd [#allocation9], 0
      %s66 = sshll.u32 %s7, 4
      %s67 = int_to_ptr.hbm [resolvable:$true] %s66
      %s68 = sshll.u32 [#allocation10], 4
      %s69 = int_to_ptr.vmem [resolvable:$true] %s68
      %74 = dma.hbm_to_vmem [thread:$0]  %s67, 1024, %s69, [#allocation9], 128, 128, 8
    $region33: #{improved_landmark_lstm_forward.1} parent=1 // pred_fallthru
      _
    // Predicated region
    $region34: #{improved_landmark_lstm_forward.1} parent=1 // pred_check
      _
    $region35: #{improved_landmark_lstm_forward.1} parent=1 // pred_check_branch
      %76 = sbr.rel (0) target = $region37
    $region36: #{improved_landmark_lstm_forward.1} parent=1 // pred_region
      %78 = vsyncadd [#allocation12], 0
      %s79 = sshll.u32 %s8, 4
      %s80 = int_to_ptr.hbm [resolvable:$true] %s79
      %s81 = sshll.u32 [#allocation11], 4
      %s82 = int_to_ptr.vmem [resolvable:$true] %s81
      %87 = dma.hbm_to_vmem [thread:$0]  %s80, 1024, %s82, [#allocation12], 128, 128, 8
    $region37: #{improved_landmark_lstm_forward.1} parent=1 // pred_fallthru
      _
    // Predicated region
    $region38: #{improved_landmark_lstm_forward.1} parent=1 // pred_check
      _
    $region39: #{improved_landmark_lstm_forward.1} parent=1 // pred_check_branch
      %89 = sbr.rel (0) target = $region41
    $region40: #{improved_landmark_lstm_forward.1} parent=1 // pred_region
      _
    $region41: #{improved_landmark_lstm_forward.1} parent=1 // pred_fallthru
      _
    // Predicated region
    $region42: #{improved_landmark_lstm_forward.1} parent=1 // pred_check
      _
    $region43: #{improved_landmark_lstm_forward.1} parent=1 // pred_check_branch
      %91 = sbr.rel (0) target = $region45
    $region44: #{improved_landmark_lstm_forward.1} parent=1 // pred_region
      %93 = vsyncadd [#allocation12], 0
      %s94 = sshll.u32 %s10, 4
      %s95 = int_to_ptr.hbm [resolvable:$true] %s94
      %s96 = sshll.u32 [#allocation13], 4
      %s97 = int_to_ptr.vmem [resolvable:$true] %s96
      %102 = dma.hbm_to_vmem [thread:$0]  %s95, 1024, %s97, [#allocation12], 128, 128, 8
    $region45: #{improved_landmark_lstm_forward.1} parent=1 // pred_fallthru
      _
    // Predicated region
    $region46: #{improved_landmark_lstm_forward.1} parent=1 // pred_check
      _
    $region47: #{improved_landmark_lstm_forward.1} parent=1 // pred_check_branch
      %104 = sbr.rel (0) target = $region49
    $region48: #{improved_landmark_lstm_forward.1} parent=1 // pred_region
      %106 = vsyncadd [#allocation15], 0
      %s108 = sshll.u32 %s11, 4
      %s109 = int_to_ptr.hbm [resolvable:$true] %s108
      %s110 = sshll.u32 [#allocation14], 4
      %s111 = int_to_ptr.vmem [resolvable:$true] %s110
      %113 = dma.hbm_to_vmem [thread:$0]  %s109, 32, %s111, [#allocation15]
    $region49: #{improved_landmark_lstm_forward.1} parent=1 // pred_fallthru
      _
    // Predicated region
    $region50: #{improved_landmark_lstm_forward.1} parent=1 // pred_check
      _
    $region51: #{improved_landmark_lstm_forward.1} parent=1 // pred_check_branch
      %115 = sbr.rel (0) target = $region53
    $region52: #{improved_landmark_lstm_forward.1} parent=1 // pred_region
      _
    $region53: #{improved_landmark_lstm_forward.1} parent=1 // pred_fallthru
      _
    // Predicated region
    $region54: #{improved_landmark_lstm_forward.1} parent=1 // pred_check
      _
    $region55: #{improved_landmark_lstm_forward.1} parent=1 // pred_check_branch
      %117 = sbr.rel (0) target = $region57
    $region56: #{improved_landmark_lstm_forward.1} parent=1 // pred_region
      %119 = vsyncadd [#allocation15], 0
      %s121 = sshll.u32 %s13, 4
      %s122 = int_to_ptr.hbm [resolvable:$true] %s121
      %s123 = sshll.u32 [#allocation16], 4
      %s124 = int_to_ptr.vmem [resolvable:$true] %s123
      %126 = dma.hbm_to_vmem [thread:$0]  %s122, 16, %s124, [#allocation15]
    $region57: #{improved_landmark_lstm_forward.1} parent=1 // pred_fallthru
      _
    // Predicated region
    $region58: #{improved_landmark_lstm_forward.1} parent=1 // pred_check
      _
    $region59: #{improved_landmark_lstm_forward.1} parent=1 // pred_check_branch
      %128 = sbr.rel (0) target = $region61
    $region60: #{improved_landmark_lstm_forward.1} parent=1 // pred_region
      %130 = vsyncadd [#allocation18], 0
      %s131 = sshll.u32 %s14, 4
      %s132 = int_to_ptr.hbm [resolvable:$true] %s131
      %s133 = sshll.u32 [#allocation17], 4
      %s134 = int_to_ptr.vmem [resolvable:$true] %s133
      %139 = dma.hbm_to_vmem [thread:$0]  %s132, 1024, %s134, [#allocation18], 64, 64, 4
    $region61: #{improved_landmark_lstm_forward.1} parent=1 // pred_fallthru
      _
    // Predicated region
    $region62: #{improved_landmark_lstm_forward.1} parent=1 // pred_check
      _
    $region63: #{improved_landmark_lstm_forward.1} parent=1 // pred_check_branch
      %141 = sbr.rel (0) target = $region65
    $region64: #{improved_landmark_lstm_forward.1} parent=1 // pred_region
      %143 = vsyncadd [#allocation18], 0
      %s145 = sshll.u32 %s15, 4
      %s146 = int_to_ptr.hbm [resolvable:$true] %s145
      %s147 = sshll.u32 [#allocation19], 4
      %s148 = int_to_ptr.vmem [resolvable:$true] %s147
      %150 = dma.hbm_to_vmem [thread:$0]  %s146, 16, %s148, [#allocation18]
    $region65: #{improved_landmark_lstm_forward.1} parent=1 // pred_fallthru
      _
    // Predicated region
    $region66: #{improved_landmark_lstm_forward.1} parent=1 // pred_check
      _
    $region67: #{improved_landmark_lstm_forward.1} parent=1 // pred_check_branch
      %152 = sbr.rel (0) target = $region69
    $region68: #{improved_landmark_lstm_forward.1} parent=1 // pred_region
      %154 = dma.done [#allocation7], 1024
    $region69: #{improved_landmark_lstm_forward.1} parent=1 // pred_fallthru
      _
    // Predicated region
    $region70: #{improved_landmark_lstm_forward.1} parent=1 // pred_check
      _
    $region71: #{improved_landmark_lstm_forward.1} parent=1 // pred_check_branch
      %156 = sbr.rel (0) target = $region73
    $region72: #{improved_landmark_lstm_forward.1} parent=1 // pred_region
      %158 = dma.done [#allocation9], 1024
    $region73: #{improved_landmark_lstm_forward.1} parent=1 // pred_fallthru
      _
    // Predicated region
    $region74: #{improved_landmark_lstm_forward.1} parent=1 // pred_check
      _
    $region75: #{improved_landmark_lstm_forward.1} parent=1 // pred_check_branch
      %160 = sbr.rel (0) target = $region77
    $region76: #{improved_landmark_lstm_forward.1} parent=1 // pred_region
      %162 = dma.done [#allocation9], 1024
    $region77: #{improved_landmark_lstm_forward.1} parent=1 // pred_fallthru
      _
    // Predicated region
    $region78: #{improved_landmark_lstm_forward.1} parent=1 // pred_check
      _
    $region79: #{improved_landmark_lstm_forward.1} parent=1 // pred_check_branch
      %164 = sbr.rel (0) target = $region81
    $region80: #{improved_landmark_lstm_forward.1} parent=1 // pred_region
      %166 = dma.done [#allocation12], 1024
    $region81: #{improved_landmark_lstm_forward.1} parent=1 // pred_fallthru
      _
    // Predicated region
    $region82: #{improved_landmark_lstm_forward.1} parent=1 // pred_check
      _
    $region83: #{improved_landmark_lstm_forward.1} parent=1 // pred_check_branch
      %168 = sbr.rel (0) target = $region85
    $region84: #{improved_landmark_lstm_forward.1} parent=1 // pred_region
      %170 = dma.done [#allocation12], 1024
    $region85: #{improved_landmark_lstm_forward.1} parent=1 // pred_fallthru
      _
    // Predicated region
    $region86: #{improved_landmark_lstm_forward.1} parent=1 // pred_check
      _
    $region87: #{improved_landmark_lstm_forward.1} parent=1 // pred_check_branch
      %172 = sbr.rel (0) target = $region89
    $region88: #{improved_landmark_lstm_forward.1} parent=1 // pred_region
      %174 = dma.done [#allocation15], 32
    $region89: #{improved_landmark_lstm_forward.1} parent=1 // pred_fallthru
      _
    // Predicated region
    $region90: #{improved_landmark_lstm_forward.1} parent=1 // pred_check
      _
    $region91: #{improved_landmark_lstm_forward.1} parent=1 // pred_check_branch
      %176 = sbr.rel (0) target = $region93
    $region92: #{improved_landmark_lstm_forward.1} parent=1 // pred_region
      %178 = dma.done [#allocation15], 16
    $region93: #{improved_landmark_lstm_forward.1} parent=1 // pred_fallthru
      _
    // Predicated region
    $region94: #{improved_landmark_lstm_forward.1} parent=1 // pred_check
      _
    $region95: #{improved_landmark_lstm_forward.1} parent=1 // pred_check_branch
      %180 = sbr.rel (0) target = $region97
    $region96: #{improved_landmark_lstm_forward.1} parent=1 // pred_region
      %182 = dma.done [#allocation18], 1024
    $region97: #{improved_landmark_lstm_forward.1} parent=1 // pred_fallthru
      _
    // Predicated region
    $region98: #{improved_landmark_lstm_forward.1} parent=1 // pred_check
      _
    $region99: #{improved_landmark_lstm_forward.1} parent=1 // pred_check_branch
      %184 = sbr.rel (0) target = $region101
    $region100: #{improved_landmark_lstm_forward.1} parent=1 // pred_region
      %186 = dma.done [#allocation18], 16
    $region101: #{improved_landmark_lstm_forward.1} parent=1 // pred_fallthru
      _
    %v188 = vlaneseq
    %v189 = vand.u32 %v188, 127
    %v190 = vadd.s32 %v189, 128
    %v191 = vand.u32 %v189, 63
    %v192 = vand.u32 %v190, 63
    %vm193 = vcmp.lt.s32.totalorder %v191, 32
    %vm194 = vcmp.lt.s32.totalorder %v192, 32
    %v195 = vld [vmem:[%s0] sm:$0xff]
    %v196 = vld [vmem:[%s0 + $0x8] sm:$0xff]
    %v197 = vld [vmem:[%s0 + $0x10] sm:$0xff]
    %v198 = vld [vmem:[%s0 + $0x18] sm:$0xff]
    %v199 = vld [vmem:[%s0 + $0x20] sm:$0xff]
    %v200 = vld [vmem:[%s0 + $0x28] sm:$0xff]
    %v201 = vld [vmem:[%s0 + $0x30] sm:$0xff]
    %v202 = vld [vmem:[%s0 + $0x38] sm:$0xff]
    %v203 = vpack.c.bf16 %v196, %v195
    %v204 = vpack.c.bf16 %v198, %v197
    %v205 = vpack.c.bf16 %v200, %v199
    %v206 = vpack.c.bf16 %v202, %v201
    %v207 = vld [vmem:[%s1] sm:$0xff]
    %v208 = vld [vmem:[%s1 + $0x8] sm:$0xff]
    %v209 = vld [vmem:[%s3] sm:$0x3]
    %v211 = vperm.slane %v209, 0
    %v212 = vperm.slane %v209, 1
    %v217 = vunpack.c.l.b16 %v207
    %v218 = vunpack.c.h.b16 %v207
    %v219 = vunpack.c.l.b16 %v208
    %v220 = vunpack.c.h.b16 %v208
    %v221 = vpack.c.b16 %v219, %v217
    %v222 = vpack.c.b16 %v220, %v218
    %vm225 = vcmask 130048
    %v227 = vsel %vm225, %v203, 0
    %v230 = vsel %vm225, %v204, 0
    %v233 = vsel %vm225, %v205, 0
    %v236 = vsel %vm225, %v206, 0
    %238 = vmatpush.bf16.msra.mxu0 0
    %239 = vmatpush.bf16.msra.mxu0 0
    %240 = vmatpush.bf16.msra.mxu0 0
    %241 = vmatpush.bf16.msra.mxu0 0
    %242 = vmatpush.bf16.msra.mxu0 0
    %243 = vmatpush.bf16.msra.mxu0 0
    %244 = vmatpush.bf16.msra.mxu0 0
    %245 = vmatpush.bf16.msra.mxu0 %v221
    %246 = vmatmul.bf16.gmra.mxu0 %v227
    %v247 = vpop.f32.mrf.mxu0
    %v248 = vadd.f32 %v211, %v247
    %v249 = vpop.f32.mrf.mxu0
    %v250 = vadd.f32 %v211, %v249
    %251 = vmatmul.bf16.gmra.mxu0 %v230
    %v252 = vpop.f32.mrf.mxu0
    %v253 = vadd.f32 %v211, %v252
    %v254 = vpop.f32.mrf.mxu0
    %v255 = vadd.f32 %v211, %v254
    %256 = vmatmul.bf16.gmra.mxu0 %v233
    %v257 = vpop.f32.mrf.mxu0
    %v258 = vadd.f32 %v211, %v257
    %v259 = vpop.f32.mrf.mxu0
    %v260 = vadd.f32 %v211, %v259
    %261 = vmatmul.bf16.gmra.mxu0 %v236
    %v262 = vpop.f32.mrf.mxu0
    %v263 = vadd.f32 %v211, %v262
    %v264 = vpop.f32.mrf.mxu0
    %v265 = vadd.f32 %v211, %v264
    %266 = vdwg.mxu0
    %267 = vmatpush.bf16.msra.mxu0 0
    %268 = vmatpush.bf16.msra.mxu0 0
    %269 = vmatpush.bf16.msra.mxu0 0
    %270 = vmatpush.bf16.msra.mxu0 0
    %271 = vmatpush.bf16.msra.mxu0 0
    %272 = vmatpush.bf16.msra.mxu0 0
    %273 = vmatpush.bf16.msra.mxu0 0
    %274 = vmatpush.bf16.msra.mxu0 %v222
    %275 = vmatmul.bf16.gmra.mxu0 %v227
    %v276 = vpop.f32.mrf.mxu0
    %v277 = vadd.f32 %v212, %v276
    %v278 = vpop.f32.mrf.mxu0
    %v279 = vadd.f32 %v212, %v278
    %280 = vmatmul.bf16.gmra.mxu0 %v230
    %v281 = vpop.f32.mrf.mxu0
    %v282 = vadd.f32 %v212, %v281
    %v283 = vpop.f32.mrf.mxu0
    %v284 = vadd.f32 %v212, %v283
    %285 = vmatmul.bf16.gmra.mxu0 %v233
    %v286 = vpop.f32.mrf.mxu0
    %v287 = vadd.f32 %v212, %v286
    %v288 = vpop.f32.mrf.mxu0
    %v289 = vadd.f32 %v212, %v288
    %290 = vmatmul.bf16.gmra.mxu0 %v236
    %v291 = vpop.f32.mrf.mxu0
    %v292 = vadd.f32 %v212, %v291
    %v293 = vpop.f32.mrf.mxu0
    %v294 = vadd.f32 %v212, %v293
    %295 = vdwg.mxu0
    %v296 = vsel %vm193, %v248, %v265
    %v297 = vsel %vm194, %v277, %v294
    %v298 = vsel %vm193, %v250, %v263
    %v299 = vsel %vm194, %v279, %v292
    %v300 = vsel %vm193, %v253, %v260
    %v301 = vsel %vm194, %v282, %v289
    %v302 = vsel %vm193, %v255, %v258
    %v303 = vsel %vm194, %v284, %v287
    %v304 = vsel %vm193, %v258, %v255
    %v305 = vsel %vm194, %v287, %v284
    %v306 = vsel %vm193, %v260, %v253
    %v307 = vsel %vm194, %v289, %v282
    %v308 = vsel %vm193, %v263, %v250
    %v309 = vsel %vm194, %v292, %v279
    %v310 = vsel %vm193, %v265, %v248
    %v311 = vsel %vm194, %v294, %v277
    %v312 = vld [vmem:[%s2] sm:$0xff]
    %v313 = vld [vmem:[%s2 + $0x8] sm:$0xff]
    %v314 = vld [vmem:[%s2 + $0x10] sm:$0xff]
    %v315 = vld [vmem:[%s2 + $0x18] sm:$0xff]
    %v316 = vld [vmem:[%s2 + $0x20] sm:$0xff]
    %v317 = vld [vmem:[%s2 + $0x28] sm:$0xff]
    %v318 = vld [vmem:[%s2 + $0x30] sm:$0xff]
    %v319 = vld [vmem:[%s2 + $0x38] sm:$0xff]
    %v328 = vunpack.c.l.b16 %v312
    %v329 = vunpack.c.h.b16 %v312
    %v330 = vunpack.c.l.b16 %v313
    %v331 = vunpack.c.h.b16 %v313
    %v332 = vunpack.c.l.b16 %v314
    %v333 = vunpack.c.h.b16 %v314
    %v334 = vunpack.c.l.b16 %v315
    %v335 = vunpack.c.h.b16 %v315
    %v336 = vunpack.c.l.b16 %v316
    %v337 = vunpack.c.h.b16 %v316
    %v338 = vunpack.c.l.b16 %v317
    %v339 = vunpack.c.h.b16 %v317
    %v340 = vunpack.c.l.b16 %v318
    %v341 = vunpack.c.h.b16 %v318
    %v342 = vunpack.c.l.b16 %v319
    %v343 = vunpack.c.h.b16 %v319
    %v344 = vpack.c.b16 %v330, %v328
    %v345 = vpack.c.b16 %v331, %v329
    %v346 = vpack.c.b16 %v334, %v332
    %v347 = vpack.c.b16 %v335, %v333
    %v348 = vpack.c.b16 %v338, %v336
    %v349 = vpack.c.b16 %v339, %v337
    %v350 = vpack.c.b16 %v342, %v340
    %v351 = vpack.c.b16 %v343, %v341
    %vm360 = vcmask 523264
    %v362 = vsel %vm360, 0, 0
    %364 = vmatpush.bf16.msra.mxu0 0
    %365 = vmatpush.bf16.msra.mxu0 0
    %366 = vmatpush.bf16.msra.mxu0 0
    %367 = vmatpush.bf16.msra.mxu0 0
    %368 = vmatpush.bf16.msra.mxu0 %v350
    %369 = vmatpush.bf16.msra.mxu0 %v348
    %370 = vmatpush.bf16.msra.mxu0 %v346
    %371 = vmatpush.bf16.msra.mxu0 %v344
    %372 = vmatmul.bf16.gmra.mxu0 %v362
    %v373 = vpop.f32.mrf.mxu0
    %v374 = vadd.f32 0.0, %v373
    %v375 = vpop.f32.mrf.mxu0
    %376 = vdwg.mxu0
    %377 = vmatpush.bf16.msra.mxu0 0
    %378 = vmatpush.bf16.msra.mxu0 0
    %379 = vmatpush.bf16.msra.mxu0 0
    %380 = vmatpush.bf16.msra.mxu0 0
    %381 = vmatpush.bf16.msra.mxu0 %v351
    %382 = vmatpush.bf16.msra.mxu0 %v349
    %383 = vmatpush.bf16.msra.mxu0 %v347
    %384 = vmatpush.bf16.msra.mxu0 %v345
    %385 = vmatmul.bf16.gmra.mxu0 %v362
    %v386 = vpop.f32.mrf.mxu0
    %v387 = vadd.f32 0.0, %v386
    %v388 = vpop.f32.mrf.mxu0
    %389 = vdwg.mxu0
    %v390 = vadd.f32 %v296, %v374
    %v391 = vadd.f32 %v297, %v387
    %v392 = vmul.f32 %v390, 0.5
    %v393 = vtanh.pop %v392
    %v394 = vadd.f32 %v393, 1.0
    %v395 = vmul.f32 %v394, 0.5
    %v396 = vtanh.pop %v391
    %v397 = vmul.f32 %v391, 0.5
    %v398 = vtanh.pop %v397
    %v399 = vadd.f32 %v398, 1.0
    %v400 = vmul.f32 %v399, 0.5
    %v401 = vmul.f32 %v395, 0.0
    %v402 = vmul.f32 %v395, %v396
    %404 = vrot.lane.b32.xlu0 %v402, 64
    %v405 = vpop.permute.xlu0 %404
    %v407 = vadd.f32 %v401, %v405
    %v408 = vtanh.pop %v407
    %v409 = vmul.f32 %v400, %v408
    %411 = vrot.lane.b32.xlu0 %v409, 64
    %v412 = vpop.permute.xlu0 %411
    %vm414 = vcmask 261120
    %415 = vst.msk [vmem:[#allocation2] sm:$0xff] %vm414, %v412
    %416 = vrot.lane.b32.xlu0 %v409, 32
    %v417 = vpop.permute.xlu0 %416
    %419 = vst.msk [vmem:[#allocation3 + $0x38] sm:$0xff] %vm414, %v417
    %v420 = vpack.c.bf16 %v409, %v409
    %422 = vrot.lane.b32.xlu0 %v420, 64
    %v423 = vpop.permute.xlu0 %422
    %v425 = vsel %vm360, %v423, 0
    %427 = vmatpush.bf16.msra.mxu0 0
    %428 = vmatpush.bf16.msra.mxu0 0
    %429 = vmatpush.bf16.msra.mxu0 0
    %430 = vmatpush.bf16.msra.mxu0 0
    %431 = vmatpush.bf16.msra.mxu0 %v350
    %432 = vmatpush.bf16.msra.mxu0 %v348
    %433 = vmatpush.bf16.msra.mxu0 %v346
    %434 = vmatpush.bf16.msra.mxu0 %v344
    %435 = vmatmul.bf16.gmra.mxu0 %v425
    %v436 = vpop.f32.mrf.mxu0
    %v437 = vadd.f32 0.0, %v436
    %v438 = vpop.f32.mrf.mxu0
    %439 = vdwg.mxu0
    %440 = vmatpush.bf16.msra.mxu0 0
    %441 = vmatpush.bf16.msra.mxu0 0
    %442 = vmatpush.bf16.msra.mxu0 0
    %443 = vmatpush.bf16.msra.mxu0 0
    %444 = vmatpush.bf16.msra.mxu0 %v351
    %445 = vmatpush.bf16.msra.mxu0 %v349
    %446 = vmatpush.bf16.msra.mxu0 %v347
    %447 = vmatpush.bf16.msra.mxu0 %v345
    %448 = vmatmul.bf16.gmra.mxu0 %v425
    %v449 = vpop.f32.mrf.mxu0
    %v450 = vadd.f32 0.0, %v449
    %v451 = vpop.f32.mrf.mxu0
    %452 = vdwg.mxu0
    %v453 = vadd.f32 %v298, %v437
    %v454 = vadd.f32 %v299, %v450
    %v455 = vmul.f32 %v453, 0.5
    %v456 = vtanh.pop %v455
    %v457 = vadd.f32 %v456, 1.0
    %v458 = vmul.f32 %v457, 0.5
    %v459 = vtanh.pop %v454
    %v460 = vmul.f32 %v454, 0.5
    %v461 = vtanh.pop %v460
    %v462 = vadd.f32 %v461, 1.0
    %v463 = vmul.f32 %v462, 0.5
    %v464 = vmul.f32 %v458, %v407
    %v465 = vmul.f32 %v458, %v459
    %467 = vrot.lane.b32.xlu0 %v465, 64
    %v468 = vpop.permute.xlu0 %467
    %v470 = vadd.f32 %v464, %v468
    %v471 = vtanh.pop %v470
    %v472 = vmul.f32 %v463, %v471
    %474 = vrot.lane.b32.xlu0 %v472, 64
    %v475 = vpop.permute.xlu0 %474
    %477 = vst.msk [vmem:[#allocation2 + $0x8] sm:$0xff] %vm414, %v475
    %478 = vrot.lane.b32.xlu0 %v472, 32
    %v479 = vpop.permute.xlu0 %478
    %481 = vst.msk [vmem:[#allocation3 + $0x30] sm:$0xff] %vm414, %v479
    %v482 = vpack.c.bf16 %v472, %v472
    %484 = vrot.lane.b32.xlu0 %v482, 64
    %v485 = vpop.permute.xlu0 %484
    %v487 = vsel %vm360, %v485, 0
    %489 = vmatpush.bf16.msra.mxu0 0
    %490 = vmatpush.bf16.msra.mxu0 0
    %491 = vmatpush.bf16.msra.mxu0 0
    %492 = vmatpush.bf16.msra.mxu0 0
    %493 = vmatpush.bf16.msra.mxu0 %v350
    %494 = vmatpush.bf16.msra.mxu0 %v348
    %495 = vmatpush.bf16.msra.mxu0 %v346
    %496 = vmatpush.bf16.msra.mxu0 %v344
    %497 = vmatmul.bf16.gmra.mxu0 %v487
    %v498 = vpop.f32.mrf.mxu0
    %v499 = vadd.f32 0.0, %v498
    %v500 = vpop.f32.mrf.mxu0
    %501 = vdwg.mxu0
    %502 = vmatpush.bf16.msra.mxu0 0
    %503 = vmatpush.bf16.msra.mxu0 0
    %504 = vmatpush.bf16.msra.mxu0 0
    %505 = vmatpush.bf16.msra.mxu0 0
    %506 = vmatpush.bf16.msra.mxu0 %v351
    %507 = vmatpush.bf16.msra.mxu0 %v349
    %508 = vmatpush.bf16.msra.mxu0 %v347
    %509 = vmatpush.bf16.msra.mxu0 %v345
    %510 = vmatmul.bf16.gmra.mxu0 %v487
    %v511 = vpop.f32.mrf.mxu0
    %v512 = vadd.f32 0.0, %v511
    %v513 = vpop.f32.mrf.mxu0
    %514 = vdwg.mxu0
    %v515 = vadd.f32 %v300, %v499
    %v516 = vadd.f32 %v301, %v512
    %v517 = vmul.f32 %v515, 0.5
    %v518 = vtanh.pop %v517
    %v519 = vadd.f32 %v518, 1.0
    %v520 = vmul.f32 %v519, 0.5
    %v521 = vtanh.pop %v516
    %v522 = vmul.f32 %v516, 0.5
    %v523 = vtanh.pop %v522
    %v524 = vadd.f32 %v523, 1.0
    %v525 = vmul.f32 %v524, 0.5
    %v526 = vmul.f32 %v520, %v470
    %v527 = vmul.f32 %v520, %v521
    %529 = vrot.lane.b32.xlu0 %v527, 64
    %v530 = vpop.permute.xlu0 %529
    %v532 = vadd.f32 %v526, %v530
    %v533 = vtanh.pop %v532
    %v534 = vmul.f32 %v525, %v533
    %536 = vrot.lane.b32.xlu0 %v534, 64
    %v537 = vpop.permute.xlu0 %536
    %539 = vst.msk [vmem:[#allocation2 + $0x10] sm:$0xff] %vm414, %v537
    %540 = vrot.lane.b32.xlu0 %v534, 32
    %v541 = vpop.permute.xlu0 %540
    %543 = vst.msk [vmem:[#allocation3 + $0x28] sm:$0xff] %vm414, %v541
    %v544 = vpack.c.bf16 %v534, %v534
    %546 = vrot.lane.b32.xlu0 %v544, 64
    %v547 = vpop.permute.xlu0 %546
    %v549 = vsel %vm360, %v547, 0
    %551 = vmatpush.bf16.msra.mxu0 0
    %552 = vmatpush.bf16.msra.mxu0 0
    %553 = vmatpush.bf16.msra.mxu0 0
    %554 = vmatpush.bf16.msra.mxu0 0
    %555 = vmatpush.bf16.msra.mxu0 %v350
    %556 = vmatpush.bf16.msra.mxu0 %v348
    %557 = vmatpush.bf16.msra.mxu0 %v346
    %558 = vmatpush.bf16.msra.mxu0 %v344
    %559 = vmatmul.bf16.gmra.mxu0 %v549
    %v560 = vpop.f32.mrf.mxu0
    %v561 = vadd.f32 0.0, %v560
    %v562 = vpop.f32.mrf.mxu0
    %563 = vdwg.mxu0
    %564 = vmatpush.bf16.msra.mxu0 0
    %565 = vmatpush.bf16.msra.mxu0 0
    %566 = vmatpush.bf16.msra.mxu0 0
    %567 = vmatpush.bf16.msra.mxu0 0
    %568 = vmatpush.bf16.msra.mxu0 %v351
    %569 = vmatpush.bf16.msra.mxu0 %v349
    %570 = vmatpush.bf16.msra.mxu0 %v347
    %571 = vmatpush.bf16.msra.mxu0 %v345
    %572 = vmatmul.bf16.gmra.mxu0 %v549
    %v573 = vpop.f32.mrf.mxu0
    %v574 = vadd.f32 0.0, %v573
    %v575 = vpop.f32.mrf.mxu0
    %576 = vdwg.mxu0
    %v577 = vadd.f32 %v302, %v561
    %v578 = vadd.f32 %v303, %v574
    %v579 = vmul.f32 %v577, 0.5
    %v580 = vtanh.pop %v579
    %v581 = vadd.f32 %v580, 1.0
    %v582 = vmul.f32 %v581, 0.5
    %v583 = vtanh.pop %v578
    %v584 = vmul.f32 %v578, 0.5
    %v585 = vtanh.pop %v584
    %v586 = vadd.f32 %v585, 1.0
    %v587 = vmul.f32 %v586, 0.5
    %v588 = vmul.f32 %v582, %v532
    %v589 = vmul.f32 %v582, %v583
    %591 = vrot.lane.b32.xlu0 %v589, 64
    %v592 = vpop.permute.xlu0 %591
    %v594 = vadd.f32 %v588, %v592
    %v595 = vtanh.pop %v594
    %v596 = vmul.f32 %v587, %v595
    %598 = vrot.lane.b32.xlu0 %v596, 64
    %v599 = vpop.permute.xlu0 %598
    %601 = vst.msk [vmem:[#allocation2 + $0x18] sm:$0xff] %vm414, %v599
    %602 = vrot.lane.b32.xlu0 %v596, 32
    %v603 = vpop.permute.xlu0 %602
    %605 = vst.msk [vmem:[#allocation3 + $0x20] sm:$0xff] %vm414, %v603
    %v606 = vpack.c.bf16 %v596, %v596
    %608 = vrot.lane.b32.xlu0 %v606, 64
    %v609 = vpop.permute.xlu0 %608
    %v611 = vsel %vm360, %v609, 0
    %613 = vmatpush.bf16.msra.mxu0 0
    %614 = vmatpush.bf16.msra.mxu0 0
    %615 = vmatpush.bf16.msra.mxu0 0
    %616 = vmatpush.bf16.msra.mxu0 0
    %617 = vmatpush.bf16.msra.mxu0 %v350
    %618 = vmatpush.bf16.msra.mxu0 %v348
    %619 = vmatpush.bf16.msra.mxu0 %v346
    %620 = vmatpush.bf16.msra.mxu0 %v344
    %621 = vmatmul.bf16.gmra.mxu0 %v611
    %v622 = vpop.f32.mrf.mxu0
    %v623 = vadd.f32 0.0, %v622
    %v624 = vpop.f32.mrf.mxu0
    %625 = vdwg.mxu0
    %626 = vmatpush.bf16.msra.mxu0 0
    %627 = vmatpush.bf16.msra.mxu0 0
    %628 = vmatpush.bf16.msra.mxu0 0
    %629 = vmatpush.bf16.msra.mxu0 0
    %630 = vmatpush.bf16.msra.mxu0 %v351
    %631 = vmatpush.bf16.msra.mxu0 %v349
    %632 = vmatpush.bf16.msra.mxu0 %v347
    %633 = vmatpush.bf16.msra.mxu0 %v345
    %634 = vmatmul.bf16.gmra.mxu0 %v611
    %v635 = vpop.f32.mrf.mxu0
    %v636 = vadd.f32 0.0, %v635
    %v637 = vpop.f32.mrf.mxu0
    %638 = vdwg.mxu0
    %v639 = vadd.f32 %v304, %v623
    %v640 = vadd.f32 %v305, %v636
    %v641 = vmul.f32 %v639, 0.5
    %v642 = vtanh.pop %v641
    %v643 = vadd.f32 %v642, 1.0
    %v644 = vmul.f32 %v643, 0.5
    %v645 = vtanh.pop %v640
    %v646 = vmul.f32 %v640, 0.5
    %v647 = vtanh.pop %v646
    %v648 = vadd.f32 %v647, 1.0
    %v649 = vmul.f32 %v648, 0.5
    %v650 = vmul.f32 %v644, %v594
    %v651 = vmul.f32 %v644, %v645
    %653 = vrot.lane.b32.xlu0 %v651, 64
    %v654 = vpop.permute.xlu0 %653
    %v656 = vadd.f32 %v650, %v654
    %v657 = vtanh.pop %v656
    %v658 = vmul.f32 %v649, %v657
    %660 = vrot.lane.b32.xlu0 %v658, 64
    %v661 = vpop.permute.xlu0 %660
    %663 = vst.msk [vmem:[#allocation2 + $0x20] sm:$0xff] %vm414, %v661
    %664 = vrot.lane.b32.xlu0 %v658, 32
    %v665 = vpop.permute.xlu0 %664
    %667 = vst.msk [vmem:[#allocation3 + $0x18] sm:$0xff] %vm414, %v665
    %v668 = vpack.c.bf16 %v658, %v658
    %670 = vrot.lane.b32.xlu0 %v668, 64
    %v671 = vpop.permute.xlu0 %670
    %v673 = vsel %vm360, %v671, 0
    %675 = vmatpush.bf16.msra.mxu0 0
    %676 = vmatpush.bf16.msra.mxu0 0
    %677 = vmatpush.bf16.msra.mxu0 0
    %678 = vmatpush.bf16.msra.mxu0 0
    %679 = vmatpush.bf16.msra.mxu0 %v350
    %680 = vmatpush.bf16.msra.mxu0 %v348
    %681 = vmatpush.bf16.msra.mxu0 %v346
    %682 = vmatpush.bf16.msra.mxu0 %v344
    %683 = vmatmul.bf16.gmra.mxu0 %v673
    %v684 = vpop.f32.mrf.mxu0
    %v685 = vadd.f32 0.0, %v684
    %v686 = vpop.f32.mrf.mxu0
    %687 = vdwg.mxu0
    %688 = vmatpush.bf16.msra.mxu0 0
    %689 = vmatpush.bf16.msra.mxu0 0
    %690 = vmatpush.bf16.msra.mxu0 0
    %691 = vmatpush.bf16.msra.mxu0 0
    %692 = vmatpush.bf16.msra.mxu0 %v351
    %693 = vmatpush.bf16.msra.mxu0 %v349
    %694 = vmatpush.bf16.msra.mxu0 %v347
    %695 = vmatpush.bf16.msra.mxu0 %v345
    %696 = vmatmul.bf16.gmra.mxu0 %v673
    %v697 = vpop.f32.mrf.mxu0
    %v698 = vadd.f32 0.0, %v697
    %v699 = vpop.f32.mrf.mxu0
    %700 = vdwg.mxu0
    %v701 = vadd.f32 %v306, %v685
    %v702 = vadd.f32 %v307, %v698
    %v703 = vmul.f32 %v701, 0.5
    %v704 = vtanh.pop %v703
    %v705 = vadd.f32 %v704, 1.0
    %v706 = vmul.f32 %v705, 0.5
    %v707 = vtanh.pop %v702
    %v708 = vmul.f32 %v702, 0.5
    %v709 = vtanh.pop %v708
    %v710 = vadd.f32 %v709, 1.0
    %v711 = vmul.f32 %v710, 0.5
    %v712 = vmul.f32 %v706, %v656
    %v713 = vmul.f32 %v706, %v707
    %715 = vrot.lane.b32.xlu0 %v713, 64
    %v716 = vpop.permute.xlu0 %715
    %v718 = vadd.f32 %v712, %v716
    %v719 = vtanh.pop %v718
    %v720 = vmul.f32 %v711, %v719
    %722 = vrot.lane.b32.xlu0 %v720, 64
    %v723 = vpop.permute.xlu0 %722
    %725 = vst.msk [vmem:[#allocation2 + $0x28] sm:$0xff] %vm414, %v723
    %726 = vrot.lane.b32.xlu0 %v720, 32
    %v727 = vpop.permute.xlu0 %726
    %729 = vst.msk [vmem:[#allocation3 + $0x10] sm:$0xff] %vm414, %v727
    %v730 = vpack.c.bf16 %v720, %v720
    %732 = vrot.lane.b32.xlu0 %v730, 64
    %v733 = vpop.permute.xlu0 %732
    %v735 = vsel %vm360, %v733, 0
    %737 = vmatpush.bf16.msra.mxu0 0
    %738 = vmatpush.bf16.msra.mxu0 0
    %739 = vmatpush.bf16.msra.mxu0 0
    %740 = vmatpush.bf16.msra.mxu0 0
    %741 = vmatpush.bf16.msra.mxu0 %v350
    %742 = vmatpush.bf16.msra.mxu0 %v348
    %743 = vmatpush.bf16.msra.mxu0 %v346
    %744 = vmatpush.bf16.msra.mxu0 %v344
    %745 = vmatmul.bf16.gmra.mxu0 %v735
    %v746 = vpop.f32.mrf.mxu0
    %v747 = vadd.f32 0.0, %v746
    %v748 = vpop.f32.mrf.mxu0
    %749 = vdwg.mxu0
    %750 = vmatpush.bf16.msra.mxu0 0
    %751 = vmatpush.bf16.msra.mxu0 0
    %752 = vmatpush.bf16.msra.mxu0 0
    %753 = vmatpush.bf16.msra.mxu0 0
    %754 = vmatpush.bf16.msra.mxu0 %v351
    %755 = vmatpush.bf16.msra.mxu0 %v349
    %756 = vmatpush.bf16.msra.mxu0 %v347
    %757 = vmatpush.bf16.msra.mxu0 %v345
    %758 = vmatmul.bf16.gmra.mxu0 %v735
    %v759 = vpop.f32.mrf.mxu0
    %v760 = vadd.f32 0.0, %v759
    %v761 = vpop.f32.mrf.mxu0
    %762 = vdwg.mxu0
    %v763 = vadd.f32 %v308, %v747
    %v764 = vadd.f32 %v309, %v760
    %v765 = vmul.f32 %v763, 0.5
    %v766 = vtanh.pop %v765
    %v767 = vadd.f32 %v766, 1.0
    %v768 = vmul.f32 %v767, 0.5
    %v769 = vtanh.pop %v764
    %v770 = vmul.f32 %v764, 0.5
    %v771 = vtanh.pop %v770
    %v772 = vadd.f32 %v771, 1.0
    %v773 = vmul.f32 %v772, 0.5
    %v774 = vmul.f32 %v768, %v718
    %v775 = vmul.f32 %v768, %v769
    %777 = vrot.lane.b32.xlu0 %v775, 64
    %v778 = vpop.permute.xlu0 %777
    %v780 = vadd.f32 %v774, %v778
    %v781 = vtanh.pop %v780
    %v782 = vmul.f32 %v773, %v781
    %784 = vrot.lane.b32.xlu0 %v782, 64
    %v785 = vpop.permute.xlu0 %784
    %787 = vst.msk [vmem:[#allocation2 + $0x30] sm:$0xff] %vm414, %v785
    %788 = vrot.lane.b32.xlu0 %v782, 32
    %v789 = vpop.permute.xlu0 %788
    %791 = vst.msk [vmem:[#allocation3 + $0x8] sm:$0xff] %vm414, %v789
    %v792 = vpack.c.bf16 %v782, %v782
    %794 = vrot.lane.b32.xlu0 %v792, 64
    %v795 = vpop.permute.xlu0 %794
    %v797 = vsel %vm360, %v795, 0
    %799 = vmatpush.bf16.msra.mxu0 0
    %800 = vmatpush.bf16.msra.mxu0 0
    %801 = vmatpush.bf16.msra.mxu0 0
    %802 = vmatpush.bf16.msra.mxu0 0
    %803 = vmatpush.bf16.msra.mxu0 %v350
    %804 = vmatpush.bf16.msra.mxu0 %v348
    %805 = vmatpush.bf16.msra.mxu0 %v346
    %806 = vmatpush.bf16.msra.mxu0 %v344
    %807 = vmatmul.bf16.gmra.mxu0 %v797
    %v808 = vpop.f32.mrf.mxu0
    %v809 = vadd.f32 0.0, %v808
    %v810 = vpop.f32.mrf.mxu0
    %811 = vdwg.mxu0
    %812 = vmatpush.bf16.msra.mxu0 0
    %813 = vmatpush.bf16.msra.mxu0 0
    %814 = vmatpush.bf16.msra.mxu0 0
    %815 = vmatpush.bf16.msra.mxu0 0
    %816 = vmatpush.bf16.msra.mxu0 %v351
    %817 = vmatpush.bf16.msra.mxu0 %v349
    %818 = vmatpush.bf16.msra.mxu0 %v347
    %819 = vmatpush.bf16.msra.mxu0 %v345
    %820 = vmatmul.bf16.gmra.mxu0 %v797
    %v821 = vpop.f32.mrf.mxu0
    %v822 = vadd.f32 0.0, %v821
    %v823 = vpop.f32.mrf.mxu0
    %824 = vdwg.mxu0
    %v825 = vadd.f32 %v310, %v809
    %v826 = vadd.f32 %v311, %v822
    %v827 = vmul.f32 %v825, 0.5
    %v828 = vtanh.pop %v827
    %v829 = vadd.f32 %v828, 1.0
    %v830 = vmul.f32 %v829, 0.5
    %v831 = vtanh.pop %v826
    %v832 = vmul.f32 %v826, 0.5
    %v833 = vtanh.pop %v832
    %v834 = vadd.f32 %v833, 1.0
    %v835 = vmul.f32 %v834, 0.5
    %v836 = vmul.f32 %v830, %v780
    %v837 = vmul.f32 %v830, %v831
    %839 = vrot.lane.b32.xlu0 %v837, 64
    %v840 = vpop.permute.xlu0 %839
    %v842 = vadd.f32 %v836, %v840
    %v843 = vtanh.pop %v842
    %v844 = vmul.f32 %v835, %v843
    %846 = vrot.lane.b32.xlu0 %v844, 64
    %v847 = vpop.permute.xlu0 %846
    %849 = vst.msk [vmem:[#allocation2 + $0x38] sm:$0xff] %vm414, %v847
    %850 = vrot.lane.b32.xlu0 %v844, 32
    %v851 = vpop.permute.xlu0 %850
    %853 = vst.msk [vmem:[#allocation3] sm:$0xff] %vm414, %v851
    %v854 = vld [vmem:[#allocation6] sm:$0xff]
    %v855 = vld [vmem:[#allocation6 + $0x8] sm:$0xff]
    %v856 = vld [vmem:[#allocation6 + $0x10] sm:$0xff]
    %v857 = vld [vmem:[#allocation6 + $0x18] sm:$0xff]
    %v858 = vld [vmem:[#allocation6 + $0x20] sm:$0xff]
    %v859 = vld [vmem:[#allocation6 + $0x28] sm:$0xff]
    %v860 = vld [vmem:[#allocation6 + $0x30] sm:$0xff]
    %v861 = vld [vmem:[#allocation6 + $0x38] sm:$0xff]
    %v862 = vld [vmem:[#allocation2] sm:$0xff]
    %v863 = vld [vmem:[#allocation2 + $0x8] sm:$0xff]
    %v864 = vld [vmem:[#allocation2 + $0x10] sm:$0xff]
    %v865 = vld [vmem:[#allocation2 + $0x18] sm:$0xff]
    %v866 = vld [vmem:[#allocation2 + $0x20] sm:$0xff]
    %v867 = vld [vmem:[#allocation2 + $0x28] sm:$0xff]
    %v868 = vld [vmem:[#allocation2 + $0x30] sm:$0xff]
    %v869 = vld [vmem:[#allocation2 + $0x38] sm:$0xff]
    %v870 = vpack.c.bf16 %v863, %v862
    %v871 = vpack.c.bf16 %v865, %v864
    %v872 = vpack.c.bf16 %v867, %v866
    %v873 = vpack.c.bf16 %v869, %v868
    %v874 = vld [vmem:[#allocation3] sm:$0xff]
    %v875 = vld [vmem:[#allocation3 + $0x8] sm:$0xff]
    %v876 = vld [vmem:[#allocation3 + $0x10] sm:$0xff]
    %v877 = vld [vmem:[#allocation3 + $0x18] sm:$0xff]
    %v878 = vld [vmem:[#allocation3 + $0x20] sm:$0xff]
    %v879 = vld [vmem:[#allocation3 + $0x28] sm:$0xff]
    %v880 = vld [vmem:[#allocation3 + $0x30] sm:$0xff]
    %v881 = vld [vmem:[#allocation3 + $0x38] sm:$0xff]
    %v882 = vpack.c.bf16 %v875, %v874
    %v883 = vpack.c.bf16 %v877, %v876
    %v884 = vpack.c.bf16 %v879, %v878
    %v885 = vpack.c.bf16 %v881, %v880
    %v890 = vunpack.c.l.b16 %v858
    %v891 = vunpack.c.h.b16 %v858
    %v892 = vunpack.c.l.b16 %v859
    %v893 = vunpack.c.h.b16 %v859
    %v894 = vunpack.c.l.b16 %v860
    %v895 = vunpack.c.h.b16 %v860
    %v896 = vunpack.c.l.b16 %v861
    %v897 = vunpack.c.h.b16 %v861
    %v898 = vpack.c.b16 %v892, %v890
    %v899 = vpack.c.b16 %v893, %v891
    %v900 = vpack.c.b16 %v896, %v894
    %v901 = vpack.c.b16 %v897, %v895
    %v907 = vsel %vm414, %v882, 0
    %v910 = vsel %vm414, %v883, 0
    %v913 = vsel %vm414, %v884, 0
    %v916 = vsel %vm414, %v885, 0
    %918 = vmatpush.bf16.msra.mxu0 0
    %919 = vmatpush.bf16.msra.mxu0 0
    %920 = vmatpush.bf16.msra.mxu0 0
    %921 = vmatpush.bf16.msra.mxu0 0
    %922 = vmatpush.bf16.msra.mxu0 0
    %923 = vmatpush.bf16.msra.mxu0 0
    %924 = vmatpush.bf16.msra.mxu0 %v900
    %925 = vmatpush.bf16.msra.mxu0 %v898
    %926 = vmatmul.bf16.gmra.mxu0 %v907
    %v927 = vpop.f32.mrf.mxu0
    %v928 = vadd.f32 0.0, %v927
    %v929 = vpop.f32.mrf.mxu0
    %v930 = vadd.f32 0.0, %v929
    %931 = vmatmul.bf16.gmra.mxu0 %v910
    %v932 = vpop.f32.mrf.mxu0
    %v933 = vadd.f32 0.0, %v932
    %v934 = vpop.f32.mrf.mxu0
    %v935 = vadd.f32 0.0, %v934
    %936 = vmatmul.bf16.gmra.mxu0 %v913
    %v937 = vpop.f32.mrf.mxu0
    %v938 = vadd.f32 0.0, %v937
    %v939 = vpop.f32.mrf.mxu0
    %v940 = vadd.f32 0.0, %v939
    %941 = vmatmul.bf16.gmra.mxu0 %v916
    %v942 = vpop.f32.mrf.mxu0
    %v943 = vadd.f32 0.0, %v942
    %v944 = vpop.f32.mrf.mxu0
    %v945 = vadd.f32 0.0, %v944
    %946 = vdwg.mxu0
    %947 = vmatpush.bf16.msra.mxu0 0
    %948 = vmatpush.bf16.msra.mxu0 0
    %949 = vmatpush.bf16.msra.mxu0 0
    %950 = vmatpush.bf16.msra.mxu0 0
    %951 = vmatpush.bf16.msra.mxu0 0
    %952 = vmatpush.bf16.msra.mxu0 0
    %953 = vmatpush.bf16.msra.mxu0 %v901
    %954 = vmatpush.bf16.msra.mxu0 %v899
    %955 = vmatmul.bf16.gmra.mxu0 %v907
    %v956 = vpop.f32.mrf.mxu0
    %v957 = vadd.f32 0.0, %v956
    %v958 = vpop.f32.mrf.mxu0
    %v959 = vadd.f32 0.0, %v958
    %960 = vmatmul.bf16.gmra.mxu0 %v910
    %v961 = vpop.f32.mrf.mxu0
    %v962 = vadd.f32 0.0, %v961
    %v963 = vpop.f32.mrf.mxu0
    %v964 = vadd.f32 0.0, %v963
    %965 = vmatmul.bf16.gmra.mxu0 %v913
    %v966 = vpop.f32.mrf.mxu0
    %v967 = vadd.f32 0.0, %v966
    %v968 = vpop.f32.mrf.mxu0
    %v969 = vadd.f32 0.0, %v968
    %970 = vmatmul.bf16.gmra.mxu0 %v916
    %v971 = vpop.f32.mrf.mxu0
    %v972 = vadd.f32 0.0, %v971
    %v973 = vpop.f32.mrf.mxu0
    %v974 = vadd.f32 0.0, %v973
    %975 = vdwg.mxu0
    %v980 = vunpack.c.l.b16 %v854
    %v981 = vunpack.c.h.b16 %v854
    %v982 = vunpack.c.l.b16 %v855
    %v983 = vunpack.c.h.b16 %v855
    %v984 = vunpack.c.l.b16 %v856
    %v985 = vunpack.c.h.b16 %v856
    %v986 = vunpack.c.l.b16 %v857
    %v987 = vunpack.c.h.b16 %v857
    %v988 = vpack.c.b16 %v982, %v980
    %v989 = vpack.c.b16 %v983, %v981
    %v990 = vpack.c.b16 %v986, %v984
    %v991 = vpack.c.b16 %v987, %v985
    %v997 = vsel %vm414, %v870, 0
    %v1000 = vsel %vm414, %v871, 0
    %v1003 = vsel %vm414, %v872, 0
    %v1006 = vsel %vm414, %v873, 0
    %1008 = vmatpush.bf16.msra.mxu0 0
    %1009 = vmatpush.bf16.msra.mxu0 0
    %1010 = vmatpush.bf16.msra.mxu0 0
    %1011 = vmatpush.bf16.msra.mxu0 0
    %1012 = vmatpush.bf16.msra.mxu0 0
    %1013 = vmatpush.bf16.msra.mxu0 0
    %1014 = vmatpush.bf16.msra.mxu0 %v990
    %1015 = vmatpush.bf16.msra.mxu0 %v988
    %1016 = vmatmul.bf16.gmra.mxu0 %v997
    %v1017 = vpop.f32.mrf.mxu0
    %v1018 = vadd.f32 %v928, %v1017
    %v1019 = vpop.f32.mrf.mxu0
    %v1020 = vadd.f32 %v930, %v1019
    %1021 = vmatmul.bf16.gmra.mxu0 %v1000
    %v1022 = vpop.f32.mrf.mxu0
    %v1023 = vadd.f32 %v933, %v1022
    %v1024 = vpop.f32.mrf.mxu0
    %v1025 = vadd.f32 %v935, %v1024
    %1026 = vmatmul.bf16.gmra.mxu0 %v1003
    %v1027 = vpop.f32.mrf.mxu0
    %v1028 = vadd.f32 %v938, %v1027
    %v1029 = vpop.f32.mrf.mxu0
    %v1030 = vadd.f32 %v940, %v1029
    %1031 = vmatmul.bf16.gmra.mxu0 %v1006
    %v1032 = vpop.f32.mrf.mxu0
    %v1033 = vadd.f32 %v943, %v1032
    %v1034 = vpop.f32.mrf.mxu0
    %v1035 = vadd.f32 %v945, %v1034
    %1036 = vdwg.mxu0
    %1037 = vmatpush.bf16.msra.mxu0 0
    %1038 = vmatpush.bf16.msra.mxu0 0
    %1039 = vmatpush.bf16.msra.mxu0 0
    %1040 = vmatpush.bf16.msra.mxu0 0
    %1041 = vmatpush.bf16.msra.mxu0 0
    %1042 = vmatpush.bf16.msra.mxu0 0
    %1043 = vmatpush.bf16.msra.mxu0 %v991
    %1044 = vmatpush.bf16.msra.mxu0 %v989
    %1045 = vmatmul.bf16.gmra.mxu0 %v997
    %v1046 = vpop.f32.mrf.mxu0
    %v1047 = vadd.f32 %v957, %v1046
    %v1048 = vpop.f32.mrf.mxu0
    %v1049 = vadd.f32 %v959, %v1048
    %1050 = vmatmul.bf16.gmra.mxu0 %v1000
    %v1051 = vpop.f32.mrf.mxu0
    %v1052 = vadd.f32 %v962, %v1051
    %v1053 = vpop.f32.mrf.mxu0
    %v1054 = vadd.f32 %v964, %v1053
    %1055 = vmatmul.bf16.gmra.mxu0 %v1003
    %v1056 = vpop.f32.mrf.mxu0
    %v1057 = vadd.f32 %v967, %v1056
    %v1058 = vpop.f32.mrf.mxu0
    %v1059 = vadd.f32 %v969, %v1058
    %1060 = vmatmul.bf16.gmra.mxu0 %v1006
    %v1061 = vpop.f32.mrf.mxu0
    %v1062 = vadd.f32 %v972, %v1061
    %v1063 = vpop.f32.mrf.mxu0
    %v1064 = vadd.f32 %v974, %v1063
    %1065 = vdwg.mxu0
    %v1066 = vld [vmem:[%s6] sm:$0x3]
    %v1068 = vperm.slane %v1066, 0
    %v1069 = vperm.slane %v1066, 1
    %v1072 = vadd.f32 %v1018, %v1068
    %v1073 = vadd.f32 %v1047, %v1069
    %v1074 = vadd.f32 %v1020, %v1068
    %v1075 = vadd.f32 %v1049, %v1069
    %v1076 = vadd.f32 %v1023, %v1068
    %v1077 = vadd.f32 %v1052, %v1069
    %v1078 = vadd.f32 %v1025, %v1068
    %v1079 = vadd.f32 %v1054, %v1069
    %v1080 = vadd.f32 %v1028, %v1068
    %v1081 = vadd.f32 %v1057, %v1069
    %v1082 = vadd.f32 %v1030, %v1068
    %v1083 = vadd.f32 %v1059, %v1069
    %v1084 = vadd.f32 %v1033, %v1068
    %v1085 = vadd.f32 %v1062, %v1069
    %v1086 = vadd.f32 %v1035, %v1068
    %v1087 = vadd.f32 %v1064, %v1069
    %v1088 = vsel %vm193, %v1072, %v1086
    %v1089 = vsel %vm194, %v1073, %v1087
    %v1090 = vsel %vm193, %v1074, %v1084
    %v1091 = vsel %vm194, %v1075, %v1085
    %v1092 = vsel %vm193, %v1076, %v1082
    %v1093 = vsel %vm194, %v1077, %v1083
    %v1094 = vsel %vm193, %v1078, %v1080
    %v1095 = vsel %vm194, %v1079, %v1081
    %v1096 = vsel %vm193, %v1080, %v1078
    %v1097 = vsel %vm194, %v1081, %v1079
    %v1098 = vsel %vm193, %v1082, %v1076
    %v1099 = vsel %vm194, %v1083, %v1077
    %v1100 = vsel %vm193, %v1084, %v1074
    %v1101 = vsel %vm194, %v1085, %v1075
    %v1102 = vsel %vm193, %v1086, %v1072
    %v1103 = vsel %vm194, %v1087, %v1073
    %v1104 = vld [vmem:[#allocation8] sm:$0xff]
    %v1105 = vld [vmem:[#allocation8 + $0x8] sm:$0xff]
    %v1106 = vld [vmem:[#allocation8 + $0x10] sm:$0xff]
    %v1107 = vld [vmem:[#allocation8 + $0x18] sm:$0xff]
    %v1108 = vld [vmem:[#allocation8 + $0x20] sm:$0xff]
    %v1109 = vld [vmem:[#allocation8 + $0x28] sm:$0xff]
    %v1110 = vld [vmem:[#allocation8 + $0x30] sm:$0xff]
    %v1111 = vld [vmem:[#allocation8 + $0x38] sm:$0xff]
    %v1120 = vunpack.c.l.b16 %v1104
    %v1121 = vunpack.c.h.b16 %v1104
    %v1122 = vunpack.c.l.b16 %v1105
    %v1123 = vunpack.c.h.b16 %v1105
    %v1124 = vunpack.c.l.b16 %v1106
    %v1125 = vunpack.c.h.b16 %v1106
    %v1126 = vunpack.c.l.b16 %v1107
    %v1127 = vunpack.c.h.b16 %v1107
    %v1128 = vunpack.c.l.b16 %v1108
    %v1129 = vunpack.c.h.b16 %v1108
    %v1130 = vunpack.c.l.b16 %v1109
    %v1131 = vunpack.c.h.b16 %v1109
    %v1132 = vunpack.c.l.b16 %v1110
    %v1133 = vunpack.c.h.b16 %v1110
    %v1134 = vunpack.c.l.b16 %v1111
    %v1135 = vunpack.c.h.b16 %v1111
    %v1136 = vpack.c.b16 %v1122, %v1120
    %v1137 = vpack.c.b16 %v1123, %v1121
    %v1138 = vpack.c.b16 %v1126, %v1124
    %v1139 = vpack.c.b16 %v1127, %v1125
    %v1140 = vpack.c.b16 %v1130, %v1128
    %v1141 = vpack.c.b16 %v1131, %v1129
    %v1142 = vpack.c.b16 %v1134, %v1132
    %v1143 = vpack.c.b16 %v1135, %v1133
    %1152 = vmatpush.bf16.msra.mxu0 0
    %1153 = vmatpush.bf16.msra.mxu0 0
    %1154 = vmatpush.bf16.msra.mxu0 0
    %1155 = vmatpush.bf16.msra.mxu0 0
    %1156 = vmatpush.bf16.msra.mxu0 %v1142
    %1157 = vmatpush.bf16.msra.mxu0 %v1140
    %1158 = vmatpush.bf16.msra.mxu0 %v1138
    %1159 = vmatpush.bf16.msra.mxu0 %v1136
    %1160 = vmatmul.bf16.gmra.mxu0 %v362
    %v1161 = vpop.f32.mrf.mxu0
    %v1162 = vadd.f32 0.0, %v1161
    %v1163 = vpop.f32.mrf.mxu0
    %1164 = vdwg.mxu0
    %1165 = vmatpush.bf16.msra.mxu0 0
    %1166 = vmatpush.bf16.msra.mxu0 0
    %1167 = vmatpush.bf16.msra.mxu0 0
    %1168 = vmatpush.bf16.msra.mxu0 0
    %1169 = vmatpush.bf16.msra.mxu0 %v1143
    %1170 = vmatpush.bf16.msra.mxu0 %v1141
    %1171 = vmatpush.bf16.msra.mxu0 %v1139
    %1172 = vmatpush.bf16.msra.mxu0 %v1137
    %1173 = vmatmul.bf16.gmra.mxu0 %v362
    %v1174 = vpop.f32.mrf.mxu0
    %v1175 = vadd.f32 0.0, %v1174
    %v1176 = vpop.f32.mrf.mxu0
    %1177 = vdwg.mxu0
    %v1178 = vadd.f32 %v1088, %v1162
    %v1179 = vadd.f32 %v1089, %v1175
    %v1180 = vmul.f32 %v1178, 0.5
    %v1181 = vtanh.pop %v1180
    %v1182 = vadd.f32 %v1181, 1.0
    %v1183 = vmul.f32 %v1182, 0.5
    %v1184 = vtanh.pop %v1179
    %v1185 = vmul.f32 %v1179, 0.5
    %v1186 = vtanh.pop %v1185
    %v1187 = vadd.f32 %v1186, 1.0
    %v1188 = vmul.f32 %v1187, 0.5
    %v1189 = vmul.f32 %v1183, 0.0
    %v1190 = vmul.f32 %v1183, %v1184
    %1192 = vrot.lane.b32.xlu0 %v1190, 64
    %v1193 = vpop.permute.xlu0 %1192
    %v1195 = vadd.f32 %v1189, %v1193
    %v1196 = vtanh.pop %v1195
    %v1197 = vmul.f32 %v1188, %v1196
    %1199 = vrot.lane.b32.xlu0 %v1197, 64
    %v1200 = vpop.permute.xlu0 %1199
    %1202 = vst.msk [vmem:[#allocation4] sm:$0xff] %vm414, %v1200
    %1203 = vrot.lane.b32.xlu0 %v1197, 32
    %v1204 = vpop.permute.xlu0 %1203
    %1206 = vst.msk [vmem:[#allocation5 + $0x38] sm:$0xff] %vm414, %v1204
    %v1207 = vpack.c.bf16 %v1197, %v1197
    %1209 = vrot.lane.b32.xlu0 %v1207, 64
    %v1210 = vpop.permute.xlu0 %1209
    %v1212 = vsel %vm360, %v1210, 0
    %1214 = vmatpush.bf16.msra.mxu0 0
    %1215 = vmatpush.bf16.msra.mxu0 0
    %1216 = vmatpush.bf16.msra.mxu0 0
    %1217 = vmatpush.bf16.msra.mxu0 0
    %1218 = vmatpush.bf16.msra.mxu0 %v1142
    %1219 = vmatpush.bf16.msra.mxu0 %v1140
    %1220 = vmatpush.bf16.msra.mxu0 %v1138
    %1221 = vmatpush.bf16.msra.mxu0 %v1136
    %1222 = vmatmul.bf16.gmra.mxu0 %v1212
    %v1223 = vpop.f32.mrf.mxu0
    %v1224 = vadd.f32 0.0, %v1223
    %v1225 = vpop.f32.mrf.mxu0
    %1226 = vdwg.mxu0
    %1227 = vmatpush.bf16.msra.mxu0 0
    %1228 = vmatpush.bf16.msra.mxu0 0
    %1229 = vmatpush.bf16.msra.mxu0 0
    %1230 = vmatpush.bf16.msra.mxu0 0
    %1231 = vmatpush.bf16.msra.mxu0 %v1143
    %1232 = vmatpush.bf16.msra.mxu0 %v1141
    %1233 = vmatpush.bf16.msra.mxu0 %v1139
    %1234 = vmatpush.bf16.msra.mxu0 %v1137
    %1235 = vmatmul.bf16.gmra.mxu0 %v1212
    %v1236 = vpop.f32.mrf.mxu0
    %v1237 = vadd.f32 0.0, %v1236
    %v1238 = vpop.f32.mrf.mxu0
    %1239 = vdwg.mxu0
    %v1240 = vadd.f32 %v1090, %v1224
    %v1241 = vadd.f32 %v1091, %v1237
    %v1242 = vmul.f32 %v1240, 0.5
    %v1243 = vtanh.pop %v1242
    %v1244 = vadd.f32 %v1243, 1.0
    %v1245 = vmul.f32 %v1244, 0.5
    %v1246 = vtanh.pop %v1241
    %v1247 = vmul.f32 %v1241, 0.5
    %v1248 = vtanh.pop %v1247
    %v1249 = vadd.f32 %v1248, 1.0
    %v1250 = vmul.f32 %v1249, 0.5
    %v1251 = vmul.f32 %v1245, %v1195
    %v1252 = vmul.f32 %v1245, %v1246
    %1254 = vrot.lane.b32.xlu0 %v1252, 64
    %v1255 = vpop.permute.xlu0 %1254
    %v1257 = vadd.f32 %v1251, %v1255
    %v1258 = vtanh.pop %v1257
    %v1259 = vmul.f32 %v1250, %v1258
    %1261 = vrot.lane.b32.xlu0 %v1259, 64
    %v1262 = vpop.permute.xlu0 %1261
    %1264 = vst.msk [vmem:[#allocation4 + $0x8] sm:$0xff] %vm414, %v1262
    %1265 = vrot.lane.b32.xlu0 %v1259, 32
    %v1266 = vpop.permute.xlu0 %1265
    %1268 = vst.msk [vmem:[#allocation5 + $0x30] sm:$0xff] %vm414, %v1266
    %v1269 = vpack.c.bf16 %v1259, %v1259
    %1271 = vrot.lane.b32.xlu0 %v1269, 64
    %v1272 = vpop.permute.xlu0 %1271
    %v1274 = vsel %vm360, %v1272, 0
    %1276 = vmatpush.bf16.msra.mxu0 0
    %1277 = vmatpush.bf16.msra.mxu0 0
    %1278 = vmatpush.bf16.msra.mxu0 0
    %1279 = vmatpush.bf16.msra.mxu0 0
    %1280 = vmatpush.bf16.msra.mxu0 %v1142
    %1281 = vmatpush.bf16.msra.mxu0 %v1140
    %1282 = vmatpush.bf16.msra.mxu0 %v1138
    %1283 = vmatpush.bf16.msra.mxu0 %v1136
    %1284 = vmatmul.bf16.gmra.mxu0 %v1274
    %v1285 = vpop.f32.mrf.mxu0
    %v1286 = vadd.f32 0.0, %v1285
    %v1287 = vpop.f32.mrf.mxu0
    %1288 = vdwg.mxu0
    %1289 = vmatpush.bf16.msra.mxu0 0
    %1290 = vmatpush.bf16.msra.mxu0 0
    %1291 = vmatpush.bf16.msra.mxu0 0
    %1292 = vmatpush.bf16.msra.mxu0 0
    %1293 = vmatpush.bf16.msra.mxu0 %v1143
    %1294 = vmatpush.bf16.msra.mxu0 %v1141
    %1295 = vmatpush.bf16.msra.mxu0 %v1139
    %1296 = vmatpush.bf16.msra.mxu0 %v1137
    %1297 = vmatmul.bf16.gmra.mxu0 %v1274
    %v1298 = vpop.f32.mrf.mxu0
    %v1299 = vadd.f32 0.0, %v1298
    %v1300 = vpop.f32.mrf.mxu0
    %1301 = vdwg.mxu0
    %v1302 = vadd.f32 %v1092, %v1286
    %v1303 = vadd.f32 %v1093, %v1299
    %v1304 = vmul.f32 %v1302, 0.5
    %v1305 = vtanh.pop %v1304
    %v1306 = vadd.f32 %v1305, 1.0
    %v1307 = vmul.f32 %v1306, 0.5
    %v1308 = vtanh.pop %v1303
    %v1309 = vmul.f32 %v1303, 0.5
    %v1310 = vtanh.pop %v1309
    %v1311 = vadd.f32 %v1310, 1.0
    %v1312 = vmul.f32 %v1311, 0.5
    %v1313 = vmul.f32 %v1307, %v1257
    %v1314 = vmul.f32 %v1307, %v1308
    %1316 = vrot.lane.b32.xlu0 %v1314, 64
    %v1317 = vpop.permute.xlu0 %1316
    %v1319 = vadd.f32 %v1313, %v1317
    %v1320 = vtanh.pop %v1319
    %v1321 = vmul.f32 %v1312, %v1320
    %1323 = vrot.lane.b32.xlu0 %v1321, 64
    %v1324 = vpop.permute.xlu0 %1323
    %1326 = vst.msk [vmem:[#allocation4 + $0x10] sm:$0xff] %vm414, %v1324
    %1327 = vrot.lane.b32.xlu0 %v1321, 32
    %v1328 = vpop.permute.xlu0 %1327
    %1330 = vst.msk [vmem:[#allocation5 + $0x28] sm:$0xff] %vm414, %v1328
    %v1331 = vpack.c.bf16 %v1321, %v1321
    %1333 = vrot.lane.b32.xlu0 %v1331, 64
    %v1334 = vpop.permute.xlu0 %1333
    %v1336 = vsel %vm360, %v1334, 0
    %1338 = vmatpush.bf16.msra.mxu0 0
    %1339 = vmatpush.bf16.msra.mxu0 0
    %1340 = vmatpush.bf16.msra.mxu0 0
    %1341 = vmatpush.bf16.msra.mxu0 0
    %1342 = vmatpush.bf16.msra.mxu0 %v1142
    %1343 = vmatpush.bf16.msra.mxu0 %v1140
    %1344 = vmatpush.bf16.msra.mxu0 %v1138
    %1345 = vmatpush.bf16.msra.mxu0 %v1136
    %1346 = vmatmul.bf16.gmra.mxu0 %v1336
    %v1347 = vpop.f32.mrf.mxu0
    %v1348 = vadd.f32 0.0, %v1347
    %v1349 = vpop.f32.mrf.mxu0
    %1350 = vdwg.mxu0
    %1351 = vmatpush.bf16.msra.mxu0 0
    %1352 = vmatpush.bf16.msra.mxu0 0
    %1353 = vmatpush.bf16.msra.mxu0 0
    %1354 = vmatpush.bf16.msra.mxu0 0
    %1355 = vmatpush.bf16.msra.mxu0 %v1143
    %1356 = vmatpush.bf16.msra.mxu0 %v1141
    %1357 = vmatpush.bf16.msra.mxu0 %v1139
    %1358 = vmatpush.bf16.msra.mxu0 %v1137
    %1359 = vmatmul.bf16.gmra.mxu0 %v1336
    %v1360 = vpop.f32.mrf.mxu0
    %v1361 = vadd.f32 0.0, %v1360
    %v1362 = vpop.f32.mrf.mxu0
    %1363 = vdwg.mxu0
    %v1364 = vadd.f32 %v1094, %v1348
    %v1365 = vadd.f32 %v1095, %v1361
    %v1366 = vmul.f32 %v1364, 0.5
    %v1367 = vtanh.pop %v1366
    %v1368 = vadd.f32 %v1367, 1.0
    %v1369 = vmul.f32 %v1368, 0.5
    %v1370 = vtanh.pop %v1365
    %v1371 = vmul.f32 %v1365, 0.5
    %v1372 = vtanh.pop %v1371
    %v1373 = vadd.f32 %v1372, 1.0
    %v1374 = vmul.f32 %v1373, 0.5
    %v1375 = vmul.f32 %v1369, %v1319
    %v1376 = vmul.f32 %v1369, %v1370
    %1378 = vrot.lane.b32.xlu0 %v1376, 64
    %v1379 = vpop.permute.xlu0 %1378
    %v1381 = vadd.f32 %v1375, %v1379
    %v1382 = vtanh.pop %v1381
    %v1383 = vmul.f32 %v1374, %v1382
    %1385 = vrot.lane.b32.xlu0 %v1383, 64
    %v1386 = vpop.permute.xlu0 %1385
    %1388 = vst.msk [vmem:[#allocation4 + $0x18] sm:$0xff] %vm414, %v1386
    %1389 = vrot.lane.b32.xlu0 %v1383, 32
    %v1390 = vpop.permute.xlu0 %1389
    %1392 = vst.msk [vmem:[#allocation5 + $0x20] sm:$0xff] %vm414, %v1390
    %v1393 = vpack.c.bf16 %v1383, %v1383
    %1395 = vrot.lane.b32.xlu0 %v1393, 64
    %v1396 = vpop.permute.xlu0 %1395
    %v1398 = vsel %vm360, %v1396, 0
    %1400 = vmatpush.bf16.msra.mxu0 0
    %1401 = vmatpush.bf16.msra.mxu0 0
    %1402 = vmatpush.bf16.msra.mxu0 0
    %1403 = vmatpush.bf16.msra.mxu0 0
    %1404 = vmatpush.bf16.msra.mxu0 %v1142
    %1405 = vmatpush.bf16.msra.mxu0 %v1140
    %1406 = vmatpush.bf16.msra.mxu0 %v1138
    %1407 = vmatpush.bf16.msra.mxu0 %v1136
    %1408 = vmatmul.bf16.gmra.mxu0 %v1398
    %v1409 = vpop.f32.mrf.mxu0
    %v1410 = vadd.f32 0.0, %v1409
    %v1411 = vpop.f32.mrf.mxu0
    %1412 = vdwg.mxu0
    %1413 = vmatpush.bf16.msra.mxu0 0
    %1414 = vmatpush.bf16.msra.mxu0 0
    %1415 = vmatpush.bf16.msra.mxu0 0
    %1416 = vmatpush.bf16.msra.mxu0 0
    %1417 = vmatpush.bf16.msra.mxu0 %v1143
    %1418 = vmatpush.bf16.msra.mxu0 %v1141
    %1419 = vmatpush.bf16.msra.mxu0 %v1139
    %1420 = vmatpush.bf16.msra.mxu0 %v1137
    %1421 = vmatmul.bf16.gmra.mxu0 %v1398
    %v1422 = vpop.f32.mrf.mxu0
    %v1423 = vadd.f32 0.0, %v1422
    %v1424 = vpop.f32.mrf.mxu0
    %1425 = vdwg.mxu0
    %v1426 = vadd.f32 %v1096, %v1410
    %v1427 = vadd.f32 %v1097, %v1423
    %v1428 = vmul.f32 %v1426, 0.5
    %v1429 = vtanh.pop %v1428
    %v1430 = vadd.f32 %v1429, 1.0
    %v1431 = vmul.f32 %v1430, 0.5
    %v1432 = vtanh.pop %v1427
    %v1433 = vmul.f32 %v1427, 0.5
    %v1434 = vtanh.pop %v1433
    %v1435 = vadd.f32 %v1434, 1.0
    %v1436 = vmul.f32 %v1435, 0.5
    %v1437 = vmul.f32 %v1431, %v1381
    %v1438 = vmul.f32 %v1431, %v1432
    %1440 = vrot.lane.b32.xlu0 %v1438, 64
    %v1441 = vpop.permute.xlu0 %1440
    %v1443 = vadd.f32 %v1437, %v1441
    %v1444 = vtanh.pop %v1443
    %v1445 = vmul.f32 %v1436, %v1444
    %1447 = vrot.lane.b32.xlu0 %v1445, 64
    %v1448 = vpop.permute.xlu0 %1447
    %1450 = vst.msk [vmem:[#allocation4 + $0x20] sm:$0xff] %vm414, %v1448
    %1451 = vrot.lane.b32.xlu0 %v1445, 32
    %v1452 = vpop.permute.xlu0 %1451
    %1454 = vst.msk [vmem:[#allocation5 + $0x18] sm:$0xff] %vm414, %v1452
    %v1455 = vpack.c.bf16 %v1445, %v1445
    %1457 = vrot.lane.b32.xlu0 %v1455, 64
    %v1458 = vpop.permute.xlu0 %1457
    %v1460 = vsel %vm360, %v1458, 0
    %1462 = vmatpush.bf16.msra.mxu0 0
    %1463 = vmatpush.bf16.msra.mxu0 0
    %1464 = vmatpush.bf16.msra.mxu0 0
    %1465 = vmatpush.bf16.msra.mxu0 0
    %1466 = vmatpush.bf16.msra.mxu0 %v1142
    %1467 = vmatpush.bf16.msra.mxu0 %v1140
    %1468 = vmatpush.bf16.msra.mxu0 %v1138
    %1469 = vmatpush.bf16.msra.mxu0 %v1136
    %1470 = vmatmul.bf16.gmra.mxu0 %v1460
    %v1471 = vpop.f32.mrf.mxu0
    %v1472 = vadd.f32 0.0, %v1471
    %v1473 = vpop.f32.mrf.mxu0
    %1474 = vdwg.mxu0
    %1475 = vmatpush.bf16.msra.mxu0 0
    %1476 = vmatpush.bf16.msra.mxu0 0
    %1477 = vmatpush.bf16.msra.mxu0 0
    %1478 = vmatpush.bf16.msra.mxu0 0
    %1479 = vmatpush.bf16.msra.mxu0 %v1143
    %1480 = vmatpush.bf16.msra.mxu0 %v1141
    %1481 = vmatpush.bf16.msra.mxu0 %v1139
    %1482 = vmatpush.bf16.msra.mxu0 %v1137
    %1483 = vmatmul.bf16.gmra.mxu0 %v1460
    %v1484 = vpop.f32.mrf.mxu0
    %v1485 = vadd.f32 0.0, %v1484
    %v1486 = vpop.f32.mrf.mxu0
    %1487 = vdwg.mxu0
    %v1488 = vadd.f32 %v1098, %v1472
    %v1489 = vadd.f32 %v1099, %v1485
    %v1490 = vmul.f32 %v1488, 0.5
    %v1491 = vtanh.pop %v1490
    %v1492 = vadd.f32 %v1491, 1.0
    %v1493 = vmul.f32 %v1492, 0.5
    %v1494 = vtanh.pop %v1489
    %v1495 = vmul.f32 %v1489, 0.5
    %v1496 = vtanh.pop %v1495
    %v1497 = vadd.f32 %v1496, 1.0
    %v1498 = vmul.f32 %v1497, 0.5
    %v1499 = vmul.f32 %v1493, %v1443
    %v1500 = vmul.f32 %v1493, %v1494
    %1502 = vrot.lane.b32.xlu0 %v1500, 64
    %v1503 = vpop.permute.xlu0 %1502
    %v1505 = vadd.f32 %v1499, %v1503
    %v1506 = vtanh.pop %v1505
    %v1507 = vmul.f32 %v1498, %v1506
    %1509 = vrot.lane.b32.xlu0 %v1507, 64
    %v1510 = vpop.permute.xlu0 %1509
    %1512 = vst.msk [vmem:[#allocation4 + $0x28] sm:$0xff] %vm414, %v1510
    %1513 = vrot.lane.b32.xlu0 %v1507, 32
    %v1514 = vpop.permute.xlu0 %1513
    %1516 = vst.msk [vmem:[#allocation5 + $0x10] sm:$0xff] %vm414, %v1514
    %v1517 = vpack.c.bf16 %v1507, %v1507
    %1519 = vrot.lane.b32.xlu0 %v1517, 64
    %v1520 = vpop.permute.xlu0 %1519
    %v1522 = vsel %vm360, %v1520, 0
    %1524 = vmatpush.bf16.msra.mxu0 0
    %1525 = vmatpush.bf16.msra.mxu0 0
    %1526 = vmatpush.bf16.msra.mxu0 0
    %1527 = vmatpush.bf16.msra.mxu0 0
    %1528 = vmatpush.bf16.msra.mxu0 %v1142
    %1529 = vmatpush.bf16.msra.mxu0 %v1140
    %1530 = vmatpush.bf16.msra.mxu0 %v1138
    %1531 = vmatpush.bf16.msra.mxu0 %v1136
    %1532 = vmatmul.bf16.gmra.mxu0 %v1522
    %v1533 = vpop.f32.mrf.mxu0
    %v1534 = vadd.f32 0.0, %v1533
    %v1535 = vpop.f32.mrf.mxu0
    %1536 = vdwg.mxu0
    %1537 = vmatpush.bf16.msra.mxu0 0
    %1538 = vmatpush.bf16.msra.mxu0 0
    %1539 = vmatpush.bf16.msra.mxu0 0
    %1540 = vmatpush.bf16.msra.mxu0 0
    %1541 = vmatpush.bf16.msra.mxu0 %v1143
    %1542 = vmatpush.bf16.msra.mxu0 %v1141
    %1543 = vmatpush.bf16.msra.mxu0 %v1139
    %1544 = vmatpush.bf16.msra.mxu0 %v1137
    %1545 = vmatmul.bf16.gmra.mxu0 %v1522
    %v1546 = vpop.f32.mrf.mxu0
    %v1547 = vadd.f32 0.0, %v1546
    %v1548 = vpop.f32.mrf.mxu0
    %1549 = vdwg.mxu0
    %v1550 = vadd.f32 %v1100, %v1534
    %v1551 = vadd.f32 %v1101, %v1547
    %v1552 = vmul.f32 %v1550, 0.5
    %v1553 = vtanh.pop %v1552
    %v1554 = vadd.f32 %v1553, 1.0
    %v1555 = vmul.f32 %v1554, 0.5
    %v1556 = vtanh.pop %v1551
    %v1557 = vmul.f32 %v1551, 0.5
    %v1558 = vtanh.pop %v1557
    %v1559 = vadd.f32 %v1558, 1.0
    %v1560 = vmul.f32 %v1559, 0.5
    %v1561 = vmul.f32 %v1555, %v1505
    %v1562 = vmul.f32 %v1555, %v1556
    %1564 = vrot.lane.b32.xlu0 %v1562, 64
    %v1565 = vpop.permute.xlu0 %1564
    %v1567 = vadd.f32 %v1561, %v1565
    %v1568 = vtanh.pop %v1567
    %v1569 = vmul.f32 %v1560, %v1568
    %1571 = vrot.lane.b32.xlu0 %v1569, 64
    %v1572 = vpop.permute.xlu0 %1571
    %1574 = vst.msk [vmem:[#allocation4 + $0x30] sm:$0xff] %vm414, %v1572
    %1575 = vrot.lane.b32.xlu0 %v1569, 32
    %v1576 = vpop.permute.xlu0 %1575
    %1578 = vst.msk [vmem:[#allocation5 + $0x8] sm:$0xff] %vm414, %v1576
    %v1579 = vpack.c.bf16 %v1569, %v1569
    %1581 = vrot.lane.b32.xlu0 %v1579, 64
    %v1582 = vpop.permute.xlu0 %1581
    %v1584 = vsel %vm360, %v1582, 0
    %1586 = vmatpush.bf16.msra.mxu0 0
    %1587 = vmatpush.bf16.msra.mxu0 0
    %1588 = vmatpush.bf16.msra.mxu0 0
    %1589 = vmatpush.bf16.msra.mxu0 0
    %1590 = vmatpush.bf16.msra.mxu0 %v1142
    %1591 = vmatpush.bf16.msra.mxu0 %v1140
    %1592 = vmatpush.bf16.msra.mxu0 %v1138
    %1593 = vmatpush.bf16.msra.mxu0 %v1136
    %1594 = vmatmul.bf16.gmra.mxu0 %v1584
    %v1595 = vpop.f32.mrf.mxu0
    %v1596 = vadd.f32 0.0, %v1595
    %v1597 = vpop.f32.mrf.mxu0
    %1598 = vdwg.mxu0
    %1599 = vmatpush.bf16.msra.mxu0 0
    %1600 = vmatpush.bf16.msra.mxu0 0
    %1601 = vmatpush.bf16.msra.mxu0 0
    %1602 = vmatpush.bf16.msra.mxu0 0
    %1603 = vmatpush.bf16.msra.mxu0 %v1143
    %1604 = vmatpush.bf16.msra.mxu0 %v1141
    %1605 = vmatpush.bf16.msra.mxu0 %v1139
    %1606 = vmatpush.bf16.msra.mxu0 %v1137
    %1607 = vmatmul.bf16.gmra.mxu0 %v1584
    %v1608 = vpop.f32.mrf.mxu0
    %v1609 = vadd.f32 0.0, %v1608
    %v1610 = vpop.f32.mrf.mxu0
    %1611 = vdwg.mxu0
    %v1612 = vadd.f32 %v1102, %v1596
    %v1613 = vadd.f32 %v1103, %v1609
    %v1614 = vmul.f32 %v1612, 0.5
    %v1615 = vtanh.pop %v1614
    %v1616 = vadd.f32 %v1615, 1.0
    %v1617 = vmul.f32 %v1616, 0.5
    %v1618 = vtanh.pop %v1613
    %v1619 = vmul.f32 %v1613, 0.5
    %v1620 = vtanh.pop %v1619
    %v1621 = vadd.f32 %v1620, 1.0
    %v1622 = vmul.f32 %v1621, 0.5
    %v1623 = vmul.f32 %v1617, %v1567
    %v1624 = vmul.f32 %v1617, %v1618
    %1626 = vrot.lane.b32.xlu0 %v1624, 64
    %v1627 = vpop.permute.xlu0 %1626
    %v1629 = vadd.f32 %v1623, %v1627
    %v1630 = vtanh.pop %v1629
    %v1631 = vmul.f32 %v1622, %v1630
    %1633 = vrot.lane.b32.xlu0 %v1631, 64
    %v1634 = vpop.permute.xlu0 %1633
    %1636 = vst.msk [vmem:[#allocation4 + $0x38] sm:$0xff] %vm414, %v1634
    %1637 = vrot.lane.b32.xlu0 %v1631, 32
    %v1638 = vpop.permute.xlu0 %1637
    %1640 = vst.msk [vmem:[#allocation5] sm:$0xff] %vm414, %v1638
    %v1641 = vld [vmem:[#allocation10] sm:$0xff]
    %v1642 = vld [vmem:[#allocation10 + $0x8] sm:$0xff]
    %v1643 = vld [vmem:[#allocation10 + $0x10] sm:$0xff]
    %v1644 = vld [vmem:[#allocation10 + $0x18] sm:$0xff]
    %v1645 = vld [vmem:[#allocation10 + $0x20] sm:$0xff]
    %v1646 = vld [vmem:[#allocation10 + $0x28] sm:$0xff]
    %v1647 = vld [vmem:[#allocation10 + $0x30] sm:$0xff]
    %v1648 = vld [vmem:[#allocation10 + $0x38] sm:$0xff]
    %v1649 = vld [vmem:[#allocation4] sm:$0xff]
    %v1650 = vld [vmem:[#allocation4 + $0x8] sm:$0xff]
    %v1651 = vld [vmem:[#allocation4 + $0x10] sm:$0xff]
    %v1652 = vld [vmem:[#allocation4 + $0x18] sm:$0xff]
    %v1653 = vld [vmem:[#allocation4 + $0x20] sm:$0xff]
    %v1654 = vld [vmem:[#allocation4 + $0x28] sm:$0xff]
    %v1655 = vld [vmem:[#allocation4 + $0x30] sm:$0xff]
    %v1656 = vld [vmem:[#allocation4 + $0x38] sm:$0xff]
    %v1657 = vpack.c.bf16 %v1650, %v1649
    %v1658 = vpack.c.bf16 %v1652, %v1651
    %v1659 = vpack.c.bf16 %v1654, %v1653
    %v1660 = vpack.c.bf16 %v1656, %v1655
    %v1661 = vld [vmem:[#allocation5] sm:$0xff]
    %v1662 = vld [vmem:[#allocation5 + $0x8] sm:$0xff]
    %v1663 = vld [vmem:[#allocation5 + $0x10] sm:$0xff]
    %v1664 = vld [vmem:[#allocation5 + $0x18] sm:$0xff]
    %v1665 = vld [vmem:[#allocation5 + $0x20] sm:$0xff]
    %v1666 = vld [vmem:[#allocation5 + $0x28] sm:$0xff]
    %v1667 = vld [vmem:[#allocation5 + $0x30] sm:$0xff]
    %v1668 = vld [vmem:[#allocation5 + $0x38] sm:$0xff]
    %v1669 = vpack.c.bf16 %v1662, %v1661
    %v1670 = vpack.c.bf16 %v1664, %v1663
    %v1671 = vpack.c.bf16 %v1666, %v1665
    %v1672 = vpack.c.bf16 %v1668, %v1667
    %v1677 = vunpack.c.l.b16 %v1645
    %v1678 = vunpack.c.h.b16 %v1645
    %v1679 = vunpack.c.l.b16 %v1646
    %v1680 = vunpack.c.h.b16 %v1646
    %v1681 = vunpack.c.l.b16 %v1647
    %v1682 = vunpack.c.h.b16 %v1647
    %v1683 = vunpack.c.l.b16 %v1648
    %v1684 = vunpack.c.h.b16 %v1648
    %v1685 = vpack.c.b16 %v1679, %v1677
    %v1686 = vpack.c.b16 %v1680, %v1678
    %v1687 = vpack.c.b16 %v1683, %v1681
    %v1688 = vpack.c.b16 %v1684, %v1682
    %v1694 = vsel %vm414, %v1669, 0
    %v1697 = vsel %vm414, %v1670, 0
    %v1700 = vsel %vm414, %v1671, 0
    %v1703 = vsel %vm414, %v1672, 0
    %1705 = vmatpush.bf16.msra.mxu0 0
    %1706 = vmatpush.bf16.msra.mxu0 0
    %1707 = vmatpush.bf16.msra.mxu0 0
    %1708 = vmatpush.bf16.msra.mxu0 0
    %1709 = vmatpush.bf16.msra.mxu0 0
    %1710 = vmatpush.bf16.msra.mxu0 0
    %1711 = vmatpush.bf16.msra.mxu0 %v1687
    %1712 = vmatpush.bf16.msra.mxu0 %v1685
    %1713 = vmatmul.bf16.gmra.mxu0 %v1694
    %v1714 = vpop.f32.mrf.mxu0
    %v1715 = vadd.f32 0.0, %v1714
    %v1716 = vpop.f32.mrf.mxu0
    %v1717 = vadd.f32 0.0, %v1716
    %1718 = vmatmul.bf16.gmra.mxu0 %v1697
    %v1719 = vpop.f32.mrf.mxu0
    %v1720 = vadd.f32 0.0, %v1719
    %v1721 = vpop.f32.mrf.mxu0
    %v1722 = vadd.f32 0.0, %v1721
    %1723 = vmatmul.bf16.gmra.mxu0 %v1700
    %v1724 = vpop.f32.mrf.mxu0
    %v1725 = vadd.f32 0.0, %v1724
    %v1726 = vpop.f32.mrf.mxu0
    %v1727 = vadd.f32 0.0, %v1726
    %1728 = vmatmul.bf16.gmra.mxu0 %v1703
    %v1729 = vpop.f32.mrf.mxu0
    %v1730 = vadd.f32 0.0, %v1729
    %v1731 = vpop.f32.mrf.mxu0
    %v1732 = vadd.f32 0.0, %v1731
    %1733 = vdwg.mxu0
    %1734 = vmatpush.bf16.msra.mxu0 0
    %1735 = vmatpush.bf16.msra.mxu0 0
    %1736 = vmatpush.bf16.msra.mxu0 0
    %1737 = vmatpush.bf16.msra.mxu0 0
    %1738 = vmatpush.bf16.msra.mxu0 0
    %1739 = vmatpush.bf16.msra.mxu0 0
    %1740 = vmatpush.bf16.msra.mxu0 %v1688
    %1741 = vmatpush.bf16.msra.mxu0 %v1686
    %1742 = vmatmul.bf16.gmra.mxu0 %v1694
    %v1743 = vpop.f32.mrf.mxu0
    %v1744 = vadd.f32 0.0, %v1743
    %v1745 = vpop.f32.mrf.mxu0
    %v1746 = vadd.f32 0.0, %v1745
    %1747 = vmatmul.bf16.gmra.mxu0 %v1697
    %v1748 = vpop.f32.mrf.mxu0
    %v1749 = vadd.f32 0.0, %v1748
    %v1750 = vpop.f32.mrf.mxu0
    %v1751 = vadd.f32 0.0, %v1750
    %1752 = vmatmul.bf16.gmra.mxu0 %v1700
    %v1753 = vpop.f32.mrf.mxu0
    %v1754 = vadd.f32 0.0, %v1753
    %v1755 = vpop.f32.mrf.mxu0
    %v1756 = vadd.f32 0.0, %v1755
    %1757 = vmatmul.bf16.gmra.mxu0 %v1703
    %v1758 = vpop.f32.mrf.mxu0
    %v1759 = vadd.f32 0.0, %v1758
    %v1760 = vpop.f32.mrf.mxu0
    %v1761 = vadd.f32 0.0, %v1760
    %1762 = vdwg.mxu0
    %v1767 = vunpack.c.l.b16 %v1641
    %v1768 = vunpack.c.h.b16 %v1641
    %v1769 = vunpack.c.l.b16 %v1642
    %v1770 = vunpack.c.h.b16 %v1642
    %v1771 = vunpack.c.l.b16 %v1643
    %v1772 = vunpack.c.h.b16 %v1643
    %v1773 = vunpack.c.l.b16 %v1644
    %v1774 = vunpack.c.h.b16 %v1644
    %v1775 = vpack.c.b16 %v1769, %v1767
    %v1776 = vpack.c.b16 %v1770, %v1768
    %v1777 = vpack.c.b16 %v1773, %v1771
    %v1778 = vpack.c.b16 %v1774, %v1772
    %v1784 = vsel %vm414, %v1657, 0
    %v1787 = vsel %vm414, %v1658, 0
    %v1790 = vsel %vm414, %v1659, 0
    %v1793 = vsel %vm414, %v1660, 0
    %1795 = vmatpush.bf16.msra.mxu0 0
    %1796 = vmatpush.bf16.msra.mxu0 0
    %1797 = vmatpush.bf16.msra.mxu0 0
    %1798 = vmatpush.bf16.msra.mxu0 0
    %1799 = vmatpush.bf16.msra.mxu0 0
    %1800 = vmatpush.bf16.msra.mxu0 0
    %1801 = vmatpush.bf16.msra.mxu0 %v1777
    %1802 = vmatpush.bf16.msra.mxu0 %v1775
    %1803 = vmatmul.bf16.gmra.mxu0 %v1784
    %v1804 = vpop.f32.mrf.mxu0
    %v1805 = vadd.f32 %v1715, %v1804
    %v1806 = vpop.f32.mrf.mxu0
    %v1807 = vadd.f32 %v1717, %v1806
    %1808 = vmatmul.bf16.gmra.mxu0 %v1787
    %v1809 = vpop.f32.mrf.mxu0
    %v1810 = vadd.f32 %v1720, %v1809
    %v1811 = vpop.f32.mrf.mxu0
    %v1812 = vadd.f32 %v1722, %v1811
    %1813 = vmatmul.bf16.gmra.mxu0 %v1790
    %v1814 = vpop.f32.mrf.mxu0
    %v1815 = vadd.f32 %v1725, %v1814
    %v1816 = vpop.f32.mrf.mxu0
    %v1817 = vadd.f32 %v1727, %v1816
    %1818 = vmatmul.bf16.gmra.mxu0 %v1793
    %v1819 = vpop.f32.mrf.mxu0
    %v1820 = vadd.f32 %v1730, %v1819
    %v1821 = vpop.f32.mrf.mxu0
    %v1822 = vadd.f32 %v1732, %v1821
    %1823 = vdwg.mxu0
    %1824 = vmatpush.bf16.msra.mxu0 0
    %1825 = vmatpush.bf16.msra.mxu0 0
    %1826 = vmatpush.bf16.msra.mxu0 0
    %1827 = vmatpush.bf16.msra.mxu0 0
    %1828 = vmatpush.bf16.msra.mxu0 0
    %1829 = vmatpush.bf16.msra.mxu0 0
    %1830 = vmatpush.bf16.msra.mxu0 %v1778
    %1831 = vmatpush.bf16.msra.mxu0 %v1776
    %1832 = vmatmul.bf16.gmra.mxu0 %v1784
    %v1833 = vpop.f32.mrf.mxu0
    %v1834 = vadd.f32 %v1744, %v1833
    %v1835 = vpop.f32.mrf.mxu0
    %v1836 = vadd.f32 %v1746, %v1835
    %1837 = vmatmul.bf16.gmra.mxu0 %v1787
    %v1838 = vpop.f32.mrf.mxu0
    %v1839 = vadd.f32 %v1749, %v1838
    %v1840 = vpop.f32.mrf.mxu0
    %v1841 = vadd.f32 %v1751, %v1840
    %1842 = vmatmul.bf16.gmra.mxu0 %v1790
    %v1843 = vpop.f32.mrf.mxu0
    %v1844 = vadd.f32 %v1754, %v1843
    %v1845 = vpop.f32.mrf.mxu0
    %v1846 = vadd.f32 %v1756, %v1845
    %1847 = vmatmul.bf16.gmra.mxu0 %v1793
    %v1848 = vpop.f32.mrf.mxu0
    %v1849 = vadd.f32 %v1759, %v1848
    %v1850 = vpop.f32.mrf.mxu0
    %v1851 = vadd.f32 %v1761, %v1850
    %1852 = vdwg.mxu0
    %v1853 = vld [vmem:[%s9] sm:$0x3]
    %v1855 = vperm.slane %v1853, 0
    %v1856 = vperm.slane %v1853, 1
    %v1859 = vadd.f32 %v1805, %v1855
    %v1860 = vadd.f32 %v1834, %v1856
    %v1861 = vadd.f32 %v1807, %v1855
    %v1862 = vadd.f32 %v1836, %v1856
    %v1863 = vadd.f32 %v1810, %v1855
    %v1864 = vadd.f32 %v1839, %v1856
    %v1865 = vadd.f32 %v1812, %v1855
    %v1866 = vadd.f32 %v1841, %v1856
    %v1867 = vadd.f32 %v1815, %v1855
    %v1868 = vadd.f32 %v1844, %v1856
    %v1869 = vadd.f32 %v1817, %v1855
    %v1870 = vadd.f32 %v1846, %v1856
    %v1871 = vadd.f32 %v1820, %v1855
    %v1872 = vadd.f32 %v1849, %v1856
    %v1873 = vadd.f32 %v1822, %v1855
    %v1874 = vadd.f32 %v1851, %v1856
    %v1875 = vsel %vm193, %v1859, %v1873
    %v1876 = vsel %vm194, %v1860, %v1874
    %v1877 = vsel %vm193, %v1861, %v1871
    %v1878 = vsel %vm194, %v1862, %v1872
    %v1879 = vsel %vm193, %v1863, %v1869
    %v1880 = vsel %vm194, %v1864, %v1870
    %v1881 = vsel %vm193, %v1865, %v1867
    %v1882 = vsel %vm194, %v1866, %v1868
    %v1883 = vsel %vm193, %v1867, %v1865
    %v1884 = vsel %vm194, %v1868, %v1866
    %v1885 = vsel %vm193, %v1869, %v1863
    %v1886 = vsel %vm194, %v1870, %v1864
    %v1887 = vsel %vm193, %v1871, %v1861
    %v1888 = vsel %vm194, %v1872, %v1862
    %v1889 = vsel %vm193, %v1873, %v1859
    %v1890 = vsel %vm194, %v1874, %v1860
    %v1891 = vld [vmem:[#allocation11] sm:$0xff]
    %v1892 = vld [vmem:[#allocation11 + $0x8] sm:$0xff]
    %v1893 = vld [vmem:[#allocation11 + $0x10] sm:$0xff]
    %v1894 = vld [vmem:[#allocation11 + $0x18] sm:$0xff]
    %v1895 = vld [vmem:[#allocation11 + $0x20] sm:$0xff]
    %v1896 = vld [vmem:[#allocation11 + $0x28] sm:$0xff]
    %v1897 = vld [vmem:[#allocation11 + $0x30] sm:$0xff]
    %v1898 = vld [vmem:[#allocation11 + $0x38] sm:$0xff]
    %v1907 = vunpack.c.l.b16 %v1891
    %v1908 = vunpack.c.h.b16 %v1891
    %v1909 = vunpack.c.l.b16 %v1892
    %v1910 = vunpack.c.h.b16 %v1892
    %v1911 = vunpack.c.l.b16 %v1893
    %v1912 = vunpack.c.h.b16 %v1893
    %v1913 = vunpack.c.l.b16 %v1894
    %v1914 = vunpack.c.h.b16 %v1894
    %v1915 = vunpack.c.l.b16 %v1895
    %v1916 = vunpack.c.h.b16 %v1895
    %v1917 = vunpack.c.l.b16 %v1896
    %v1918 = vunpack.c.h.b16 %v1896
    %v1919 = vunpack.c.l.b16 %v1897
    %v1920 = vunpack.c.h.b16 %v1897
    %v1921 = vunpack.c.l.b16 %v1898
    %v1922 = vunpack.c.h.b16 %v1898
    %v1923 = vpack.c.b16 %v1909, %v1907
    %v1924 = vpack.c.b16 %v1910, %v1908
    %v1925 = vpack.c.b16 %v1913, %v1911
    %v1926 = vpack.c.b16 %v1914, %v1912
    %v1927 = vpack.c.b16 %v1917, %v1915
    %v1928 = vpack.c.b16 %v1918, %v1916
    %v1929 = vpack.c.b16 %v1921, %v1919
    %v1930 = vpack.c.b16 %v1922, %v1920
    %1939 = vmatpush.bf16.msra.mxu0 0
    %1940 = vmatpush.bf16.msra.mxu0 0
    %1941 = vmatpush.bf16.msra.mxu0 0
    %1942 = vmatpush.bf16.msra.mxu0 0
    %1943 = vmatpush.bf16.msra.mxu0 %v1929
    %1944 = vmatpush.bf16.msra.mxu0 %v1927
    %1945 = vmatpush.bf16.msra.mxu0 %v1925
    %1946 = vmatpush.bf16.msra.mxu0 %v1923
    %1947 = vmatmul.bf16.gmra.mxu0 %v362
    %v1948 = vpop.f32.mrf.mxu0
    %v1949 = vadd.f32 0.0, %v1948
    %v1950 = vpop.f32.mrf.mxu0
    %1951 = vdwg.mxu0
    %1952 = vmatpush.bf16.msra.mxu0 0
    %1953 = vmatpush.bf16.msra.mxu0 0
    %1954 = vmatpush.bf16.msra.mxu0 0
    %1955 = vmatpush.bf16.msra.mxu0 0
    %1956 = vmatpush.bf16.msra.mxu0 %v1930
    %1957 = vmatpush.bf16.msra.mxu0 %v1928
    %1958 = vmatpush.bf16.msra.mxu0 %v1926
    %1959 = vmatpush.bf16.msra.mxu0 %v1924
    %1960 = vmatmul.bf16.gmra.mxu0 %v362
    %v1961 = vpop.f32.mrf.mxu0
    %v1962 = vadd.f32 0.0, %v1961
    %v1963 = vpop.f32.mrf.mxu0
    %1964 = vdwg.mxu0
    %v1965 = vadd.f32 %v1875, %v1949
    %v1966 = vadd.f32 %v1876, %v1962
    %v1967 = vmul.f32 %v1965, 0.5
    %v1968 = vtanh.pop %v1967
    %v1969 = vadd.f32 %v1968, 1.0
    %v1970 = vmul.f32 %v1969, 0.5
    %v1971 = vtanh.pop %v1966
    %v1972 = vmul.f32 %v1966, 0.5
    %v1973 = vtanh.pop %v1972
    %v1974 = vadd.f32 %v1973, 1.0
    %v1975 = vmul.f32 %v1974, 0.5
    %v1976 = vmul.f32 %v1970, 0.0
    %v1977 = vmul.f32 %v1970, %v1971
    %1979 = vrot.lane.b32.xlu0 %v1977, 64
    %v1980 = vpop.permute.xlu0 %1979
    %v1982 = vadd.f32 %v1976, %v1980
    %v1983 = vtanh.pop %v1982
    %v1984 = vmul.f32 %v1975, %v1983
    %v1985 = vpack.c.bf16 %v1984, %v1984
    %1987 = vrot.lane.b32.xlu0 %v1985, 64
    %v1988 = vpop.permute.xlu0 %1987
    %v1990 = vsel %vm360, %v1988, 0
    %1992 = vmatpush.bf16.msra.mxu0 0
    %1993 = vmatpush.bf16.msra.mxu0 0
    %1994 = vmatpush.bf16.msra.mxu0 0
    %1995 = vmatpush.bf16.msra.mxu0 0
    %1996 = vmatpush.bf16.msra.mxu0 %v1929
    %1997 = vmatpush.bf16.msra.mxu0 %v1927
    %1998 = vmatpush.bf16.msra.mxu0 %v1925
    %1999 = vmatpush.bf16.msra.mxu0 %v1923
    %2000 = vmatmul.bf16.gmra.mxu0 %v1990
    %v2001 = vpop.f32.mrf.mxu0
    %v2002 = vadd.f32 0.0, %v2001
    %v2003 = vpop.f32.mrf.mxu0
    %2004 = vdwg.mxu0
    %2005 = vmatpush.bf16.msra.mxu0 0
    %2006 = vmatpush.bf16.msra.mxu0 0
    %2007 = vmatpush.bf16.msra.mxu0 0
    %2008 = vmatpush.bf16.msra.mxu0 0
    %2009 = vmatpush.bf16.msra.mxu0 %v1930
    %2010 = vmatpush.bf16.msra.mxu0 %v1928
    %2011 = vmatpush.bf16.msra.mxu0 %v1926
    %2012 = vmatpush.bf16.msra.mxu0 %v1924
    %2013 = vmatmul.bf16.gmra.mxu0 %v1990
    %v2014 = vpop.f32.mrf.mxu0
    %v2015 = vadd.f32 0.0, %v2014
    %v2016 = vpop.f32.mrf.mxu0
    %2017 = vdwg.mxu0
    %v2018 = vadd.f32 %v1877, %v2002
    %v2019 = vadd.f32 %v1878, %v2015
    %v2020 = vmul.f32 %v2018, 0.5
    %v2021 = vtanh.pop %v2020
    %v2022 = vadd.f32 %v2021, 1.0
    %v2023 = vmul.f32 %v2022, 0.5
    %v2024 = vtanh.pop %v2019
    %v2025 = vmul.f32 %v2019, 0.5
    %v2026 = vtanh.pop %v2025
    %v2027 = vadd.f32 %v2026, 1.0
    %v2028 = vmul.f32 %v2027, 0.5
    %v2029 = vmul.f32 %v2023, %v1982
    %v2030 = vmul.f32 %v2023, %v2024
    %2032 = vrot.lane.b32.xlu0 %v2030, 64
    %v2033 = vpop.permute.xlu0 %2032
    %v2035 = vadd.f32 %v2029, %v2033
    %v2036 = vtanh.pop %v2035
    %v2037 = vmul.f32 %v2028, %v2036
    %v2038 = vpack.c.bf16 %v2037, %v2037
    %2040 = vrot.lane.b32.xlu0 %v2038, 64
    %v2041 = vpop.permute.xlu0 %2040
    %v2043 = vsel %vm360, %v2041, 0
    %2045 = vmatpush.bf16.msra.mxu0 0
    %2046 = vmatpush.bf16.msra.mxu0 0
    %2047 = vmatpush.bf16.msra.mxu0 0
    %2048 = vmatpush.bf16.msra.mxu0 0
    %2049 = vmatpush.bf16.msra.mxu0 %v1929
    %2050 = vmatpush.bf16.msra.mxu0 %v1927
    %2051 = vmatpush.bf16.msra.mxu0 %v1925
    %2052 = vmatpush.bf16.msra.mxu0 %v1923
    %2053 = vmatmul.bf16.gmra.mxu0 %v2043
    %v2054 = vpop.f32.mrf.mxu0
    %v2055 = vadd.f32 0.0, %v2054
    %v2056 = vpop.f32.mrf.mxu0
    %2057 = vdwg.mxu0
    %2058 = vmatpush.bf16.msra.mxu0 0
    %2059 = vmatpush.bf16.msra.mxu0 0
    %2060 = vmatpush.bf16.msra.mxu0 0
    %2061 = vmatpush.bf16.msra.mxu0 0
    %2062 = vmatpush.bf16.msra.mxu0 %v1930
    %2063 = vmatpush.bf16.msra.mxu0 %v1928
    %2064 = vmatpush.bf16.msra.mxu0 %v1926
    %2065 = vmatpush.bf16.msra.mxu0 %v1924
    %2066 = vmatmul.bf16.gmra.mxu0 %v2043
    %v2067 = vpop.f32.mrf.mxu0
    %v2068 = vadd.f32 0.0, %v2067
    %v2069 = vpop.f32.mrf.mxu0
    %2070 = vdwg.mxu0
    %v2071 = vadd.f32 %v1879, %v2055
    %v2072 = vadd.f32 %v1880, %v2068
    %v2073 = vmul.f32 %v2071, 0.5
    %v2074 = vtanh.pop %v2073
    %v2075 = vadd.f32 %v2074, 1.0
    %v2076 = vmul.f32 %v2075, 0.5
    %v2077 = vtanh.pop %v2072
    %v2078 = vmul.f32 %v2072, 0.5
    %v2079 = vtanh.pop %v2078
    %v2080 = vadd.f32 %v2079, 1.0
    %v2081 = vmul.f32 %v2080, 0.5
    %v2082 = vmul.f32 %v2076, %v2035
    %v2083 = vmul.f32 %v2076, %v2077
    %2085 = vrot.lane.b32.xlu0 %v2083, 64
    %v2086 = vpop.permute.xlu0 %2085
    %v2088 = vadd.f32 %v2082, %v2086
    %v2089 = vtanh.pop %v2088
    %v2090 = vmul.f32 %v2081, %v2089
    %v2091 = vpack.c.bf16 %v2090, %v2090
    %2093 = vrot.lane.b32.xlu0 %v2091, 64
    %v2094 = vpop.permute.xlu0 %2093
    %v2096 = vsel %vm360, %v2094, 0
    %2098 = vmatpush.bf16.msra.mxu0 0
    %2099 = vmatpush.bf16.msra.mxu0 0
    %2100 = vmatpush.bf16.msra.mxu0 0
    %2101 = vmatpush.bf16.msra.mxu0 0
    %2102 = vmatpush.bf16.msra.mxu0 %v1929
    %2103 = vmatpush.bf16.msra.mxu0 %v1927
    %2104 = vmatpush.bf16.msra.mxu0 %v1925
    %2105 = vmatpush.bf16.msra.mxu0 %v1923
    %2106 = vmatmul.bf16.gmra.mxu0 %v2096
    %v2107 = vpop.f32.mrf.mxu0
    %v2108 = vadd.f32 0.0, %v2107
    %v2109 = vpop.f32.mrf.mxu0
    %2110 = vdwg.mxu0
    %2111 = vmatpush.bf16.msra.mxu0 0
    %2112 = vmatpush.bf16.msra.mxu0 0
    %2113 = vmatpush.bf16.msra.mxu0 0
    %2114 = vmatpush.bf16.msra.mxu0 0
    %2115 = vmatpush.bf16.msra.mxu0 %v1930
    %2116 = vmatpush.bf16.msra.mxu0 %v1928
    %2117 = vmatpush.bf16.msra.mxu0 %v1926
    %2118 = vmatpush.bf16.msra.mxu0 %v1924
    %2119 = vmatmul.bf16.gmra.mxu0 %v2096
    %v2120 = vpop.f32.mrf.mxu0
    %v2121 = vadd.f32 0.0, %v2120
    %v2122 = vpop.f32.mrf.mxu0
    %2123 = vdwg.mxu0
    %v2124 = vadd.f32 %v1881, %v2108
    %v2125 = vadd.f32 %v1882, %v2121
    %v2126 = vmul.f32 %v2124, 0.5
    %v2127 = vtanh.pop %v2126
    %v2128 = vadd.f32 %v2127, 1.0
    %v2129 = vmul.f32 %v2128, 0.5
    %v2130 = vtanh.pop %v2125
    %v2131 = vmul.f32 %v2125, 0.5
    %v2132 = vtanh.pop %v2131
    %v2133 = vadd.f32 %v2132, 1.0
    %v2134 = vmul.f32 %v2133, 0.5
    %v2135 = vmul.f32 %v2129, %v2088
    %v2136 = vmul.f32 %v2129, %v2130
    %2138 = vrot.lane.b32.xlu0 %v2136, 64
    %v2139 = vpop.permute.xlu0 %2138
    %v2141 = vadd.f32 %v2135, %v2139
    %v2142 = vtanh.pop %v2141
    %v2143 = vmul.f32 %v2134, %v2142
    %v2144 = vpack.c.bf16 %v2143, %v2143
    %2146 = vrot.lane.b32.xlu0 %v2144, 64
    %v2147 = vpop.permute.xlu0 %2146
    %v2149 = vsel %vm360, %v2147, 0
    %2151 = vmatpush.bf16.msra.mxu0 0
    %2152 = vmatpush.bf16.msra.mxu0 0
    %2153 = vmatpush.bf16.msra.mxu0 0
    %2154 = vmatpush.bf16.msra.mxu0 0
    %2155 = vmatpush.bf16.msra.mxu0 %v1929
    %2156 = vmatpush.bf16.msra.mxu0 %v1927
    %2157 = vmatpush.bf16.msra.mxu0 %v1925
    %2158 = vmatpush.bf16.msra.mxu0 %v1923
    %2159 = vmatmul.bf16.gmra.mxu0 %v2149
    %v2160 = vpop.f32.mrf.mxu0
    %v2161 = vadd.f32 0.0, %v2160
    %v2162 = vpop.f32.mrf.mxu0
    %2163 = vdwg.mxu0
    %2164 = vmatpush.bf16.msra.mxu0 0
    %2165 = vmatpush.bf16.msra.mxu0 0
    %2166 = vmatpush.bf16.msra.mxu0 0
    %2167 = vmatpush.bf16.msra.mxu0 0
    %2168 = vmatpush.bf16.msra.mxu0 %v1930
    %2169 = vmatpush.bf16.msra.mxu0 %v1928
    %2170 = vmatpush.bf16.msra.mxu0 %v1926
    %2171 = vmatpush.bf16.msra.mxu0 %v1924
    %2172 = vmatmul.bf16.gmra.mxu0 %v2149
    %v2173 = vpop.f32.mrf.mxu0
    %v2174 = vadd.f32 0.0, %v2173
    %v2175 = vpop.f32.mrf.mxu0
    %2176 = vdwg.mxu0
    %v2177 = vadd.f32 %v1883, %v2161
    %v2178 = vadd.f32 %v1884, %v2174
    %v2179 = vmul.f32 %v2177, 0.5
    %v2180 = vtanh.pop %v2179
    %v2181 = vadd.f32 %v2180, 1.0
    %v2182 = vmul.f32 %v2181, 0.5
    %v2183 = vtanh.pop %v2178
    %v2184 = vmul.f32 %v2178, 0.5
    %v2185 = vtanh.pop %v2184
    %v2186 = vadd.f32 %v2185, 1.0
    %v2187 = vmul.f32 %v2186, 0.5
    %v2188 = vmul.f32 %v2182, %v2141
    %v2189 = vmul.f32 %v2182, %v2183
    %2191 = vrot.lane.b32.xlu0 %v2189, 64
    %v2192 = vpop.permute.xlu0 %2191
    %v2194 = vadd.f32 %v2188, %v2192
    %v2195 = vtanh.pop %v2194
    %v2196 = vmul.f32 %v2187, %v2195
    %v2197 = vpack.c.bf16 %v2196, %v2196
    %2199 = vrot.lane.b32.xlu0 %v2197, 64
    %v2200 = vpop.permute.xlu0 %2199
    %v2202 = vsel %vm360, %v2200, 0
    %2204 = vmatpush.bf16.msra.mxu0 0
    %2205 = vmatpush.bf16.msra.mxu0 0
    %2206 = vmatpush.bf16.msra.mxu0 0
    %2207 = vmatpush.bf16.msra.mxu0 0
    %2208 = vmatpush.bf16.msra.mxu0 %v1929
    %2209 = vmatpush.bf16.msra.mxu0 %v1927
    %2210 = vmatpush.bf16.msra.mxu0 %v1925
    %2211 = vmatpush.bf16.msra.mxu0 %v1923
    %2212 = vmatmul.bf16.gmra.mxu0 %v2202
    %v2213 = vpop.f32.mrf.mxu0
    %v2214 = vadd.f32 0.0, %v2213
    %v2215 = vpop.f32.mrf.mxu0
    %2216 = vdwg.mxu0
    %2217 = vmatpush.bf16.msra.mxu0 0
    %2218 = vmatpush.bf16.msra.mxu0 0
    %2219 = vmatpush.bf16.msra.mxu0 0
    %2220 = vmatpush.bf16.msra.mxu0 0
    %2221 = vmatpush.bf16.msra.mxu0 %v1930
    %2222 = vmatpush.bf16.msra.mxu0 %v1928
    %2223 = vmatpush.bf16.msra.mxu0 %v1926
    %2224 = vmatpush.bf16.msra.mxu0 %v1924
    %2225 = vmatmul.bf16.gmra.mxu0 %v2202
    %v2226 = vpop.f32.mrf.mxu0
    %v2227 = vadd.f32 0.0, %v2226
    %v2228 = vpop.f32.mrf.mxu0
    %2229 = vdwg.mxu0
    %v2230 = vadd.f32 %v1885, %v2214
    %v2231 = vadd.f32 %v1886, %v2227
    %v2232 = vmul.f32 %v2230, 0.5
    %v2233 = vtanh.pop %v2232
    %v2234 = vadd.f32 %v2233, 1.0
    %v2235 = vmul.f32 %v2234, 0.5
    %v2236 = vtanh.pop %v2231
    %v2237 = vmul.f32 %v2231, 0.5
    %v2238 = vtanh.pop %v2237
    %v2239 = vadd.f32 %v2238, 1.0
    %v2240 = vmul.f32 %v2239, 0.5
    %v2241 = vmul.f32 %v2235, %v2194
    %v2242 = vmul.f32 %v2235, %v2236
    %2244 = vrot.lane.b32.xlu0 %v2242, 64
    %v2245 = vpop.permute.xlu0 %2244
    %v2247 = vadd.f32 %v2241, %v2245
    %v2248 = vtanh.pop %v2247
    %v2249 = vmul.f32 %v2240, %v2248
    %v2250 = vpack.c.bf16 %v2249, %v2249
    %2252 = vrot.lane.b32.xlu0 %v2250, 64
    %v2253 = vpop.permute.xlu0 %2252
    %v2255 = vsel %vm360, %v2253, 0
    %2257 = vmatpush.bf16.msra.mxu0 0
    %2258 = vmatpush.bf16.msra.mxu0 0
    %2259 = vmatpush.bf16.msra.mxu0 0
    %2260 = vmatpush.bf16.msra.mxu0 0
    %2261 = vmatpush.bf16.msra.mxu0 %v1929
    %2262 = vmatpush.bf16.msra.mxu0 %v1927
    %2263 = vmatpush.bf16.msra.mxu0 %v1925
    %2264 = vmatpush.bf16.msra.mxu0 %v1923
    %2265 = vmatmul.bf16.gmra.mxu0 %v2255
    %v2266 = vpop.f32.mrf.mxu0
    %v2267 = vadd.f32 0.0, %v2266
    %v2268 = vpop.f32.mrf.mxu0
    %2269 = vdwg.mxu0
    %2270 = vmatpush.bf16.msra.mxu0 0
    %2271 = vmatpush.bf16.msra.mxu0 0
    %2272 = vmatpush.bf16.msra.mxu0 0
    %2273 = vmatpush.bf16.msra.mxu0 0
    %2274 = vmatpush.bf16.msra.mxu0 %v1930
    %2275 = vmatpush.bf16.msra.mxu0 %v1928
    %2276 = vmatpush.bf16.msra.mxu0 %v1926
    %2277 = vmatpush.bf16.msra.mxu0 %v1924
    %2278 = vmatmul.bf16.gmra.mxu0 %v2255
    %v2279 = vpop.f32.mrf.mxu0
    %v2280 = vadd.f32 0.0, %v2279
    %v2281 = vpop.f32.mrf.mxu0
    %2282 = vdwg.mxu0
    %v2283 = vadd.f32 %v1887, %v2267
    %v2284 = vadd.f32 %v1888, %v2280
    %v2285 = vmul.f32 %v2283, 0.5
    %v2286 = vtanh.pop %v2285
    %v2287 = vadd.f32 %v2286, 1.0
    %v2288 = vmul.f32 %v2287, 0.5
    %v2289 = vtanh.pop %v2284
    %v2290 = vmul.f32 %v2284, 0.5
    %v2291 = vtanh.pop %v2290
    %v2292 = vadd.f32 %v2291, 1.0
    %v2293 = vmul.f32 %v2292, 0.5
    %v2294 = vmul.f32 %v2288, %v2247
    %v2295 = vmul.f32 %v2288, %v2289
    %2297 = vrot.lane.b32.xlu0 %v2295, 64
    %v2298 = vpop.permute.xlu0 %2297
    %v2300 = vadd.f32 %v2294, %v2298
    %v2301 = vtanh.pop %v2300
    %v2302 = vmul.f32 %v2293, %v2301
    %v2303 = vpack.c.bf16 %v2302, %v2302
    %2305 = vrot.lane.b32.xlu0 %v2303, 64
    %v2306 = vpop.permute.xlu0 %2305
    %v2308 = vsel %vm360, %v2306, 0
    %2310 = vmatpush.bf16.msra.mxu0 0
    %2311 = vmatpush.bf16.msra.mxu0 0
    %2312 = vmatpush.bf16.msra.mxu0 0
    %2313 = vmatpush.bf16.msra.mxu0 0
    %2314 = vmatpush.bf16.msra.mxu0 %v1929
    %2315 = vmatpush.bf16.msra.mxu0 %v1927
    %2316 = vmatpush.bf16.msra.mxu0 %v1925
    %2317 = vmatpush.bf16.msra.mxu0 %v1923
    %2318 = vmatmul.bf16.gmra.mxu0 %v2308
    %v2319 = vpop.f32.mrf.mxu0
    %v2320 = vadd.f32 0.0, %v2319
    %v2321 = vpop.f32.mrf.mxu0
    %2322 = vdwg.mxu0
    %2323 = vmatpush.bf16.msra.mxu0 0
    %2324 = vmatpush.bf16.msra.mxu0 0
    %2325 = vmatpush.bf16.msra.mxu0 0
    %2326 = vmatpush.bf16.msra.mxu0 0
    %2327 = vmatpush.bf16.msra.mxu0 %v1930
    %2328 = vmatpush.bf16.msra.mxu0 %v1928
    %2329 = vmatpush.bf16.msra.mxu0 %v1926
    %2330 = vmatpush.bf16.msra.mxu0 %v1924
    %2331 = vmatmul.bf16.gmra.mxu0 %v2308
    %v2332 = vpop.f32.mrf.mxu0
    %v2333 = vadd.f32 0.0, %v2332
    %v2334 = vpop.f32.mrf.mxu0
    %2335 = vdwg.mxu0
    %v2336 = vadd.f32 %v1889, %v2320
    %v2337 = vadd.f32 %v1890, %v2333
    %v2338 = vmul.f32 %v2336, 0.5
    %v2339 = vtanh.pop %v2338
    %v2340 = vadd.f32 %v2339, 1.0
    %v2341 = vmul.f32 %v2340, 0.5
    %v2342 = vtanh.pop %v2337
    %v2343 = vmul.f32 %v2337, 0.5
    %v2344 = vtanh.pop %v2343
    %v2345 = vadd.f32 %v2344, 1.0
    %v2346 = vmul.f32 %v2345, 0.5
    %v2347 = vmul.f32 %v2341, %v2300
    %v2348 = vmul.f32 %v2341, %v2342
    %2350 = vrot.lane.b32.xlu0 %v2348, 64
    %v2351 = vpop.permute.xlu0 %2350
    %v2353 = vadd.f32 %v2347, %v2351
    %v2354 = vtanh.pop %v2353
    %v2355 = vmul.f32 %v2346, %v2354
    %v2356 = vpack.c.bf16 %v2355, %v2355
    %v2357 = vld [vmem:[#allocation13] sm:$0xff]
    %v2358 = vld [vmem:[#allocation13 + $0x8] sm:$0xff]
    %v2359 = vld [vmem:[#allocation13 + $0x10] sm:$0xff]
    %v2360 = vld [vmem:[#allocation13 + $0x18] sm:$0xff]
    %v2361 = vld [vmem:[#allocation13 + $0x20] sm:$0xff]
    %v2362 = vld [vmem:[#allocation13 + $0x28] sm:$0xff]
    %v2363 = vld [vmem:[#allocation13 + $0x30] sm:$0xff]
    %v2364 = vld [vmem:[#allocation13 + $0x38] sm:$0xff]
    %v2365 = vld [vmem:[#allocation14] sm:$0x3]
    %v2367 = vperm.slane %v2365, 0
    %v2368 = vperm.slane %v2365, 1
    %2372 = vrot.lane.b32.xlu0 %v2356, 64
    %v2373 = vpop.permute.xlu0 %2372
    %v2382 = vunpack.c.l.b16 %v2357
    %v2383 = vunpack.c.h.b16 %v2357
    %v2384 = vunpack.c.l.b16 %v2358
    %v2385 = vunpack.c.h.b16 %v2358
    %v2386 = vunpack.c.l.b16 %v2359
    %v2387 = vunpack.c.h.b16 %v2359
    %v2388 = vunpack.c.l.b16 %v2360
    %v2389 = vunpack.c.h.b16 %v2360
    %v2390 = vunpack.c.l.b16 %v2361
    %v2391 = vunpack.c.h.b16 %v2361
    %v2392 = vunpack.c.l.b16 %v2362
    %v2393 = vunpack.c.h.b16 %v2362
    %v2394 = vunpack.c.l.b16 %v2363
    %v2395 = vunpack.c.h.b16 %v2363
    %v2396 = vunpack.c.l.b16 %v2364
    %v2397 = vunpack.c.h.b16 %v2364
    %v2398 = vpack.c.b16 %v2384, %v2382
    %v2399 = vpack.c.b16 %v2385, %v2383
    %v2400 = vpack.c.b16 %v2388, %v2386
    %v2401 = vpack.c.b16 %v2389, %v2387
    %v2402 = vpack.c.b16 %v2392, %v2390
    %v2403 = vpack.c.b16 %v2393, %v2391
    %v2404 = vpack.c.b16 %v2396, %v2394
    %v2405 = vpack.c.b16 %v2397, %v2395
    %v2415 = vsel %vm360, %v2373, 0
    %2417 = vmatpush.bf16.msra.mxu0 0
    %2418 = vmatpush.bf16.msra.mxu0 0
    %2419 = vmatpush.bf16.msra.mxu0 0
    %2420 = vmatpush.bf16.msra.mxu0 0
    %2421 = vmatpush.bf16.msra.mxu0 %v2404
    %2422 = vmatpush.bf16.msra.mxu0 %v2402
    %2423 = vmatpush.bf16.msra.mxu0 %v2400
    %2424 = vmatpush.bf16.msra.mxu0 %v2398
    %2425 = vmatmul.bf16.gmra.mxu0 %v2415
    %v2426 = vpop.f32.mrf.mxu0
    %v2427 = vadd.f32 %v2367, %v2426
    %v2428 = vpop.f32.mrf.mxu0
    %2429 = vdwg.mxu0
    %2430 = vmatpush.bf16.msra.mxu0 0
    %2431 = vmatpush.bf16.msra.mxu0 0
    %2432 = vmatpush.bf16.msra.mxu0 0
    %2433 = vmatpush.bf16.msra.mxu0 0
    %2434 = vmatpush.bf16.msra.mxu0 %v2405
    %2435 = vmatpush.bf16.msra.mxu0 %v2403
    %2436 = vmatpush.bf16.msra.mxu0 %v2401
    %2437 = vmatpush.bf16.msra.mxu0 %v2399
    %2438 = vmatmul.bf16.gmra.mxu0 %v2415
    %v2439 = vpop.f32.mrf.mxu0
    %v2440 = vadd.f32 %v2368, %v2439
    %v2441 = vpop.f32.mrf.mxu0
    %2442 = vdwg.mxu0
    %v2443 = vmul.f32 %v2427, 0.5
    %v2444 = vmul.f32 %v2440, 0.5
    %v2445 = vmul.f32 %v2427, %v2427
    %v2446 = vmul.f32 %v2440, %v2440
    %v2447 = vmul.f32 %v2445, %v2427
    %v2448 = vmul.f32 %v2446, %v2440
    %v2449 = vmul.f32 %v2447, 0.044715
    %v2450 = vmul.f32 %v2448, 0.044715
    %v2451 = vadd.f32 %v2427, %v2449
    %v2452 = vadd.f32 %v2440, %v2450
    %v2453 = vmul.f32 %v2451, 0.7978846
    %v2454 = vmul.f32 %v2452, 0.7978846
    %v2455 = vtanh.pop %v2453
    %v2456 = vtanh.pop %v2454
    %v2457 = vadd.f32 %v2455, 1.0
    %v2458 = vadd.f32 %v2456, 1.0
    %v2459 = vmul.f32 %v2443, %v2457
    %v2460 = vmul.f32 %v2444, %v2458
    %v2461 = vpack.c.bf16 %v2459, %v2459
    %v2462 = vpack.c.bf16 %v2460, %v2460
    %v2463 = vld [vmem:[%s12] sm:$0xf]
    %v2464 = vld [vmem:[%s12 + $0x4] sm:$0xf]
    %v2465 = vld [vmem:[%s12 + $0x8] sm:$0xf]
    %v2466 = vld [vmem:[%s12 + $0xc] sm:$0xf]
    %v2467 = vld [vmem:[%s12 + $0x10] sm:$0xf]
    %v2468 = vld [vmem:[%s12 + $0x14] sm:$0xf]
    %v2469 = vld [vmem:[%s12 + $0x18] sm:$0xf]
    %v2470 = vld [vmem:[%s12 + $0x1c] sm:$0xf]
    %v2471 = vld [vmem:[%s12 + $0x20] sm:$0xf]
    %v2472 = vld [vmem:[%s12 + $0x24] sm:$0xf]
    %v2473 = vld [vmem:[%s12 + $0x28] sm:$0xf]
    %v2474 = vld [vmem:[%s12 + $0x2c] sm:$0xf]
    %v2475 = vld [vmem:[%s12 + $0x30] sm:$0xf]
    %v2476 = vld [vmem:[%s12 + $0x34] sm:$0xf]
    %v2477 = vld [vmem:[%s12 + $0x38] sm:$0xf]
    %v2478 = vld [vmem:[%s12 + $0x3c] sm:$0xf]
    %v2479 = vld [vmem:[%s12 + $0x40] sm:$0xf]
    %v2480 = vld [vmem:[%s12 + $0x44] sm:$0xf]
    %v2481 = vld [vmem:[%s12 + $0x48] sm:$0xf]
    %v2482 = vld [vmem:[%s12 + $0x4c] sm:$0xf]
    %v2483 = vld [vmem:[%s12 + $0x50] sm:$0xf]
    %v2484 = vld [vmem:[%s12 + $0x54] sm:$0xf]
    %v2485 = vld [vmem:[%s12 + $0x58] sm:$0xf]
    %v2486 = vld [vmem:[%s12 + $0x5c] sm:$0xf]
    %v2487 = vld [vmem:[%s12 + $0x60] sm:$0xf]
    %v2488 = vld [vmem:[%s12 + $0x64] sm:$0xf]
    %v2489 = vld [vmem:[%s12 + $0x68] sm:$0xf]
    %v2490 = vld [vmem:[%s12 + $0x6c] sm:$0xf]
    %v2491 = vld [vmem:[%s12 + $0x70] sm:$0xf]
    %v2492 = vld [vmem:[%s12 + $0x74] sm:$0xf]
    %v2493 = vld [vmem:[%s12 + $0x78] sm:$0xf]
    %v2494 = vld [vmem:[%s12 + $0x7c] sm:$0xf]
    %v2495 = vld [vmem:[#allocation16] sm:$0x1]
    %v2497 = vperm.slane %v2495, 0
    %v2531 = vunpack.c.l.b16 %v2463
    %v2532 = vunpack.c.l.b16 %v2464
    %v2533 = vunpack.c.l.b16 %v2465
    %v2534 = vunpack.c.l.b16 %v2466
    %v2535 = vunpack.c.l.b16 %v2467
    %v2536 = vunpack.c.l.b16 %v2468
    %v2537 = vunpack.c.l.b16 %v2469
    %v2538 = vunpack.c.l.b16 %v2470
    %v2539 = vunpack.c.l.b16 %v2471
    %v2540 = vunpack.c.l.b16 %v2472
    %v2541 = vunpack.c.l.b16 %v2473
    %v2542 = vunpack.c.l.b16 %v2474
    %v2543 = vunpack.c.l.b16 %v2475
    %v2544 = vunpack.c.l.b16 %v2476
    %v2545 = vunpack.c.l.b16 %v2477
    %v2546 = vunpack.c.l.b16 %v2478
    %v2547 = vunpack.c.l.b16 %v2479
    %v2548 = vunpack.c.l.b16 %v2480
    %v2549 = vunpack.c.l.b16 %v2481
    %v2550 = vunpack.c.l.b16 %v2482
    %v2551 = vunpack.c.l.b16 %v2483
    %v2552 = vunpack.c.l.b16 %v2484
    %v2553 = vunpack.c.l.b16 %v2485
    %v2554 = vunpack.c.l.b16 %v2486
    %v2555 = vunpack.c.l.b16 %v2487
    %v2556 = vunpack.c.l.b16 %v2488
    %v2557 = vunpack.c.l.b16 %v2489
    %v2558 = vunpack.c.l.b16 %v2490
    %v2559 = vunpack.c.l.b16 %v2491
    %v2560 = vunpack.c.l.b16 %v2492
    %v2561 = vunpack.c.l.b16 %v2493
    %v2562 = vunpack.c.l.b16 %v2494
    %v2563 = vpack.c.b16 %v2532, %v2531
    %v2564 = vpack.c.b16 %v2534, %v2533
    %v2565 = vpack.c.b16 %v2536, %v2535
    %v2566 = vpack.c.b16 %v2538, %v2537
    %v2567 = vpack.c.b16 %v2540, %v2539
    %v2568 = vpack.c.b16 %v2542, %v2541
    %v2569 = vpack.c.b16 %v2544, %v2543
    %v2570 = vpack.c.b16 %v2546, %v2545
    %v2571 = vpack.c.b16 %v2548, %v2547
    %v2572 = vpack.c.b16 %v2550, %v2549
    %v2573 = vpack.c.b16 %v2552, %v2551
    %v2574 = vpack.c.b16 %v2554, %v2553
    %v2575 = vpack.c.b16 %v2556, %v2555
    %v2576 = vpack.c.b16 %v2558, %v2557
    %v2577 = vpack.c.b16 %v2560, %v2559
    %v2578 = vpack.c.b16 %v2562, %v2561
    %2595 = vmatpush.bf16.msra.mxu0 %v2570
    %2596 = vmatpush.bf16.msra.mxu0 %v2569
    %2597 = vmatpush.bf16.msra.mxu0 %v2568
    %2598 = vmatpush.bf16.msra.mxu0 %v2567
    %2599 = vmatpush.bf16.msra.mxu0 %v2566
    %2600 = vmatpush.bf16.msra.mxu0 %v2565
    %2601 = vmatpush.bf16.msra.mxu0 %v2564
    %2602 = vmatpush.bf16.msra.mxu0 %v2563
    %2603 = vmatmul.bf16.gmra.mxu0 %v2461
    %v2604 = vpop.f32.mrf.mxu0
    %v2605 = vadd.f32 %v2497, %v2604
    %v2606 = vpop.f32.mrf.mxu0
    %2607 = vdwg.mxu0
    %2608 = vmatpush.bf16.msra.mxu0 %v2578
    %2609 = vmatpush.bf16.msra.mxu0 %v2577
    %2610 = vmatpush.bf16.msra.mxu0 %v2576
    %2611 = vmatpush.bf16.msra.mxu0 %v2575
    %2612 = vmatpush.bf16.msra.mxu0 %v2574
    %2613 = vmatpush.bf16.msra.mxu0 %v2573
    %2614 = vmatpush.bf16.msra.mxu0 %v2572
    %2615 = vmatpush.bf16.msra.mxu0 %v2571
    %2616 = vmatmul.bf16.gmra.mxu0 %v2462
    %v2617 = vpop.f32.mrf.mxu0
    %v2618 = vadd.f32 %v2605, %v2617
    %v2619 = vpop.f32.mrf.mxu0
    %2620 = vdwg.mxu0
    %v2621 = vmul.f32 %v2618, 0.5
    %v2622 = vmul.f32 %v2618, %v2618
    %v2623 = vmul.f32 %v2622, %v2618
    %v2624 = vmul.f32 %v2623, 0.044715
    %v2625 = vadd.f32 %v2618, %v2624
    %v2626 = vmul.f32 %v2625, 0.7978846
    %v2627 = vtanh.pop %v2626
    %v2628 = vadd.f32 %v2627, 1.0
    %v2629 = vmul.f32 %v2621, %v2628
    %v2630 = vpack.c.bf16 %v2629, %v2629
    %v2631 = vld [vmem:[#allocation17] sm:$0xf]
    %v2632 = vld [vmem:[#allocation17 + $0x4] sm:$0xf]
    %v2633 = vld [vmem:[#allocation17 + $0x8] sm:$0xf]
    %v2634 = vld [vmem:[#allocation17 + $0xc] sm:$0xf]
    %v2635 = vld [vmem:[#allocation17 + $0x10] sm:$0xf]
    %v2636 = vld [vmem:[#allocation17 + $0x14] sm:$0xf]
    %v2637 = vld [vmem:[#allocation17 + $0x18] sm:$0xf]
    %v2638 = vld [vmem:[#allocation17 + $0x1c] sm:$0xf]
    %v2639 = vld [vmem:[#allocation17 + $0x20] sm:$0xf]
    %v2640 = vld [vmem:[#allocation17 + $0x24] sm:$0xf]
    %v2641 = vld [vmem:[#allocation17 + $0x28] sm:$0xf]
    %v2642 = vld [vmem:[#allocation17 + $0x2c] sm:$0xf]
    %v2643 = vld [vmem:[#allocation17 + $0x30] sm:$0xf]
    %v2644 = vld [vmem:[#allocation17 + $0x34] sm:$0xf]
    %v2645 = vld [vmem:[#allocation17 + $0x38] sm:$0xf]
    %v2646 = vld [vmem:[#allocation17 + $0x3c] sm:$0xf]
    %v2647 = vld [vmem:[#allocation19] sm:$0x1]
    %v2649 = vperm.slane %v2647, 0
    %v2667 = vunpack.c.l.b16 %v2631
    %v2668 = vunpack.c.l.b16 %v2632
    %v2669 = vunpack.c.l.b16 %v2633
    %v2670 = vunpack.c.l.b16 %v2634
    %v2671 = vunpack.c.l.b16 %v2635
    %v2672 = vunpack.c.l.b16 %v2636
    %v2673 = vunpack.c.l.b16 %v2637
    %v2674 = vunpack.c.l.b16 %v2638
    %v2675 = vunpack.c.l.b16 %v2639
    %v2676 = vunpack.c.l.b16 %v2640
    %v2677 = vunpack.c.l.b16 %v2641
    %v2678 = vunpack.c.l.b16 %v2642
    %v2679 = vunpack.c.l.b16 %v2643
    %v2680 = vunpack.c.l.b16 %v2644
    %v2681 = vunpack.c.l.b16 %v2645
    %v2682 = vunpack.c.l.b16 %v2646
    %v2683 = vpack.c.b16 %v2668, %v2667
    %v2684 = vpack.c.b16 %v2670, %v2669
    %v2685 = vpack.c.b16 %v2672, %v2671
    %v2686 = vpack.c.b16 %v2674, %v2673
    %v2687 = vpack.c.b16 %v2676, %v2675
    %v2688 = vpack.c.b16 %v2678, %v2677
    %v2689 = vpack.c.b16 %v2680, %v2679
    %v2690 = vpack.c.b16 %v2682, %v2681
    %2699 = vmatpush.bf16.msra.mxu0 %v2690
    %2700 = vmatpush.bf16.msra.mxu0 %v2689
    %2701 = vmatpush.bf16.msra.mxu0 %v2688
    %2702 = vmatpush.bf16.msra.mxu0 %v2687
    %2703 = vmatpush.bf16.msra.mxu0 %v2686
    %2704 = vmatpush.bf16.msra.mxu0 %v2685
    %2705 = vmatpush.bf16.msra.mxu0 %v2684
    %2706 = vmatpush.bf16.msra.mxu0 %v2683
    %2707 = vmatmul.bf16.gmra.mxu0 %v2630
    %v2708 = vpop.f32.mrf.mxu0
    %v2709 = vadd.f32 %v2649, %v2708
    %v2710 = vpop.f32.mrf.mxu0
    %2711 = vdwg.mxu0
    %2712 = vst [vmem:[%s16] sm:$0xff] %v2709
    // Predicated region
    $region102: #{improved_landmark_lstm_forward.1} parent=1 // pred_check
      _
    $region103: #{improved_landmark_lstm_forward.1} parent=1 // pred_check_branch
      %2714 = sbr.rel (0) target = $region105
    $region104: #{improved_landmark_lstm_forward.1} parent=1 // pred_region
      _
    $region105: #{improved_landmark_lstm_forward.1} parent=1 // pred_fallthru
      _
    // Predicated region
    $region106: #{improved_landmark_lstm_forward.1} parent=1 // pred_check
      _
    $region107: #{improved_landmark_lstm_forward.1} parent=1 // pred_check_branch
      %2716 = sbr.rel (0) target = $region109
    $region108: #{improved_landmark_lstm_forward.1} parent=1 // pred_region
      _
    $region109: #{improved_landmark_lstm_forward.1} parent=1 // pred_fallthru
      _
    %2717 = vsyncpa [#allocation7], 1
    %2718 = vsyncpa [#allocation9], 1
    %2719 = vsyncpa [#allocation12], 1
    %2720 = vsyncpa [#allocation15], 1
    %2721 = vsyncpa [#allocation18], 1

</llo_original>
